<compile_context>
chip_gen: v7x
topology: tpu7x:2x2x1
jax: 0.10.0
libtpu: 0.0.40
codegen_flags: <defaults>
</compile_context>

<pallas_src>
import jax
import jax.numpy as jnp
import numpy as np
from jax.experimental import pallas as pl
from jax.experimental.pallas import tpu as pltpu

H = W = 16
HW = H * W
# MaxPool2d(kernel_size=3, stride=3, padding=1) on a 16x16 map -> 6x6 output.
# Output window i covers input rows [3i-1, 3i+1] clipped to [0, 15] (the -inf pad never wins).
_POOL_GROUPS = ((0, 2), (2, 5), (5, 8), (8, 11), (11, 14), (14, 16))
_NUM_POOL_CELLS = len(_POOL_GROUPS) ** 2  # 36


def _relation_net_kernel(x_ref, w1p_ref, w1r_ref, b1_ref, w2_ref, b2_ref,
                         out_ref, feat_ref):
    # x_ref: (NC, HW) f32 -- channels (n-major, c-minor) on sublanes, spatial (h*W+w) on lanes.
    nc = x_ref.shape[0]
    x = x_ref[...]

    # Layout change for the spatial reductions, done in-kernel on the (otherwise idle) XLU.
    xt = jnp.transpose(x)                                              # (HW, NC)

    # torch.where(F.normalize(x) > 0, x, 0) == relu(x): the channel-dim L2 norm is a strictly
    # non-negative scalar, so the >0 mask equals sign(x) (all-zero columns give 0 == relu(0)).
    relu_mean = jnp.mean(jnp.maximum(xt, 0.0), axis=0, keepdims=True)  # (1, NC)

    # MaxPool2d(3, stride=3, padding=1) then spatial mean over the 6x6 = 36 cells.
    x3 = xt.reshape(H, W, nc)                                          # (16, 16, NC)
    row_sums = []
    for a, b in _POOL_GROUPS:                        # pool over rows (h)
        rmax = jnp.max(x3[a:b], axis=0)              # (W, NC)
        cells = [jnp.max(rmax[c:d], axis=0, keepdims=True)             # (1, NC)
                 for c, d in _POOL_GROUPS]           # pool over cols (w)
        # tree-add the 6 cells of this row group -> independent partial sums (ILP).
        row_sums.append((cells[0] + cells[1]) + (cells[2] + cells[3]) + (cells[4] + cells[5]))
    pool_sum = ((row_sums[0] + row_sums[1]) + (row_sums[2] + row_sums[3])
                + (row_sums[4] + row_sums[5]))
    pool_mean = pool_sum * (1.0 / _NUM_POOL_CELLS)                     # (1, NC)

    # Auxiliary feature output: row 0 = pool mean, row 1 = relu mean (n-major, c-minor).
    # Two 1-sublane stores kept deliberately: a sublane-dim concat would cost the same work
    # and risks an unsupported relayout.
    feat_ref[0:1, :] = pool_mean
    feat_ref[1:2, :] = relu_mean

    # mlp_2: Linear(2048,128) + ReLU + Linear(128,2) + ReLU.
    # cat((pool, relu)).flatten() @ w1 == pool_mean @ w1[:NC] + relu_mean @ w1[NC:], so the
    # 2048-wide feature vector is never materialized. w1 halves are bf16; accumulate in f32.
    h = (jnp.dot(pool_mean.astype(jnp.bfloat16), w1p_ref[...],
                 preferred_element_type=jnp.float32)
         + jnp.dot(relu_mean.astype(jnp.bfloat16), w1r_ref[...],
                   preferred_element_type=jnp.float32)
         + b1_ref[...])                                                # (1, 128)
    h = jnp.maximum(h, 0.0)
    o = jnp.dot(h, w2_ref[...], preferred_element_type=jnp.float32) + b2_ref[...]
    o = jnp.maximum(o, 0.0)                                            # (1, 128); cols >= 2 are 0
    out_ref[...] = o[:, :2]                                            # (1, 2)


def prepare_params(w1, b1, w2, b2, nc):
    """One-time parameter prep (kernel layouts). w1: (2048,128)=W1.T, w2: (128,2)=W2.T."""
    assert w1.shape == (2 * nc, 128) and w2.shape == (128, 2)
    w1_pool = w1[:nc].astype(jnp.bfloat16)          # multiplies the max-pool mean features
    w1_relu = w1[nc:].astype(jnp.bfloat16)          # multiplies the relu mean features
    b1_2d = jnp.asarray(b1, jnp.float32).reshape(1, 128)
    w2p = jnp.zeros((128, 128), jnp.float32).at[:, :2].set(jnp.asarray(w2, jnp.float32))
    b2p = jnp.zeros((1, 128), jnp.float32).at[0, :2].set(jnp.asarray(b2, jnp.float32))
    return w1_pool, w1_relu, b1_2d, w2p, b2p


@jax.jit
def _forward_impl(x, w1_pool, w1_relu, b1, w2p, b2p):
    N, C, Hx, Wx = x.shape
    assert (Hx, Wx) == (H, W)
    NC = N * C
    assert 2 * NC == 2048, "Relation_Net.mlp_2 expects a flattened vector of length 2048"

    # Contiguous NCHW view -> (N*C, H*W): pure reshape, no wrapper-side transpose/copy.
    x2d = x.reshape(NC, HW).astype(jnp.float32)

    vmem = pl.BlockSpec(memory_space=pltpu.MemorySpace.VMEM)
    out, feats = pl.pallas_call(
        _relation_net_kernel,
        out_shape=(jax.ShapeDtypeStruct((1, 2), jnp.float32),
                   jax.ShapeDtypeStruct((2, NC), jnp.float32)),
        in_specs=[vmem, vmem, vmem, vmem, vmem, vmem],
        out_specs=(vmem, vmem),
        compiler_params=pltpu.CompilerParams(vmem_limit_bytes=16 * 1024 * 1024),
    )(x2d, w1_pool, w1_relu, b1, w2p, b2p)
    return out, feats


def relation_net_forward(x, w1_pool, w1_relu, b1, w2p, b2p):
    """== Relation_Net.forward(x): returns the (1, 2) output (x[None, ...] in torch)."""
    out, _ = _forward_impl(x, w1_pool, w1_relu, b1, w2p, b2p)
    return out


if __name__ == "__main__":
    key = jax.random.PRNGKey(0)
    kx, k1, k2 = jax.random.split(key, 3)

    # Linear(2048, 128) pins 2*N*C == 2048; smallest consistent choice with batch=2.
    N, C = 2, 512
    x = jax.random.normal(kx, (N, C, H, W), jnp.float32)

    # mlp_2 parameters: Linear weights ~ N(0, 0.01^2), biases = 0 (stored transposed).
    w1 = 0.01 * jax.random.normal(k1, (2048, 128), jnp.float32)
    b1 = jnp.zeros((128,), jnp.float32)
    w2 = 0.01 * jax.random.normal(k2, (128, 2), jnp.float32)
    b2 = jnp.zeros((2,), jnp.float32)

    params = prepare_params(w1, b1, w2, b2, N * C)
    out, feats = _forward_impl(x, *params)
    out = jax.block_until_ready(out)
    feats = jax.block_until_ready(feats)

    # ---- pure-JAX reference -------------------------------------------------
    relu_mean_ref = jnp.mean(jnp.where(x > 0, x, 0.0), axis=(2, 3))            # (N, C)
    pooled = jax.lax.reduce_window(
        x, -jnp.inf, jax.lax.max,
        (1, 1, 3, 3), (1, 1, 3, 3),
        [(0, 0), (0, 0), (1, 1), (1, 1)],
    )                                                                           # (N, C, 6, 6)
    pool_mean_ref = jnp.mean(pooled, axis=(2, 3))                               # (N, C)

    np.testing.assert_allclose(np.asarray(feats[0]), np.asarray(pool_mean_ref.reshape(-1)),
                               rtol=1e-5, atol=1e-6)
    np.testing.assert_allclose(np.asarray(feats[1]), np.asarray(relu_mean_ref.reshape(-1)),
                               rtol=1e-5, atol=1e-6)

    feat_ref = jnp.concatenate([pool_mean_ref.reshape(-1), relu_mean_ref.reshape(-1)])
    h_ref = jnp.maximum(feat_ref @ w1 + b1, 0.0)
    out_ref = jnp.maximum(h_ref @ w2 + b2, 0.0)[None]                           # (1, 2)
    np.testing.assert_allclose(np.asarray(out), np.asarray(out_ref), rtol=5e-2, atol=1e-3)

    assert out.shape == (1, 2)
    print("KERNEL_OK")
</pallas_src>

<mosaic_0001>
module attributes {stable_mosaic.version = 11 : i64} {
  func.func @_relation_net_kernel(%arg0: memref<1024x256xf32, #tpu.memory_space<vmem>>, %arg1: memref<1024x128xbf16, #tpu.memory_space<vmem>>, %arg2: memref<1024x128xbf16, #tpu.memory_space<vmem>>, %arg3: memref<1x128xf32, #tpu.memory_space<vmem>>, %arg4: memref<128x128xf32, #tpu.memory_space<vmem>>, %arg5: memref<1x128xf32, #tpu.memory_space<vmem>>, %arg6: memref<1x2xf32, #tpu.memory_space<vmem>>, %arg7: memref<2x1024xf32, #tpu.memory_space<vmem>>) attributes {dimension_semantics = [], scalar_prefetch = 0 : i64, scratch_operands = 0 : i64, tpu.core_type = #tpu.core_type<tc>} {
    %c0 = arith.constant 0 : index
    %c0_0 = arith.constant 0 : index
    %0 = vector.load %arg0[%c0, %c0_0] : memref<1024x256xf32, #tpu.memory_space<vmem>>, vector<1024x256xf32>
    %1 = tpu.transpose %0, [1, 0] : vector<1024x256xf32> -> vector<256x1024xf32>
    %cst = arith.constant 0.000000e+00 : f32
    %2 = vector.broadcast %cst : f32 to vector<256x1024xf32>
    %3 = arith.maximumf %1, %2 : vector<256x1024xf32>
    %cst_1 = arith.constant dense<0.000000e+00> : vector<1024xf32>
    %4 = vector.multi_reduction <add>, %3, %cst_1 [0] : vector<256x1024xf32> to vector<1024xf32>
    %5 = vector.shape_cast %4 : vector<1024xf32> to vector<1x1024xf32>
    %cst_2 = arith.constant 2.560000e+02 : f32
    %6 = vector.broadcast %cst_2 : f32 to vector<1x1024xf32>
    %7 = arith.divf %5, %6 : vector<1x1024xf32>
    %8 = vector.shape_cast %1 : vector<256x1024xf32> to vector<16x16x1024xf32>
    %9 = vector.extract_strided_slice %8 {offsets = [0, 0, 0], sizes = [2, 16, 1024], strides = [1, 1, 1]} : vector<16x16x1024xf32> to vector<2x16x1024xf32>
    %cst_3 = arith.constant dense<0xFF800000> : vector<16x1024xf32>
    %10 = vector.multi_reduction <maximumf>, %9, %cst_3 [0] : vector<2x16x1024xf32> to vector<16x1024xf32>
    %11 = vector.extract_strided_slice %10 {offsets = [0, 0], sizes = [2, 1024], strides = [1, 1]} : vector<16x1024xf32> to vector<2x1024xf32>
    %cst_4 = arith.constant dense<0xFF800000> : vector<1024xf32>
    %12 = vector.multi_reduction <maximumf>, %11, %cst_4 [0] : vector<2x1024xf32> to vector<1024xf32>
    %13 = vector.shape_cast %12 : vector<1024xf32> to vector<1x1024xf32>
    %14 = vector.extract_strided_slice %10 {offsets = [2, 0], sizes = [3, 1024], strides = [1, 1]} : vector<16x1024xf32> to vector<3x1024xf32>
    %cst_5 = arith.constant dense<0xFF800000> : vector<1024xf32>
    %15 = vector.multi_reduction <maximumf>, %14, %cst_5 [0] : vector<3x1024xf32> to vector<1024xf32>
    %16 = vector.shape_cast %15 : vector<1024xf32> to vector<1x1024xf32>
    %17 = vector.extract_strided_slice %10 {offsets = [5, 0], sizes = [3, 1024], strides = [1, 1]} : vector<16x1024xf32> to vector<3x1024xf32>
    %cst_6 = arith.constant dense<0xFF800000> : vector<1024xf32>
    %18 = vector.multi_reduction <maximumf>, %17, %cst_6 [0] : vector<3x1024xf32> to vector<1024xf32>
    %19 = vector.shape_cast %18 : vector<1024xf32> to vector<1x1024xf32>
    %20 = vector.extract_strided_slice %10 {offsets = [8, 0], sizes = [3, 1024], strides = [1, 1]} : vector<16x1024xf32> to vector<3x1024xf32>
    %cst_7 = arith.constant dense<0xFF800000> : vector<1024xf32>
    %21 = vector.multi_reduction <maximumf>, %20, %cst_7 [0] : vector<3x1024xf32> to vector<1024xf32>
    %22 = vector.shape_cast %21 : vector<1024xf32> to vector<1x1024xf32>
    %23 = vector.extract_strided_slice %10 {offsets = [11, 0], sizes = [3, 1024], strides = [1, 1]} : vector<16x1024xf32> to vector<3x1024xf32>
    %cst_8 = arith.constant dense<0xFF800000> : vector<1024xf32>
    %24 = vector.multi_reduction <maximumf>, %23, %cst_8 [0] : vector<3x1024xf32> to vector<1024xf32>
    %25 = vector.shape_cast %24 : vector<1024xf32> to vector<1x1024xf32>
    %26 = vector.extract_strided_slice %10 {offsets = [14, 0], sizes = [2, 1024], strides = [1, 1]} : vector<16x1024xf32> to vector<2x1024xf32>
    %cst_9 = arith.constant dense<0xFF800000> : vector<1024xf32>
    %27 = vector.multi_reduction <maximumf>, %26, %cst_9 [0] : vector<2x1024xf32> to vector<1024xf32>
    %28 = vector.shape_cast %27 : vector<1024xf32> to vector<1x1024xf32>
    %29 = arith.addf %13, %16 : vector<1x1024xf32>
    %30 = arith.addf %19, %22 : vector<1x1024xf32>
    %31 = arith.addf %29, %30 : vector<1x1024xf32>
    %32 = arith.addf %25, %28 : vector<1x1024xf32>
    %33 = arith.addf %31, %32 : vector<1x1024xf32>
    %34 = vector.extract_strided_slice %8 {offsets = [2, 0, 0], sizes = [3, 16, 1024], strides = [1, 1, 1]} : vector<16x16x1024xf32> to vector<3x16x1024xf32>
    %cst_10 = arith.constant dense<0xFF800000> : vector<16x1024xf32>
    %35 = vector.multi_reduction <maximumf>, %34, %cst_10 [0] : vector<3x16x1024xf32> to vector<16x1024xf32>
    %36 = vector.extract_strided_slice %35 {offsets = [0, 0], sizes = [2, 1024], strides = [1, 1]} : vector<16x1024xf32> to vector<2x1024xf32>
    %cst_11 = arith.constant dense<0xFF800000> : vector<1024xf32>
    %37 = vector.multi_reduction <maximumf>, %36, %cst_11 [0] : vector<2x1024xf32> to vector<1024xf32>
    %38 = vector.shape_cast %37 : vector<1024xf32> to vector<1x1024xf32>
    %39 = vector.extract_strided_slice %35 {offsets = [2, 0], sizes = [3, 1024], strides = [1, 1]} : vector<16x1024xf32> to vector<3x1024xf32>
    %cst_12 = arith.constant dense<0xFF800000> : vector<1024xf32>
    %40 = vector.multi_reduction <maximumf>, %39, %cst_12 [0] : vector<3x1024xf32> to vector<1024xf32>
    %41 = vector.shape_cast %40 : vector<1024xf32> to vector<1x1024xf32>
    %42 = vector.extract_strided_slice %35 {offsets = [5, 0], sizes = [3, 1024], strides = [1, 1]} : vector<16x1024xf32> to vector<3x1024xf32>
    %cst_13 = arith.constant dense<0xFF800000> : vector<1024xf32>
    %43 = vector.multi_reduction <maximumf>, %42, %cst_13 [0] : vector<3x1024xf32> to vector<1024xf32>
    %44 = vector.shape_cast %43 : vector<1024xf32> to vector<1x1024xf32>
    %45 = vector.extract_strided_slice %35 {offsets = [8, 0], sizes = [3, 1024], strides = [1, 1]} : vector<16x1024xf32> to vector<3x1024xf32>
    %cst_14 = arith.constant dense<0xFF800000> : vector<1024xf32>
    %46 = vector.multi_reduction <maximumf>, %45, %cst_14 [0] : vector<3x1024xf32> to vector<1024xf32>
    %47 = vector.shape_cast %46 : vector<1024xf32> to vector<1x1024xf32>
    %48 = vector.extract_strided_slice %35 {offsets = [11, 0], sizes = [3, 1024], strides = [1, 1]} : vector<16x1024xf32> to vector<3x1024xf32>
    %cst_15 = arith.constant dense<0xFF800000> : vector<1024xf32>
    %49 = vector.multi_reduction <maximumf>, %48, %cst_15 [0] : vector<3x1024xf32> to vector<1024xf32>
    %50 = vector.shape_cast %49 : vector<1024xf32> to vector<1x1024xf32>
    %51 = vector.extract_strided_slice %35 {offsets = [14, 0], sizes = [2, 1024], strides = [1, 1]} : vector<16x1024xf32> to vector<2x1024xf32>
    %cst_16 = arith.constant dense<0xFF800000> : vector<1024xf32>
    %52 = vector.multi_reduction <maximumf>, %51, %cst_16 [0] : vector<2x1024xf32> to vector<1024xf32>
    %53 = vector.shape_cast %52 : vector<1024xf32> to vector<1x1024xf32>
    %54 = arith.addf %38, %41 : vector<1x1024xf32>
    %55 = arith.addf %44, %47 : vector<1x1024xf32>
    %56 = arith.addf %54, %55 : vector<1x1024xf32>
    %57 = arith.addf %50, %53 : vector<1x1024xf32>
    %58 = arith.addf %56, %57 : vector<1x1024xf32>
    %59 = vector.extract_strided_slice %8 {offsets = [5, 0, 0], sizes = [3, 16, 1024], strides = [1, 1, 1]} : vector<16x16x1024xf32> to vector<3x16x1024xf32>
    %cst_17 = arith.constant dense<0xFF800000> : vector<16x1024xf32>
    %60 = vector.multi_reduction <maximumf>, %59, %cst_17 [0] : vector<3x16x1024xf32> to vector<16x1024xf32>
    %61 = vector.extract_strided_slice %60 {offsets = [0, 0], sizes = [2, 1024], strides = [1, 1]} : vector<16x1024xf32> to vector<2x1024xf32>
    %cst_18 = arith.constant dense<0xFF800000> : vector<1024xf32>
    %62 = vector.multi_reduction <maximumf>, %61, %cst_18 [0] : vector<2x1024xf32> to vector<1024xf32>
    %63 = vector.shape_cast %62 : vector<1024xf32> to vector<1x1024xf32>
    %64 = vector.extract_strided_slice %60 {offsets = [2, 0], sizes = [3, 1024], strides = [1, 1]} : vector<16x1024xf32> to vector<3x1024xf32>
    %cst_19 = arith.constant dense<0xFF800000> : vector<1024xf32>
    %65 = vector.multi_reduction <maximumf>, %64, %cst_19 [0] : vector<3x1024xf32> to vector<1024xf32>
    %66 = vector.shape_cast %65 : vector<1024xf32> to vector<1x1024xf32>
    %67 = vector.extract_strided_slice %60 {offsets = [5, 0], sizes = [3, 1024], strides = [1, 1]} : vector<16x1024xf32> to vector<3x1024xf32>
    %cst_20 = arith.constant dense<0xFF800000> : vector<1024xf32>
    %68 = vector.multi_reduction <maximumf>, %67, %cst_20 [0] : vector<3x1024xf32> to vector<1024xf32>
    %69 = vector.shape_cast %68 : vector<1024xf32> to vector<1x1024xf32>
    %70 = vector.extract_strided_slice %60 {offsets = [8, 0], sizes = [3, 1024], strides = [1, 1]} : vector<16x1024xf32> to vector<3x1024xf32>
    %cst_21 = arith.constant dense<0xFF800000> : vector<1024xf32>
    %71 = vector.multi_reduction <maximumf>, %70, %cst_21 [0] : vector<3x1024xf32> to vector<1024xf32>
    %72 = vector.shape_cast %71 : vector<1024xf32> to vector<1x1024xf32>
    %73 = vector.extract_strided_slice %60 {offsets = [11, 0], sizes = [3, 1024], strides = [1, 1]} : vector<16x1024xf32> to vector<3x1024xf32>
    %cst_22 = arith.constant dense<0xFF800000> : vector<1024xf32>
    %74 = vector.multi_reduction <maximumf>, %73, %cst_22 [0] : vector<3x1024xf32> to vector<1024xf32>
    %75 = vector.shape_cast %74 : vector<1024xf32> to vector<1x1024xf32>
    %76 = vector.extract_strided_slice %60 {offsets = [14, 0], sizes = [2, 1024], strides = [1, 1]} : vector<16x1024xf32> to vector<2x1024xf32>
    %cst_23 = arith.constant dense<0xFF800000> : vector<1024xf32>
    %77 = vector.multi_reduction <maximumf>, %76, %cst_23 [0] : vector<2x1024xf32> to vector<1024xf32>
    %78 = vector.shape_cast %77 : vector<1024xf32> to vector<1x1024xf32>
    %79 = arith.addf %63, %66 : vector<1x1024xf32>
    %80 = arith.addf %69, %72 : vector<1x1024xf32>
    %81 = arith.addf %79, %80 : vector<1x1024xf32>
    %82 = arith.addf %75, %78 : vector<1x1024xf32>
    %83 = arith.addf %81, %82 : vector<1x1024xf32>
    %84 = vector.extract_strided_slice %8 {offsets = [8, 0, 0], sizes = [3, 16, 1024], strides = [1, 1, 1]} : vector<16x16x1024xf32> to vector<3x16x1024xf32>
    %cst_24 = arith.constant dense<0xFF800000> : vector<16x1024xf32>
    %85 = vector.multi_reduction <maximumf>, %84, %cst_24 [0] : vector<3x16x1024xf32> to vector<16x1024xf32>
    %86 = vector.extract_strided_slice %85 {offsets = [0, 0], sizes = [2, 1024], strides = [1, 1]} : vector<16x1024xf32> to vector<2x1024xf32>
    %cst_25 = arith.constant dense<0xFF800000> : vector<1024xf32>
    %87 = vector.multi_reduction <maximumf>, %86, %cst_25 [0] : vector<2x1024xf32> to vector<1024xf32>
    %88 = vector.shape_cast %87 : vector<1024xf32> to vector<1x1024xf32>
    %89 = vector.extract_strided_slice %85 {offsets = [2, 0], sizes = [3, 1024], strides = [1, 1]} : vector<16x1024xf32> to vector<3x1024xf32>
    %cst_26 = arith.constant dense<0xFF800000> : vector<1024xf32>
    %90 = vector.multi_reduction <maximumf>, %89, %cst_26 [0] : vector<3x1024xf32> to vector<1024xf32>
    %91 = vector.shape_cast %90 : vector<1024xf32> to vector<1x1024xf32>
    %92 = vector.extract_strided_slice %85 {offsets = [5, 0], sizes = [3, 1024], strides = [1, 1]} : vector<16x1024xf32> to vector<3x1024xf32>
    %cst_27 = arith.constant dense<0xFF800000> : vector<1024xf32>
    %93 = vector.multi_reduction <maximumf>, %92, %cst_27 [0] : vector<3x1024xf32> to vector<1024xf32>
    %94 = vector.shape_cast %93 : vector<1024xf32> to vector<1x1024xf32>
    %95 = vector.extract_strided_slice %85 {offsets = [8, 0], sizes = [3, 1024], strides = [1, 1]} : vector<16x1024xf32> to vector<3x1024xf32>
    %cst_28 = arith.constant dense<0xFF800000> : vector<1024xf32>
    %96 = vector.multi_reduction <maximumf>, %95, %cst_28 [0] : vector<3x1024xf32> to vector<1024xf32>
    %97 = vector.shape_cast %96 : vector<1024xf32> to vector<1x1024xf32>
    %98 = vector.extract_strided_slice %85 {offsets = [11, 0], sizes = [3, 1024], strides = [1, 1]} : vector<16x1024xf32> to vector<3x1024xf32>
    %cst_29 = arith.constant dense<0xFF800000> : vector<1024xf32>
    %99 = vector.multi_reduction <maximumf>, %98, %cst_29 [0] : vector<3x1024xf32> to vector<1024xf32>
    %100 = vector.shape_cast %99 : vector<1024xf32> to vector<1x1024xf32>
    %101 = vector.extract_strided_slice %85 {offsets = [14, 0], sizes = [2, 1024], strides = [1, 1]} : vector<16x1024xf32> to vector<2x1024xf32>
    %cst_30 = arith.constant dense<0xFF800000> : vector<1024xf32>
    %102 = vector.multi_reduction <maximumf>, %101, %cst_30 [0] : vector<2x1024xf32> to vector<1024xf32>
    %103 = vector.shape_cast %102 : vector<1024xf32> to vector<1x1024xf32>
    %104 = arith.addf %88, %91 : vector<1x1024xf32>
    %105 = arith.addf %94, %97 : vector<1x1024xf32>
    %106 = arith.addf %104, %105 : vector<1x1024xf32>
    %107 = arith.addf %100, %103 : vector<1x1024xf32>
    %108 = arith.addf %106, %107 : vector<1x1024xf32>
    %109 = vector.extract_strided_slice %8 {offsets = [11, 0, 0], sizes = [3, 16, 1024], strides = [1, 1, 1]} : vector<16x16x1024xf32> to vector<3x16x1024xf32>
    %cst_31 = arith.constant dense<0xFF800000> : vector<16x1024xf32>
    %110 = vector.multi_reduction <maximumf>, %109, %cst_31 [0] : vector<3x16x1024xf32> to vector<16x1024xf32>
    %111 = vector.extract_strided_slice %110 {offsets = [0, 0], sizes = [2, 1024], strides = [1, 1]} : vector<16x1024xf32> to vector<2x1024xf32>
    %cst_32 = arith.constant dense<0xFF800000> : vector<1024xf32>
    %112 = vector.multi_reduction <maximumf>, %111, %cst_32 [0] : vector<2x1024xf32> to vector<1024xf32>
    %113 = vector.shape_cast %112 : vector<1024xf32> to vector<1x1024xf32>
    %114 = vector.extract_strided_slice %110 {offsets = [2, 0], sizes = [3, 1024], strides = [1, 1]} : vector<16x1024xf32> to vector<3x1024xf32>
    %cst_33 = arith.constant dense<0xFF800000> : vector<1024xf32>
    %115 = vector.multi_reduction <maximumf>, %114, %cst_33 [0] : vector<3x1024xf32> to vector<1024xf32>
    %116 = vector.shape_cast %115 : vector<1024xf32> to vector<1x1024xf32>
    %117 = vector.extract_strided_slice %110 {offsets = [5, 0], sizes = [3, 1024], strides = [1, 1]} : vector<16x1024xf32> to vector<3x1024xf32>
    %cst_34 = arith.constant dense<0xFF800000> : vector<1024xf32>
    %118 = vector.multi_reduction <maximumf>, %117, %cst_34 [0] : vector<3x1024xf32> to vector<1024xf32>
    %119 = vector.shape_cast %118 : vector<1024xf32> to vector<1x1024xf32>
    %120 = vector.extract_strided_slice %110 {offsets = [8, 0], sizes = [3, 1024], strides = [1, 1]} : vector<16x1024xf32> to vector<3x1024xf32>
    %cst_35 = arith.constant dense<0xFF800000> : vector<1024xf32>
    %121 = vector.multi_reduction <maximumf>, %120, %cst_35 [0] : vector<3x1024xf32> to vector<1024xf32>
    %122 = vector.shape_cast %121 : vector<1024xf32> to vector<1x1024xf32>
    %123 = vector.extract_strided_slice %110 {offsets = [11, 0], sizes = [3, 1024], strides = [1, 1]} : vector<16x1024xf32> to vector<3x1024xf32>
    %cst_36 = arith.constant dense<0xFF800000> : vector<1024xf32>
    %124 = vector.multi_reduction <maximumf>, %123, %cst_36 [0] : vector<3x1024xf32> to vector<1024xf32>
    %125 = vector.shape_cast %124 : vector<1024xf32> to vector<1x1024xf32>
    %126 = vector.extract_strided_slice %110 {offsets = [14, 0], sizes = [2, 1024], strides = [1, 1]} : vector<16x1024xf32> to vector<2x1024xf32>
    %cst_37 = arith.constant dense<0xFF800000> : vector<1024xf32>
    %127 = vector.multi_reduction <maximumf>, %126, %cst_37 [0] : vector<2x1024xf32> to vector<1024xf32>
    %128 = vector.shape_cast %127 : vector<1024xf32> to vector<1x1024xf32>
    %129 = arith.addf %113, %116 : vector<1x1024xf32>
    %130 = arith.addf %119, %122 : vector<1x1024xf32>
    %131 = arith.addf %129, %130 : vector<1x1024xf32>
    %132 = arith.addf %125, %128 : vector<1x1024xf32>
    %133 = arith.addf %131, %132 : vector<1x1024xf32>
    %134 = vector.extract_strided_slice %8 {offsets = [14, 0, 0], sizes = [2, 16, 1024], strides = [1, 1, 1]} : vector<16x16x1024xf32> to vector<2x16x1024xf32>
    %cst_38 = arith.constant dense<0xFF800000> : vector<16x1024xf32>
    %135 = vector.multi_reduction <maximumf>, %134, %cst_38 [0] : vector<2x16x1024xf32> to vector<16x1024xf32>
    %136 = vector.extract_strided_slice %135 {offsets = [0, 0], sizes = [2, 1024], strides = [1, 1]} : vector<16x1024xf32> to vector<2x1024xf32>
    %cst_39 = arith.constant dense<0xFF800000> : vector<1024xf32>
    %137 = vector.multi_reduction <maximumf>, %136, %cst_39 [0] : vector<2x1024xf32> to vector<1024xf32>
    %138 = vector.shape_cast %137 : vector<1024xf32> to vector<1x1024xf32>
    %139 = vector.extract_strided_slice %135 {offsets = [2, 0], sizes = [3, 1024], strides = [1, 1]} : vector<16x1024xf32> to vector<3x1024xf32>
    %cst_40 = arith.constant dense<0xFF800000> : vector<1024xf32>
    %140 = vector.multi_reduction <maximumf>, %139, %cst_40 [0] : vector<3x1024xf32> to vector<1024xf32>
    %141 = vector.shape_cast %140 : vector<1024xf32> to vector<1x1024xf32>
    %142 = vector.extract_strided_slice %135 {offsets = [5, 0], sizes = [3, 1024], strides = [1, 1]} : vector<16x1024xf32> to vector<3x1024xf32>
    %cst_41 = arith.constant dense<0xFF800000> : vector<1024xf32>
    %143 = vector.multi_reduction <maximumf>, %142, %cst_41 [0] : vector<3x1024xf32> to vector<1024xf32>
    %144 = vector.shape_cast %143 : vector<1024xf32> to vector<1x1024xf32>
    %145 = vector.extract_strided_slice %135 {offsets = [8, 0], sizes = [3, 1024], strides = [1, 1]} : vector<16x1024xf32> to vector<3x1024xf32>
    %cst_42 = arith.constant dense<0xFF800000> : vector<1024xf32>
    %146 = vector.multi_reduction <maximumf>, %145, %cst_42 [0] : vector<3x1024xf32> to vector<1024xf32>
    %147 = vector.shape_cast %146 : vector<1024xf32> to vector<1x1024xf32>
    %148 = vector.extract_strided_slice %135 {offsets = [11, 0], sizes = [3, 1024], strides = [1, 1]} : vector<16x1024xf32> to vector<3x1024xf32>
    %cst_43 = arith.constant dense<0xFF800000> : vector<1024xf32>
    %149 = vector.multi_reduction <maximumf>, %148, %cst_43 [0] : vector<3x1024xf32> to vector<1024xf32>
    %150 = vector.shape_cast %149 : vector<1024xf32> to vector<1x1024xf32>
    %151 = vector.extract_strided_slice %135 {offsets = [14, 0], sizes = [2, 1024], strides = [1, 1]} : vector<16x1024xf32> to vector<2x1024xf32>
    %cst_44 = arith.constant dense<0xFF800000> : vector<1024xf32>
    %152 = vector.multi_reduction <maximumf>, %151, %cst_44 [0] : vector<2x1024xf32> to vector<1024xf32>
    %153 = vector.shape_cast %152 : vector<1024xf32> to vector<1x1024xf32>
    %154 = arith.addf %138, %141 : vector<1x1024xf32>
    %155 = arith.addf %144, %147 : vector<1x1024xf32>
    %156 = arith.addf %154, %155 : vector<1x1024xf32>
    %157 = arith.addf %150, %153 : vector<1x1024xf32>
    %158 = arith.addf %156, %157 : vector<1x1024xf32>
    %159 = arith.addf %33, %58 : vector<1x1024xf32>
    %160 = arith.addf %83, %108 : vector<1x1024xf32>
    %161 = arith.addf %159, %160 : vector<1x1024xf32>
    %162 = arith.addf %133, %158 : vector<1x1024xf32>
    %163 = arith.addf %161, %162 : vector<1x1024xf32>
    %cst_45 = arith.constant 0.027777778 : f32
    %164 = vector.broadcast %cst_45 : f32 to vector<1x1024xf32>
    %165 = arith.mulf %163, %164 : vector<1x1024xf32>
    %c0_46 = arith.constant 0 : index
    %c0_47 = arith.constant 0 : index
    %166 = vector.load %arg7[%c0_46, %c0_47] : memref<2x1024xf32, #tpu.memory_space<vmem>>, vector<1x1024xf32>
    tpu.vector_store %arg7[%c0_46, %c0_47], %165 {strides = array<i32>} : memref<2x1024xf32, #tpu.memory_space<vmem>>, vector<1x1024xf32>,
    %c1 = arith.constant 1 : index
    %c0_48 = arith.constant 0 : index
    %167 = vector.load %arg7[%c1, %c0_48] : memref<2x1024xf32, #tpu.memory_space<vmem>>, vector<1x1024xf32>
    tpu.vector_store %arg7[%c1, %c0_48], %7 {strides = array<i32>} : memref<2x1024xf32, #tpu.memory_space<vmem>>, vector<1x1024xf32>,
    %168 = arith.truncf %165 : vector<1x1024xf32> to vector<1x1024xbf16>
    %c0_49 = arith.constant 0 : index
    %c0_50 = arith.constant 0 : index
    %169 = vector.load %arg1[%c0_49, %c0_50] : memref<1024x128xbf16, #tpu.memory_space<vmem>>, vector<1024x128xbf16>
    %cst_51 = arith.constant dense<0.000000e+00> : vector<1x128xf32>
    %170 = tpu.matmul %168, %169, %cst_51 {dimension_numbers = #tpu.dot_dimension_numbers<[1], [0], [0], [1], [0, 0, 1, 1], [], []>} : vector<1x1024xbf16>, vector<1024x128xbf16>, vector<1x128xf32> -> vector<1x128xf32>
    %171 = arith.truncf %7 : vector<1x1024xf32> to vector<1x1024xbf16>
    %c0_52 = arith.constant 0 : index
    %c0_53 = arith.constant 0 : index
    %172 = vector.load %arg2[%c0_52, %c0_53] : memref<1024x128xbf16, #tpu.memory_space<vmem>>, vector<1024x128xbf16>
    %cst_54 = arith.constant dense<0.000000e+00> : vector<1x128xf32>
    %173 = tpu.matmul %171, %172, %cst_54 {dimension_numbers = #tpu.dot_dimension_numbers<[1], [0], [0], [1], [0, 0, 1, 1], [], []>} : vector<1x1024xbf16>, vector<1024x128xbf16>, vector<1x128xf32> -> vector<1x128xf32>
    %174 = arith.addf %170, %173 : vector<1x128xf32>
    %c0_55 = arith.constant 0 : index
    %c0_56 = arith.constant 0 : index
    %175 = vector.load %arg3[%c0_55, %c0_56] : memref<1x128xf32, #tpu.memory_space<vmem>>, vector<1x128xf32>
    %176 = arith.addf %174, %175 : vector<1x128xf32>
    %cst_57 = arith.constant 0.000000e+00 : f32
    %177 = vector.broadcast %cst_57 : f32 to vector<1x128xf32>
    %178 = arith.maximumf %176, %177 : vector<1x128xf32>
    %c0_58 = arith.constant 0 : index
    %c0_59 = arith.constant 0 : index
    %179 = vector.load %arg4[%c0_58, %c0_59] : memref<128x128xf32, #tpu.memory_space<vmem>>, vector<128x128xf32>
    %cst_60 = arith.constant dense<0.000000e+00> : vector<1x128xf32>
    %180 = tpu.matmul %178, %179, %cst_60 {dimension_numbers = #tpu.dot_dimension_numbers<[1], [0], [0], [1], [0, 0, 1, 1], [], []>} : vector<1x128xf32>, vector<128x128xf32>, vector<1x128xf32> -> vector<1x128xf32>
    %c0_61 = arith.constant 0 : index
    %c0_62 = arith.constant 0 : index
    %181 = vector.load %arg5[%c0_61, %c0_62] : memref<1x128xf32, #tpu.memory_space<vmem>>, vector<1x128xf32>
    %182 = arith.addf %180, %181 : vector<1x128xf32>
    %cst_63 = arith.constant 0.000000e+00 : f32
    %183 = vector.broadcast %cst_63 : f32 to vector<1x128xf32>
    %184 = arith.maximumf %182, %183 : vector<1x128xf32>
    %185 = vector.extract_strided_slice %184 {offsets = [0, 0], sizes = [1, 2], strides = [1, 1]} : vector<1x128xf32> to vector<1x2xf32>
    %c0_64 = arith.constant 0 : index
    %c0_65 = arith.constant 0 : index
    %186 = vector.load %arg6[%c0_64, %c0_65] : memref<1x2xf32, #tpu.memory_space<vmem>>, vector<1x2xf32>
    tpu.vector_store %arg6[%c0_64, %c0_65], %185 {strides = array<i32>} : memref<1x2xf32, #tpu.memory_space<vmem>>, vector<1x2xf32>,
    return
  }
}

</mosaic_0001>

<llo_original>
// kernel: _forward_impl.1
$region0: #{_forward_impl.1}
  #allocation0 [shape = 'u32[]', space=smem, size = 0x4, offset = 0x4, fixed_abs, tag = 'smem constant byte address 0x4 - core index']
  #allocation1 [shape = 'u32[144,128]{1,0:T(1,128)}', space=vmem, size = 0x12000, scoped, tag = 'internal scratch']
  %s0 = inlined_call_operand.vmem [shape: f32[1024,256], index: 0, kind: input, shape index: {}]
  %s1 = inlined_call_operand.vmem [shape: bf16[1024,128], index: 1, kind: input, shape index: {}]
  %s2 = inlined_call_operand.vmem [shape: bf16[1024,128], index: 2, kind: input, shape index: {}]
  %s3 = inlined_call_operand.vmem [shape: f32[1,128], index: 3, kind: input, shape index: {}]
  %s4 = inlined_call_operand.vmem [shape: f32[128,128], index: 4, kind: input, shape index: {}]
  %s5 = inlined_call_operand.vmem [shape: f32[1,128], index: 5, kind: input, shape index: {}]
  %s6 = inlined_call_operand.hbm [shape: f32[1,2], index: 6, kind: output, shape index: {0}]
  %s7 = inlined_call_operand.hbm [shape: f32[2,1024], index: 7, kind: output, shape index: {1}]
  %8 = xla_tuple %s6, %s7
  %s9 = sld [smem:[#allocation0]]
  $region42: #{_forward_impl.1} parent=0
    _
  %s11 = ssub.s32 1, %s9
  %s12 = scalar_select 0, %s11, %s9
  $region1: #{_forward_impl.1} parent=0
    #allocation2 [shape = 'u8[512]{0}', space=vmem, size = 0x400, scoped, tag = 'output window, operand 0, single buffered']
    #allocation3 [shape = 's32[1]{0}', space=sflag, size = 0x4, scoped, tag = 'scoped memory for _forward_impl.1']
    #allocation4 [shape = 'u8[8192]{0}', space=vmem, size = 0x2000, scoped, tag = 'output window, operand 1, single buffered']
    #allocation5 [shape = 's32[1]{0}', space=sflag, size = 0x4, scoped, tag = 'scoped memory for _forward_impl.1']
    %13 = vsyncpa [#allocation3], 0
    %14 = vsyncpa [#allocation5], 0
    // Predicated region
    $region2: #{_forward_impl.1} parent=1 // pred_check
      _
    $region3: #{_forward_impl.1} parent=1 // pred_check_branch
      %16 = sbr.rel (0) target = $region5
    $region4: #{_forward_impl.1} parent=1 // pred_region
      _
    $region5: #{_forward_impl.1} parent=1 // pred_fallthru
      _
    // Predicated region
    $region6: #{_forward_impl.1} parent=1 // pred_check
      _
    $region7: #{_forward_impl.1} parent=1 // pred_check_branch
      %18 = sbr.rel (0) target = $region9
    $region8: #{_forward_impl.1} parent=1 // pred_region
      _
    $region9: #{_forward_impl.1} parent=1 // pred_fallthru
      _
    // Predicated region
    $region10: #{_forward_impl.1} parent=1 // pred_check
      _
    $region11: #{_forward_impl.1} parent=1 // pred_check_branch
      %20 = sbr.rel (0) target = $region13
    $region12: #{_forward_impl.1} parent=1 // pred_region
      _
    $region13: #{_forward_impl.1} parent=1 // pred_fallthru
      _
    // Predicated region
    $region14: #{_forward_impl.1} parent=1 // pred_check
      _
    $region15: #{_forward_impl.1} parent=1 // pred_check_branch
      %22 = sbr.rel (0) target = $region17
    $region16: #{_forward_impl.1} parent=1 // pred_region
      _
    $region17: #{_forward_impl.1} parent=1 // pred_fallthru
      _
    // Predicated region
    $region18: #{_forward_impl.1} parent=1 // pred_check
      _
    $region19: #{_forward_impl.1} parent=1 // pred_check_branch
      %24 = sbr.rel (0) target = $region21
    $region20: #{_forward_impl.1} parent=1 // pred_region
      _
    $region21: #{_forward_impl.1} parent=1 // pred_fallthru
      _
    // Predicated region
    $region22: #{_forward_impl.1} parent=1 // pred_check
      _
    $region23: #{_forward_impl.1} parent=1 // pred_check_branch
      %26 = sbr.rel (0) target = $region25
    $region24: #{_forward_impl.1} parent=1 // pred_region
      _
    $region25: #{_forward_impl.1} parent=1 // pred_fallthru
      _
    %v28 = vld [vmem:[%s0] sm:$0xff]
    %v29 = vld [vmem:[%s0 + $0x8] sm:$0xff]
    %v30 = vld [vmem:[%s0 + $0x10] sm:$0xff]
    %v31 = vld [vmem:[%s0 + $0x18] sm:$0xff]
    %v32 = vld [vmem:[%s0 + $0x20] sm:$0xff]
    %v33 = vld [vmem:[%s0 + $0x28] sm:$0xff]
    %v34 = vld [vmem:[%s0 + $0x30] sm:$0xff]
    %v35 = vld [vmem:[%s0 + $0x38] sm:$0xff]
    %v36 = vld [vmem:[%s0 + $0x40] sm:$0xff]
    %v37 = vld [vmem:[%s0 + $0x48] sm:$0xff]
    %v38 = vld [vmem:[%s0 + $0x50] sm:$0xff]
    %v39 = vld [vmem:[%s0 + $0x58] sm:$0xff]
    %v40 = vld [vmem:[%s0 + $0x60] sm:$0xff]
    %v41 = vld [vmem:[%s0 + $0x68] sm:$0xff]
    %v42 = vld [vmem:[%s0 + $0x70] sm:$0xff]
    %v43 = vld [vmem:[%s0 + $0x78] sm:$0xff]
    %v44 = vld [vmem:[%s0 + $0x80] sm:$0xff]
    %v45 = vld [vmem:[%s0 + $0x88] sm:$0xff]
    %v46 = vld [vmem:[%s0 + $0x90] sm:$0xff]
    %v47 = vld [vmem:[%s0 + $0x98] sm:$0xff]
    %v48 = vld [vmem:[%s0 + $0xa0] sm:$0xff]
    %v49 = vld [vmem:[%s0 + $0xa8] sm:$0xff]
    %v50 = vld [vmem:[%s0 + $0xb0] sm:$0xff]
    %v51 = vld [vmem:[%s0 + $0xb8] sm:$0xff]
    %v52 = vld [vmem:[%s0 + $0xc0] sm:$0xff]
    %v53 = vld [vmem:[%s0 + $0xc8] sm:$0xff]
    %v54 = vld [vmem:[%s0 + $0xd0] sm:$0xff]
    %v55 = vld [vmem:[%s0 + $0xd8] sm:$0xff]
    %v56 = vld [vmem:[%s0 + $0xe0] sm:$0xff]
    %v57 = vld [vmem:[%s0 + $0xe8] sm:$0xff]
    %v58 = vld [vmem:[%s0 + $0xf0] sm:$0xff]
    %v59 = vld [vmem:[%s0 + $0xf8] sm:$0xff]
    %v60 = vld [vmem:[%s0 + $0x100] sm:$0xff]
    %v61 = vld [vmem:[%s0 + $0x108] sm:$0xff]
    %v62 = vld [vmem:[%s0 + $0x110] sm:$0xff]
    %v63 = vld [vmem:[%s0 + $0x118] sm:$0xff]
    %v64 = vld [vmem:[%s0 + $0x120] sm:$0xff]
    %v65 = vld [vmem:[%s0 + $0x128] sm:$0xff]
    %v66 = vld [vmem:[%s0 + $0x130] sm:$0xff]
    %v67 = vld [vmem:[%s0 + $0x138] sm:$0xff]
    %v68 = vld [vmem:[%s0 + $0x140] sm:$0xff]
    %v69 = vld [vmem:[%s0 + $0x148] sm:$0xff]
    %v70 = vld [vmem:[%s0 + $0x150] sm:$0xff]
    %v71 = vld [vmem:[%s0 + $0x158] sm:$0xff]
    %v72 = vld [vmem:[%s0 + $0x160] sm:$0xff]
    %v73 = vld [vmem:[%s0 + $0x168] sm:$0xff]
    %v74 = vld [vmem:[%s0 + $0x170] sm:$0xff]
    %v75 = vld [vmem:[%s0 + $0x178] sm:$0xff]
    %v76 = vld [vmem:[%s0 + $0x180] sm:$0xff]
    %v77 = vld [vmem:[%s0 + $0x188] sm:$0xff]
    %v78 = vld [vmem:[%s0 + $0x190] sm:$0xff]
    %v79 = vld [vmem:[%s0 + $0x198] sm:$0xff]
    %v80 = vld [vmem:[%s0 + $0x1a0] sm:$0xff]
    %v81 = vld [vmem:[%s0 + $0x1a8] sm:$0xff]
    %v82 = vld [vmem:[%s0 + $0x1b0] sm:$0xff]
    %v83 = vld [vmem:[%s0 + $0x1b8] sm:$0xff]
    %v84 = vld [vmem:[%s0 + $0x1c0] sm:$0xff]
    %v85 = vld [vmem:[%s0 + $0x1c8] sm:$0xff]
    %v86 = vld [vmem:[%s0 + $0x1d0] sm:$0xff]
    %v87 = vld [vmem:[%s0 + $0x1d8] sm:$0xff]
    %v88 = vld [vmem:[%s0 + $0x1e0] sm:$0xff]
    %v89 = vld [vmem:[%s0 + $0x1e8] sm:$0xff]
    %v90 = vld [vmem:[%s0 + $0x1f0] sm:$0xff]
    %v91 = vld [vmem:[%s0 + $0x1f8] sm:$0xff]
    %v92 = vld [vmem:[%s0 + $0x200] sm:$0xff]
    %v93 = vld [vmem:[%s0 + $0x208] sm:$0xff]
    %v94 = vld [vmem:[%s0 + $0x210] sm:$0xff]
    %v95 = vld [vmem:[%s0 + $0x218] sm:$0xff]
    %v96 = vld [vmem:[%s0 + $0x220] sm:$0xff]
    %v97 = vld [vmem:[%s0 + $0x228] sm:$0xff]
    %v98 = vld [vmem:[%s0 + $0x230] sm:$0xff]
    %v99 = vld [vmem:[%s0 + $0x238] sm:$0xff]
    %v100 = vld [vmem:[%s0 + $0x240] sm:$0xff]
    %v101 = vld [vmem:[%s0 + $0x248] sm:$0xff]
    %v102 = vld [vmem:[%s0 + $0x250] sm:$0xff]
    %v103 = vld [vmem:[%s0 + $0x258] sm:$0xff]
    %v104 = vld [vmem:[%s0 + $0x260] sm:$0xff]
    %v105 = vld [vmem:[%s0 + $0x268] sm:$0xff]
    %v106 = vld [vmem:[%s0 + $0x270] sm:$0xff]
    %v107 = vld [vmem:[%s0 + $0x278] sm:$0xff]
    %v108 = vld [vmem:[%s0 + $0x280] sm:$0xff]
    %v109 = vld [vmem:[%s0 + $0x288] sm:$0xff]
    %v110 = vld [vmem:[%s0 + $0x290] sm:$0xff]
    %v111 = vld [vmem:[%s0 + $0x298] sm:$0xff]
    %v112 = vld [vmem:[%s0 + $0x2a0] sm:$0xff]
    %v113 = vld [vmem:[%s0 + $0x2a8] sm:$0xff]
    %v114 = vld [vmem:[%s0 + $0x2b0] sm:$0xff]
    %v115 = vld [vmem:[%s0 + $0x2b8] sm:$0xff]
    %v116 = vld [vmem:[%s0 + $0x2c0] sm:$0xff]
    %v117 = vld [vmem:[%s0 + $0x2c8] sm:$0xff]
    %v118 = vld [vmem:[%s0 + $0x2d0] sm:$0xff]
    %v119 = vld [vmem:[%s0 + $0x2d8] sm:$0xff]
    %v120 = vld [vmem:[%s0 + $0x2e0] sm:$0xff]
    %v121 = vld [vmem:[%s0 + $0x2e8] sm:$0xff]
    %v122 = vld [vmem:[%s0 + $0x2f0] sm:$0xff]
    %v123 = vld [vmem:[%s0 + $0x2f8] sm:$0xff]
    %v124 = vld [vmem:[%s0 + $0x300] sm:$0xff]
    %v125 = vld [vmem:[%s0 + $0x308] sm:$0xff]
    %v126 = vld [vmem:[%s0 + $0x310] sm:$0xff]
    %v127 = vld [vmem:[%s0 + $0x318] sm:$0xff]
    %v128 = vld [vmem:[%s0 + $0x320] sm:$0xff]
    %v129 = vld [vmem:[%s0 + $0x328] sm:$0xff]
    %v130 = vld [vmem:[%s0 + $0x330] sm:$0xff]
    %v131 = vld [vmem:[%s0 + $0x338] sm:$0xff]
    %v132 = vld [vmem:[%s0 + $0x340] sm:$0xff]
    %v133 = vld [vmem:[%s0 + $0x348] sm:$0xff]
    %v134 = vld [vmem:[%s0 + $0x350] sm:$0xff]
    %v135 = vld [vmem:[%s0 + $0x358] sm:$0xff]
    %v136 = vld [vmem:[%s0 + $0x360] sm:$0xff]
    %v137 = vld [vmem:[%s0 + $0x368] sm:$0xff]
    %v138 = vld [vmem:[%s0 + $0x370] sm:$0xff]
    %v139 = vld [vmem:[%s0 + $0x378] sm:$0xff]
    %v140 = vld [vmem:[%s0 + $0x380] sm:$0xff]
    %v141 = vld [vmem:[%s0 + $0x388] sm:$0xff]
    %v142 = vld [vmem:[%s0 + $0x390] sm:$0xff]
    %v143 = vld [vmem:[%s0 + $0x398] sm:$0xff]
    %v144 = vld [vmem:[%s0 + $0x3a0] sm:$0xff]
    %v145 = vld [vmem:[%s0 + $0x3a8] sm:$0xff]
    %v146 = vld [vmem:[%s0 + $0x3b0] sm:$0xff]
    %v147 = vld [vmem:[%s0 + $0x3b8] sm:$0xff]
    %v148 = vld [vmem:[%s0 + $0x3c0] sm:$0xff]
    %v149 = vld [vmem:[%s0 + $0x3c8] sm:$0xff]
    %v150 = vld [vmem:[%s0 + $0x3d0] sm:$0xff]
    %v151 = vld [vmem:[%s0 + $0x3d8] sm:$0xff]
    %v152 = vld [vmem:[%s0 + $0x3e0] sm:$0xff]
    %v153 = vld [vmem:[%s0 + $0x3e8] sm:$0xff]
    %v154 = vld [vmem:[%s0 + $0x3f0] sm:$0xff]
    %v155 = vld [vmem:[%s0 + $0x3f8] sm:$0xff]
    %v156 = vld [vmem:[%s0 + $0x400] sm:$0xff]
    %v157 = vld [vmem:[%s0 + $0x408] sm:$0xff]
    %v158 = vld [vmem:[%s0 + $0x410] sm:$0xff]
    %v159 = vld [vmem:[%s0 + $0x418] sm:$0xff]
    %v160 = vld [vmem:[%s0 + $0x420] sm:$0xff]
    %v161 = vld [vmem:[%s0 + $0x428] sm:$0xff]
    %v162 = vld [vmem:[%s0 + $0x430] sm:$0xff]
    %v163 = vld [vmem:[%s0 + $0x438] sm:$0xff]
    %v164 = vld [vmem:[%s0 + $0x440] sm:$0xff]
    %v165 = vld [vmem:[%s0 + $0x448] sm:$0xff]
    %v166 = vld [vmem:[%s0 + $0x450] sm:$0xff]
    %v167 = vld [vmem:[%s0 + $0x458] sm:$0xff]
    %v168 = vld [vmem:[%s0 + $0x460] sm:$0xff]
    %v169 = vld [vmem:[%s0 + $0x468] sm:$0xff]
    %v170 = vld [vmem:[%s0 + $0x470] sm:$0xff]
    %v171 = vld [vmem:[%s0 + $0x478] sm:$0xff]
    %v172 = vld [vmem:[%s0 + $0x480] sm:$0xff]
    %v173 = vld [vmem:[%s0 + $0x488] sm:$0xff]
    %v174 = vld [vmem:[%s0 + $0x490] sm:$0xff]
    %v175 = vld [vmem:[%s0 + $0x498] sm:$0xff]
    %v176 = vld [vmem:[%s0 + $0x4a0] sm:$0xff]
    %v177 = vld [vmem:[%s0 + $0x4a8] sm:$0xff]
    %v178 = vld [vmem:[%s0 + $0x4b0] sm:$0xff]
    %v179 = vld [vmem:[%s0 + $0x4b8] sm:$0xff]
    %v180 = vld [vmem:[%s0 + $0x4c0] sm:$0xff]
    %v181 = vld [vmem:[%s0 + $0x4c8] sm:$0xff]
    %v182 = vld [vmem:[%s0 + $0x4d0] sm:$0xff]
    %v183 = vld [vmem:[%s0 + $0x4d8] sm:$0xff]
    %v184 = vld [vmem:[%s0 + $0x4e0] sm:$0xff]
    %v185 = vld [vmem:[%s0 + $0x4e8] sm:$0xff]
    %v186 = vld [vmem:[%s0 + $0x4f0] sm:$0xff]
    %v187 = vld [vmem:[%s0 + $0x4f8] sm:$0xff]
    %v188 = vld [vmem:[%s0 + $0x500] sm:$0xff]
    %v189 = vld [vmem:[%s0 + $0x508] sm:$0xff]
    %v190 = vld [vmem:[%s0 + $0x510] sm:$0xff]
    %v191 = vld [vmem:[%s0 + $0x518] sm:$0xff]
    %v192 = vld [vmem:[%s0 + $0x520] sm:$0xff]
    %v193 = vld [vmem:[%s0 + $0x528] sm:$0xff]
    %v194 = vld [vmem:[%s0 + $0x530] sm:$0xff]
    %v195 = vld [vmem:[%s0 + $0x538] sm:$0xff]
    %v196 = vld [vmem:[%s0 + $0x540] sm:$0xff]
    %v197 = vld [vmem:[%s0 + $0x548] sm:$0xff]
    %v198 = vld [vmem:[%s0 + $0x550] sm:$0xff]
    %v199 = vld [vmem:[%s0 + $0x558] sm:$0xff]
    %v200 = vld [vmem:[%s0 + $0x560] sm:$0xff]
    %v201 = vld [vmem:[%s0 + $0x568] sm:$0xff]
    %v202 = vld [vmem:[%s0 + $0x570] sm:$0xff]
    %v203 = vld [vmem:[%s0 + $0x578] sm:$0xff]
    %v204 = vld [vmem:[%s0 + $0x580] sm:$0xff]
    %v205 = vld [vmem:[%s0 + $0x588] sm:$0xff]
    %v206 = vld [vmem:[%s0 + $0x590] sm:$0xff]
    %v207 = vld [vmem:[%s0 + $0x598] sm:$0xff]
    %v208 = vld [vmem:[%s0 + $0x5a0] sm:$0xff]
    %v209 = vld [vmem:[%s0 + $0x5a8] sm:$0xff]
    %v210 = vld [vmem:[%s0 + $0x5b0] sm:$0xff]
    %v211 = vld [vmem:[%s0 + $0x5b8] sm:$0xff]
    %v212 = vld [vmem:[%s0 + $0x5c0] sm:$0xff]
    %v213 = vld [vmem:[%s0 + $0x5c8] sm:$0xff]
    %v214 = vld [vmem:[%s0 + $0x5d0] sm:$0xff]
    %v215 = vld [vmem:[%s0 + $0x5d8] sm:$0xff]
    %v216 = vld [vmem:[%s0 + $0x5e0] sm:$0xff]
    %v217 = vld [vmem:[%s0 + $0x5e8] sm:$0xff]
    %v218 = vld [vmem:[%s0 + $0x5f0] sm:$0xff]
    %v219 = vld [vmem:[%s0 + $0x5f8] sm:$0xff]
    %v220 = vld [vmem:[%s0 + $0x600] sm:$0xff]
    %v221 = vld [vmem:[%s0 + $0x608] sm:$0xff]
    %v222 = vld [vmem:[%s0 + $0x610] sm:$0xff]
    %v223 = vld [vmem:[%s0 + $0x618] sm:$0xff]
    %v224 = vld [vmem:[%s0 + $0x620] sm:$0xff]
    %v225 = vld [vmem:[%s0 + $0x628] sm:$0xff]
    %v226 = vld [vmem:[%s0 + $0x630] sm:$0xff]
    %v227 = vld [vmem:[%s0 + $0x638] sm:$0xff]
    %v228 = vld [vmem:[%s0 + $0x640] sm:$0xff]
    %v229 = vld [vmem:[%s0 + $0x648] sm:$0xff]
    %v230 = vld [vmem:[%s0 + $0x650] sm:$0xff]
    %v231 = vld [vmem:[%s0 + $0x658] sm:$0xff]
    %v232 = vld [vmem:[%s0 + $0x660] sm:$0xff]
    %v233 = vld [vmem:[%s0 + $0x668] sm:$0xff]
    %v234 = vld [vmem:[%s0 + $0x670] sm:$0xff]
    %v235 = vld [vmem:[%s0 + $0x678] sm:$0xff]
    %v236 = vld [vmem:[%s0 + $0x680] sm:$0xff]
    %v237 = vld [vmem:[%s0 + $0x688] sm:$0xff]
    %v238 = vld [vmem:[%s0 + $0x690] sm:$0xff]
    %v239 = vld [vmem:[%s0 + $0x698] sm:$0xff]
    %v240 = vld [vmem:[%s0 + $0x6a0] sm:$0xff]
    %v241 = vld [vmem:[%s0 + $0x6a8] sm:$0xff]
    %v242 = vld [vmem:[%s0 + $0x6b0] sm:$0xff]
    %v243 = vld [vmem:[%s0 + $0x6b8] sm:$0xff]
    %v244 = vld [vmem:[%s0 + $0x6c0] sm:$0xff]
    %v245 = vld [vmem:[%s0 + $0x6c8] sm:$0xff]
    %v246 = vld [vmem:[%s0 + $0x6d0] sm:$0xff]
    %v247 = vld [vmem:[%s0 + $0x6d8] sm:$0xff]
    %v248 = vld [vmem:[%s0 + $0x6e0] sm:$0xff]
    %v249 = vld [vmem:[%s0 + $0x6e8] sm:$0xff]
    %v250 = vld [vmem:[%s0 + $0x6f0] sm:$0xff]
    %v251 = vld [vmem:[%s0 + $0x6f8] sm:$0xff]
    %v252 = vld [vmem:[%s0 + $0x700] sm:$0xff]
    %v253 = vld [vmem:[%s0 + $0x708] sm:$0xff]
    %v254 = vld [vmem:[%s0 + $0x710] sm:$0xff]
    %v255 = vld [vmem:[%s0 + $0x718] sm:$0xff]
    %v256 = vld [vmem:[%s0 + $0x720] sm:$0xff]
    %v257 = vld [vmem:[%s0 + $0x728] sm:$0xff]
    %v258 = vld [vmem:[%s0 + $0x730] sm:$0xff]
    %v259 = vld [vmem:[%s0 + $0x738] sm:$0xff]
    %v260 = vld [vmem:[%s0 + $0x740] sm:$0xff]
    %v261 = vld [vmem:[%s0 + $0x748] sm:$0xff]
    %v262 = vld [vmem:[%s0 + $0x750] sm:$0xff]
    %v263 = vld [vmem:[%s0 + $0x758] sm:$0xff]
    %v264 = vld [vmem:[%s0 + $0x760] sm:$0xff]
    %v265 = vld [vmem:[%s0 + $0x768] sm:$0xff]
    %v266 = vld [vmem:[%s0 + $0x770] sm:$0xff]
    %v267 = vld [vmem:[%s0 + $0x778] sm:$0xff]
    %v268 = vld [vmem:[%s0 + $0x780] sm:$0xff]
    %v269 = vld [vmem:[%s0 + $0x788] sm:$0xff]
    %v270 = vld [vmem:[%s0 + $0x790] sm:$0xff]
    %v271 = vld [vmem:[%s0 + $0x798] sm:$0xff]
    %v272 = vld [vmem:[%s0 + $0x7a0] sm:$0xff]
    %v273 = vld [vmem:[%s0 + $0x7a8] sm:$0xff]
    %v274 = vld [vmem:[%s0 + $0x7b0] sm:$0xff]
    %v275 = vld [vmem:[%s0 + $0x7b8] sm:$0xff]
    %v276 = vld [vmem:[%s0 + $0x7c0] sm:$0xff]
    %v277 = vld [vmem:[%s0 + $0x7c8] sm:$0xff]
    %v278 = vld [vmem:[%s0 + $0x7d0] sm:$0xff]
    %v279 = vld [vmem:[%s0 + $0x7d8] sm:$0xff]
    %v280 = vld [vmem:[%s0 + $0x7e0] sm:$0xff]
    %v281 = vld [vmem:[%s0 + $0x7e8] sm:$0xff]
    %v282 = vld [vmem:[%s0 + $0x7f0] sm:$0xff]
    %v283 = vld [vmem:[%s0 + $0x7f8] sm:$0xff]
    %284 = vxpose.xlu0.b32.start [1/16] %v28, 128
    %285 = vxpose.xlu0.b32.cont [2/16] %v30, 128
    %286 = vxpose.xlu0.b32.cont [3/16] %v32, 128
    %287 = vxpose.xlu0.b32.cont [4/16] %v34, 128
    %288 = vxpose.xlu0.b32.cont [5/16] %v36, 128
    %289 = vxpose.xlu0.b32.cont [6/16] %v38, 128
    %290 = vxpose.xlu0.b32.cont [7/16] %v40, 128
    %291 = vxpose.xlu0.b32.cont [8/16] %v42, 128
    %292 = vxpose.xlu0.b32.cont [9/16] %v44, 128
    %293 = vxpose.xlu0.b32.cont [10/16] %v46, 128
    %294 = vxpose.xlu0.b32.cont [11/16] %v48, 128
    %295 = vxpose.xlu0.b32.cont [12/16] %v50, 128
    %296 = vxpose.xlu0.b32.cont [13/16] %v52, 128
    %297 = vxpose.xlu0.b32.cont [14/16] %v54, 128
    %298 = vxpose.xlu0.b32.cont [15/16] %v56, 128
    %299 = vxpose.xlu0.b32.end [16/16] %v58, 128
    %v300 = vpop.trf.xlu0
    %v301 = vpop.trf.xlu0
    %v302 = vpop.trf.xlu0
    %v303 = vpop.trf.xlu0
    %v304 = vpop.trf.xlu0
    %v305 = vpop.trf.xlu0
    %v306 = vpop.trf.xlu0
    %v307 = vpop.trf.xlu0
    %v308 = vpop.trf.xlu0
    %v309 = vpop.trf.xlu0
    %v310 = vpop.trf.xlu0
    %v311 = vpop.trf.xlu0
    %v312 = vpop.trf.xlu0
    %v313 = vpop.trf.xlu0
    %v314 = vpop.trf.xlu0
    %v315 = vpop.trf.xlu0
    %316 = vxpose.xlu0.b32.start [1/16] %v29, 128
    %317 = vxpose.xlu0.b32.cont [2/16] %v31, 128
    %318 = vxpose.xlu0.b32.cont [3/16] %v33, 128
    %319 = vxpose.xlu0.b32.cont [4/16] %v35, 128
    %320 = vxpose.xlu0.b32.cont [5/16] %v37, 128
    %321 = vxpose.xlu0.b32.cont [6/16] %v39, 128
    %322 = vxpose.xlu0.b32.cont [7/16] %v41, 128
    %323 = vxpose.xlu0.b32.cont [8/16] %v43, 128
    %324 = vxpose.xlu0.b32.cont [9/16] %v45, 128
    %325 = vxpose.xlu0.b32.cont [10/16] %v47, 128
    %326 = vxpose.xlu0.b32.cont [11/16] %v49, 128
    %327 = vxpose.xlu0.b32.cont [12/16] %v51, 128
    %328 = vxpose.xlu0.b32.cont [13/16] %v53, 128
    %329 = vxpose.xlu0.b32.cont [14/16] %v55, 128
    %330 = vxpose.xlu0.b32.cont [15/16] %v57, 128
    %331 = vxpose.xlu0.b32.end [16/16] %v59, 128
    %v332 = vpop.trf.xlu0
    %v333 = vpop.trf.xlu0
    %v334 = vpop.trf.xlu0
    %v335 = vpop.trf.xlu0
    %v336 = vpop.trf.xlu0
    %v337 = vpop.trf.xlu0
    %v338 = vpop.trf.xlu0
    %v339 = vpop.trf.xlu0
    %v340 = vpop.trf.xlu0
    %v341 = vpop.trf.xlu0
    %v342 = vpop.trf.xlu0
    %v343 = vpop.trf.xlu0
    %v344 = vpop.trf.xlu0
    %v345 = vpop.trf.xlu0
    %v346 = vpop.trf.xlu0
    %v347 = vpop.trf.xlu0
    %348 = vxpose.xlu0.b32.start [1/16] %v60, 128
    %349 = vxpose.xlu0.b32.cont [2/16] %v62, 128
    %350 = vxpose.xlu0.b32.cont [3/16] %v64, 128
    %351 = vxpose.xlu0.b32.cont [4/16] %v66, 128
    %352 = vxpose.xlu0.b32.cont [5/16] %v68, 128
    %353 = vxpose.xlu0.b32.cont [6/16] %v70, 128
    %354 = vxpose.xlu0.b32.cont [7/16] %v72, 128
    %355 = vxpose.xlu0.b32.cont [8/16] %v74, 128
    %356 = vxpose.xlu0.b32.cont [9/16] %v76, 128
    %357 = vxpose.xlu0.b32.cont [10/16] %v78, 128
    %358 = vxpose.xlu0.b32.cont [11/16] %v80, 128
    %359 = vxpose.xlu0.b32.cont [12/16] %v82, 128
    %360 = vxpose.xlu0.b32.cont [13/16] %v84, 128
    %361 = vxpose.xlu0.b32.cont [14/16] %v86, 128
    %362 = vxpose.xlu0.b32.cont [15/16] %v88, 128
    %363 = vxpose.xlu0.b32.end [16/16] %v90, 128
    %v364 = vpop.trf.xlu0
    %v365 = vpop.trf.xlu0
    %v366 = vpop.trf.xlu0
    %v367 = vpop.trf.xlu0
    %v368 = vpop.trf.xlu0
    %v369 = vpop.trf.xlu0
    %v370 = vpop.trf.xlu0
    %v371 = vpop.trf.xlu0
    %v372 = vpop.trf.xlu0
    %v373 = vpop.trf.xlu0
    %v374 = vpop.trf.xlu0
    %v375 = vpop.trf.xlu0
    %v376 = vpop.trf.xlu0
    %v377 = vpop.trf.xlu0
    %v378 = vpop.trf.xlu0
    %v379 = vpop.trf.xlu0
    %380 = vxpose.xlu0.b32.start [1/16] %v61, 128
    %381 = vxpose.xlu0.b32.cont [2/16] %v63, 128
    %382 = vxpose.xlu0.b32.cont [3/16] %v65, 128
    %383 = vxpose.xlu0.b32.cont [4/16] %v67, 128
    %384 = vxpose.xlu0.b32.cont [5/16] %v69, 128
    %385 = vxpose.xlu0.b32.cont [6/16] %v71, 128
    %386 = vxpose.xlu0.b32.cont [7/16] %v73, 128
    %387 = vxpose.xlu0.b32.cont [8/16] %v75, 128
    %388 = vxpose.xlu0.b32.cont [9/16] %v77, 128
    %389 = vxpose.xlu0.b32.cont [10/16] %v79, 128
    %390 = vxpose.xlu0.b32.cont [11/16] %v81, 128
    %391 = vxpose.xlu0.b32.cont [12/16] %v83, 128
    %392 = vxpose.xlu0.b32.cont [13/16] %v85, 128
    %393 = vxpose.xlu0.b32.cont [14/16] %v87, 128
    %394 = vxpose.xlu0.b32.cont [15/16] %v89, 128
    %395 = vxpose.xlu0.b32.end [16/16] %v91, 128
    %v396 = vpop.trf.xlu0
    %v397 = vpop.trf.xlu0
    %v398 = vpop.trf.xlu0
    %v399 = vpop.trf.xlu0
    %v400 = vpop.trf.xlu0
    %v401 = vpop.trf.xlu0
    %v402 = vpop.trf.xlu0
    %v403 = vpop.trf.xlu0
    %v404 = vpop.trf.xlu0
    %v405 = vpop.trf.xlu0
    %v406 = vpop.trf.xlu0
    %v407 = vpop.trf.xlu0
    %v408 = vpop.trf.xlu0
    %v409 = vpop.trf.xlu0
    %v410 = vpop.trf.xlu0
    %v411 = vpop.trf.xlu0
    %412 = vxpose.xlu0.b32.start [1/16] %v92, 128
    %413 = vxpose.xlu0.b32.cont [2/16] %v94, 128
    %414 = vxpose.xlu0.b32.cont [3/16] %v96, 128
    %415 = vxpose.xlu0.b32.cont [4/16] %v98, 128
    %416 = vxpose.xlu0.b32.cont [5/16] %v100, 128
    %417 = vxpose.xlu0.b32.cont [6/16] %v102, 128
    %418 = vxpose.xlu0.b32.cont [7/16] %v104, 128
    %419 = vxpose.xlu0.b32.cont [8/16] %v106, 128
    %420 = vxpose.xlu0.b32.cont [9/16] %v108, 128
    %421 = vxpose.xlu0.b32.cont [10/16] %v110, 128
    %422 = vxpose.xlu0.b32.cont [11/16] %v112, 128
    %423 = vxpose.xlu0.b32.cont [12/16] %v114, 128
    %424 = vxpose.xlu0.b32.cont [13/16] %v116, 128
    %425 = vxpose.xlu0.b32.cont [14/16] %v118, 128
    %426 = vxpose.xlu0.b32.cont [15/16] %v120, 128
    %427 = vxpose.xlu0.b32.end [16/16] %v122, 128
    %v428 = vpop.trf.xlu0
    %v429 = vpop.trf.xlu0
    %v430 = vpop.trf.xlu0
    %v431 = vpop.trf.xlu0
    %v432 = vpop.trf.xlu0
    %v433 = vpop.trf.xlu0
    %v434 = vpop.trf.xlu0
    %v435 = vpop.trf.xlu0
    %v436 = vpop.trf.xlu0
    %v437 = vpop.trf.xlu0
    %v438 = vpop.trf.xlu0
    %v439 = vpop.trf.xlu0
    %v440 = vpop.trf.xlu0
    %v441 = vpop.trf.xlu0
    %v442 = vpop.trf.xlu0
    %v443 = vpop.trf.xlu0
    %444 = vxpose.xlu0.b32.start [1/16] %v93, 128
    %445 = vxpose.xlu0.b32.cont [2/16] %v95, 128
    %446 = vxpose.xlu0.b32.cont [3/16] %v97, 128
    %447 = vxpose.xlu0.b32.cont [4/16] %v99, 128
    %448 = vxpose.xlu0.b32.cont [5/16] %v101, 128
    %449 = vxpose.xlu0.b32.cont [6/16] %v103, 128
    %450 = vxpose.xlu0.b32.cont [7/16] %v105, 128
    %451 = vxpose.xlu0.b32.cont [8/16] %v107, 128
    %452 = vxpose.xlu0.b32.cont [9/16] %v109, 128
    %453 = vxpose.xlu0.b32.cont [10/16] %v111, 128
    %454 = vxpose.xlu0.b32.cont [11/16] %v113, 128
    %455 = vxpose.xlu0.b32.cont [12/16] %v115, 128
    %456 = vxpose.xlu0.b32.cont [13/16] %v117, 128
    %457 = vxpose.xlu0.b32.cont [14/16] %v119, 128
    %458 = vxpose.xlu0.b32.cont [15/16] %v121, 128
    %459 = vxpose.xlu0.b32.end [16/16] %v123, 128
    %v460 = vpop.trf.xlu0
    %v461 = vpop.trf.xlu0
    %v462 = vpop.trf.xlu0
    %v463 = vpop.trf.xlu0
    %v464 = vpop.trf.xlu0
    %v465 = vpop.trf.xlu0
    %v466 = vpop.trf.xlu0
    %v467 = vpop.trf.xlu0
    %v468 = vpop.trf.xlu0
    %v469 = vpop.trf.xlu0
    %v470 = vpop.trf.xlu0
    %v471 = vpop.trf.xlu0
    %v472 = vpop.trf.xlu0
    %v473 = vpop.trf.xlu0
    %v474 = vpop.trf.xlu0
    %v475 = vpop.trf.xlu0
    %476 = vxpose.xlu0.b32.start [1/16] %v124, 128
    %477 = vxpose.xlu0.b32.cont [2/16] %v126, 128
    %478 = vxpose.xlu0.b32.cont [3/16] %v128, 128
    %479 = vxpose.xlu0.b32.cont [4/16] %v130, 128
    %480 = vxpose.xlu0.b32.cont [5/16] %v132, 128
    %481 = vxpose.xlu0.b32.cont [6/16] %v134, 128
    %482 = vxpose.xlu0.b32.cont [7/16] %v136, 128
    %483 = vxpose.xlu0.b32.cont [8/16] %v138, 128
    %484 = vxpose.xlu0.b32.cont [9/16] %v140, 128
    %485 = vxpose.xlu0.b32.cont [10/16] %v142, 128
    %486 = vxpose.xlu0.b32.cont [11/16] %v144, 128
    %487 = vxpose.xlu0.b32.cont [12/16] %v146, 128
    %488 = vxpose.xlu0.b32.cont [13/16] %v148, 128
    %489 = vxpose.xlu0.b32.cont [14/16] %v150, 128
    %490 = vxpose.xlu0.b32.cont [15/16] %v152, 128
    %491 = vxpose.xlu0.b32.end [16/16] %v154, 128
    %v492 = vpop.trf.xlu0
    %v493 = vpop.trf.xlu0
    %v494 = vpop.trf.xlu0
    %v495 = vpop.trf.xlu0
    %v496 = vpop.trf.xlu0
    %v497 = vpop.trf.xlu0
    %v498 = vpop.trf.xlu0
    %v499 = vpop.trf.xlu0
    %v500 = vpop.trf.xlu0
    %v501 = vpop.trf.xlu0
    %v502 = vpop.trf.xlu0
    %v503 = vpop.trf.xlu0
    %v504 = vpop.trf.xlu0
    %v505 = vpop.trf.xlu0
    %v506 = vpop.trf.xlu0
    %v507 = vpop.trf.xlu0
    %508 = vxpose.xlu0.b32.start [1/16] %v125, 128
    %509 = vxpose.xlu0.b32.cont [2/16] %v127, 128
    %510 = vxpose.xlu0.b32.cont [3/16] %v129, 128
    %511 = vxpose.xlu0.b32.cont [4/16] %v131, 128
    %512 = vxpose.xlu0.b32.cont [5/16] %v133, 128
    %513 = vxpose.xlu0.b32.cont [6/16] %v135, 128
    %514 = vxpose.xlu0.b32.cont [7/16] %v137, 128
    %515 = vxpose.xlu0.b32.cont [8/16] %v139, 128
    %516 = vxpose.xlu0.b32.cont [9/16] %v141, 128
    %517 = vxpose.xlu0.b32.cont [10/16] %v143, 128
    %518 = vxpose.xlu0.b32.cont [11/16] %v145, 128
    %519 = vxpose.xlu0.b32.cont [12/16] %v147, 128
    %520 = vxpose.xlu0.b32.cont [13/16] %v149, 128
    %521 = vxpose.xlu0.b32.cont [14/16] %v151, 128
    %522 = vxpose.xlu0.b32.cont [15/16] %v153, 128
    %523 = vxpose.xlu0.b32.end [16/16] %v155, 128
    %v524 = vpop.trf.xlu0
    %v525 = vpop.trf.xlu0
    %v526 = vpop.trf.xlu0
    %v527 = vpop.trf.xlu0
    %v528 = vpop.trf.xlu0
    %v529 = vpop.trf.xlu0
    %v530 = vpop.trf.xlu0
    %v531 = vpop.trf.xlu0
    %v532 = vpop.trf.xlu0
    %v533 = vpop.trf.xlu0
    %v534 = vpop.trf.xlu0
    %v535 = vpop.trf.xlu0
    %v536 = vpop.trf.xlu0
    %v537 = vpop.trf.xlu0
    %v538 = vpop.trf.xlu0
    %v539 = vpop.trf.xlu0
    %540 = vxpose.xlu0.b32.start [1/16] %v156, 128
    %541 = vxpose.xlu0.b32.cont [2/16] %v158, 128
    %542 = vxpose.xlu0.b32.cont [3/16] %v160, 128
    %543 = vxpose.xlu0.b32.cont [4/16] %v162, 128
    %544 = vxpose.xlu0.b32.cont [5/16] %v164, 128
    %545 = vxpose.xlu0.b32.cont [6/16] %v166, 128
    %546 = vxpose.xlu0.b32.cont [7/16] %v168, 128
    %547 = vxpose.xlu0.b32.cont [8/16] %v170, 128
    %548 = vxpose.xlu0.b32.cont [9/16] %v172, 128
    %549 = vxpose.xlu0.b32.cont [10/16] %v174, 128
    %550 = vxpose.xlu0.b32.cont [11/16] %v176, 128
    %551 = vxpose.xlu0.b32.cont [12/16] %v178, 128
    %552 = vxpose.xlu0.b32.cont [13/16] %v180, 128
    %553 = vxpose.xlu0.b32.cont [14/16] %v182, 128
    %554 = vxpose.xlu0.b32.cont [15/16] %v184, 128
    %555 = vxpose.xlu0.b32.end [16/16] %v186, 128
    %v556 = vpop.trf.xlu0
    %v557 = vpop.trf.xlu0
    %v558 = vpop.trf.xlu0
    %v559 = vpop.trf.xlu0
    %v560 = vpop.trf.xlu0
    %v561 = vpop.trf.xlu0
    %v562 = vpop.trf.xlu0
    %v563 = vpop.trf.xlu0
    %v564 = vpop.trf.xlu0
    %v565 = vpop.trf.xlu0
    %v566 = vpop.trf.xlu0
    %v567 = vpop.trf.xlu0
    %v568 = vpop.trf.xlu0
    %v569 = vpop.trf.xlu0
    %v570 = vpop.trf.xlu0
    %v571 = vpop.trf.xlu0
    %572 = vxpose.xlu0.b32.start [1/16] %v157, 128
    %573 = vxpose.xlu0.b32.cont [2/16] %v159, 128
    %574 = vxpose.xlu0.b32.cont [3/16] %v161, 128
    %575 = vxpose.xlu0.b32.cont [4/16] %v163, 128
    %576 = vxpose.xlu0.b32.cont [5/16] %v165, 128
    %577 = vxpose.xlu0.b32.cont [6/16] %v167, 128
    %578 = vxpose.xlu0.b32.cont [7/16] %v169, 128
    %579 = vxpose.xlu0.b32.cont [8/16] %v171, 128
    %580 = vxpose.xlu0.b32.cont [9/16] %v173, 128
    %581 = vxpose.xlu0.b32.cont [10/16] %v175, 128
    %582 = vxpose.xlu0.b32.cont [11/16] %v177, 128
    %583 = vxpose.xlu0.b32.cont [12/16] %v179, 128
    %584 = vxpose.xlu0.b32.cont [13/16] %v181, 128
    %585 = vxpose.xlu0.b32.cont [14/16] %v183, 128
    %586 = vxpose.xlu0.b32.cont [15/16] %v185, 128
    %587 = vxpose.xlu0.b32.end [16/16] %v187, 128
    %v588 = vpop.trf.xlu0
    %v589 = vpop.trf.xlu0
    %v590 = vpop.trf.xlu0
    %v591 = vpop.trf.xlu0
    %v592 = vpop.trf.xlu0
    %v593 = vpop.trf.xlu0
    %v594 = vpop.trf.xlu0
    %v595 = vpop.trf.xlu0
    %v596 = vpop.trf.xlu0
    %v597 = vpop.trf.xlu0
    %v598 = vpop.trf.xlu0
    %v599 = vpop.trf.xlu0
    %v600 = vpop.trf.xlu0
    %v601 = vpop.trf.xlu0
    %v602 = vpop.trf.xlu0
    %v603 = vpop.trf.xlu0
    %604 = vxpose.xlu0.b32.start [1/16] %v188, 128
    %605 = vxpose.xlu0.b32.cont [2/16] %v190, 128
    %606 = vxpose.xlu0.b32.cont [3/16] %v192, 128
    %607 = vxpose.xlu0.b32.cont [4/16] %v194, 128
    %608 = vxpose.xlu0.b32.cont [5/16] %v196, 128
    %609 = vxpose.xlu0.b32.cont [6/16] %v198, 128
    %610 = vxpose.xlu0.b32.cont [7/16] %v200, 128
    %611 = vxpose.xlu0.b32.cont [8/16] %v202, 128
    %612 = vxpose.xlu0.b32.cont [9/16] %v204, 128
    %613 = vxpose.xlu0.b32.cont [10/16] %v206, 128
    %614 = vxpose.xlu0.b32.cont [11/16] %v208, 128
    %615 = vxpose.xlu0.b32.cont [12/16] %v210, 128
    %616 = vxpose.xlu0.b32.cont [13/16] %v212, 128
    %617 = vxpose.xlu0.b32.cont [14/16] %v214, 128
    %618 = vxpose.xlu0.b32.cont [15/16] %v216, 128
    %619 = vxpose.xlu0.b32.end [16/16] %v218, 128
    %v620 = vpop.trf.xlu0
    %v621 = vpop.trf.xlu0
    %v622 = vpop.trf.xlu0
    %v623 = vpop.trf.xlu0
    %v624 = vpop.trf.xlu0
    %v625 = vpop.trf.xlu0
    %v626 = vpop.trf.xlu0
    %v627 = vpop.trf.xlu0
    %v628 = vpop.trf.xlu0
    %v629 = vpop.trf.xlu0
    %v630 = vpop.trf.xlu0
    %v631 = vpop.trf.xlu0
    %v632 = vpop.trf.xlu0
    %v633 = vpop.trf.xlu0
    %v634 = vpop.trf.xlu0
    %v635 = vpop.trf.xlu0
    %636 = vxpose.xlu0.b32.start [1/16] %v189, 128
    %637 = vxpose.xlu0.b32.cont [2/16] %v191, 128
    %638 = vxpose.xlu0.b32.cont [3/16] %v193, 128
    %639 = vxpose.xlu0.b32.cont [4/16] %v195, 128
    %640 = vxpose.xlu0.b32.cont [5/16] %v197, 128
    %641 = vxpose.xlu0.b32.cont [6/16] %v199, 128
    %642 = vxpose.xlu0.b32.cont [7/16] %v201, 128
    %643 = vxpose.xlu0.b32.cont [8/16] %v203, 128
    %644 = vxpose.xlu0.b32.cont [9/16] %v205, 128
    %645 = vxpose.xlu0.b32.cont [10/16] %v207, 128
    %646 = vxpose.xlu0.b32.cont [11/16] %v209, 128
    %647 = vxpose.xlu0.b32.cont [12/16] %v211, 128
    %648 = vxpose.xlu0.b32.cont [13/16] %v213, 128
    %649 = vxpose.xlu0.b32.cont [14/16] %v215, 128
    %650 = vxpose.xlu0.b32.cont [15/16] %v217, 128
    %651 = vxpose.xlu0.b32.end [16/16] %v219, 128
    %v652 = vpop.trf.xlu0
    %v653 = vpop.trf.xlu0
    %v654 = vpop.trf.xlu0
    %v655 = vpop.trf.xlu0
    %v656 = vpop.trf.xlu0
    %v657 = vpop.trf.xlu0
    %v658 = vpop.trf.xlu0
    %v659 = vpop.trf.xlu0
    %v660 = vpop.trf.xlu0
    %v661 = vpop.trf.xlu0
    %v662 = vpop.trf.xlu0
    %v663 = vpop.trf.xlu0
    %v664 = vpop.trf.xlu0
    %v665 = vpop.trf.xlu0
    %v666 = vpop.trf.xlu0
    %v667 = vpop.trf.xlu0
    %668 = vxpose.xlu0.b32.start [1/16] %v220, 128
    %669 = vxpose.xlu0.b32.cont [2/16] %v222, 128
    %670 = vxpose.xlu0.b32.cont [3/16] %v224, 128
    %671 = vxpose.xlu0.b32.cont [4/16] %v226, 128
    %672 = vxpose.xlu0.b32.cont [5/16] %v228, 128
    %673 = vxpose.xlu0.b32.cont [6/16] %v230, 128
    %674 = vxpose.xlu0.b32.cont [7/16] %v232, 128
    %675 = vxpose.xlu0.b32.cont [8/16] %v234, 128
    %676 = vxpose.xlu0.b32.cont [9/16] %v236, 128
    %677 = vxpose.xlu0.b32.cont [10/16] %v238, 128
    %678 = vxpose.xlu0.b32.cont [11/16] %v240, 128
    %679 = vxpose.xlu0.b32.cont [12/16] %v242, 128
    %680 = vxpose.xlu0.b32.cont [13/16] %v244, 128
    %681 = vxpose.xlu0.b32.cont [14/16] %v246, 128
    %682 = vxpose.xlu0.b32.cont [15/16] %v248, 128
    %683 = vxpose.xlu0.b32.end [16/16] %v250, 128
    %v684 = vpop.trf.xlu0
    %v685 = vpop.trf.xlu0
    %v686 = vpop.trf.xlu0
    %v687 = vpop.trf.xlu0
    %v688 = vpop.trf.xlu0
    %v689 = vpop.trf.xlu0
    %v690 = vpop.trf.xlu0
    %v691 = vpop.trf.xlu0
    %v692 = vpop.trf.xlu0
    %v693 = vpop.trf.xlu0
    %v694 = vpop.trf.xlu0
    %v695 = vpop.trf.xlu0
    %v696 = vpop.trf.xlu0
    %v697 = vpop.trf.xlu0
    %v698 = vpop.trf.xlu0
    %v699 = vpop.trf.xlu0
    %700 = vxpose.xlu0.b32.start [1/16] %v221, 128
    %701 = vxpose.xlu0.b32.cont [2/16] %v223, 128
    %702 = vxpose.xlu0.b32.cont [3/16] %v225, 128
    %703 = vxpose.xlu0.b32.cont [4/16] %v227, 128
    %704 = vxpose.xlu0.b32.cont [5/16] %v229, 128
    %705 = vxpose.xlu0.b32.cont [6/16] %v231, 128
    %706 = vxpose.xlu0.b32.cont [7/16] %v233, 128
    %707 = vxpose.xlu0.b32.cont [8/16] %v235, 128
    %708 = vxpose.xlu0.b32.cont [9/16] %v237, 128
    %709 = vxpose.xlu0.b32.cont [10/16] %v239, 128
    %710 = vxpose.xlu0.b32.cont [11/16] %v241, 128
    %711 = vxpose.xlu0.b32.cont [12/16] %v243, 128
    %712 = vxpose.xlu0.b32.cont [13/16] %v245, 128
    %713 = vxpose.xlu0.b32.cont [14/16] %v247, 128
    %714 = vxpose.xlu0.b32.cont [15/16] %v249, 128
    %715 = vxpose.xlu0.b32.end [16/16] %v251, 128
    %v716 = vpop.trf.xlu0
    %v717 = vpop.trf.xlu0
    %v718 = vpop.trf.xlu0
    %v719 = vpop.trf.xlu0
    %v720 = vpop.trf.xlu0
    %v721 = vpop.trf.xlu0
    %v722 = vpop.trf.xlu0
    %v723 = vpop.trf.xlu0
    %v724 = vpop.trf.xlu0
    %v725 = vpop.trf.xlu0
    %v726 = vpop.trf.xlu0
    %v727 = vpop.trf.xlu0
    %v728 = vpop.trf.xlu0
    %v729 = vpop.trf.xlu0
    %v730 = vpop.trf.xlu0
    %v731 = vpop.trf.xlu0
    %732 = vxpose.xlu0.b32.start [1/16] %v252, 128
    %733 = vxpose.xlu0.b32.cont [2/16] %v254, 128
    %734 = vxpose.xlu0.b32.cont [3/16] %v256, 128
    %735 = vxpose.xlu0.b32.cont [4/16] %v258, 128
    %736 = vxpose.xlu0.b32.cont [5/16] %v260, 128
    %737 = vxpose.xlu0.b32.cont [6/16] %v262, 128
    %738 = vxpose.xlu0.b32.cont [7/16] %v264, 128
    %739 = vxpose.xlu0.b32.cont [8/16] %v266, 128
    %740 = vxpose.xlu0.b32.cont [9/16] %v268, 128
    %741 = vxpose.xlu0.b32.cont [10/16] %v270, 128
    %742 = vxpose.xlu0.b32.cont [11/16] %v272, 128
    %743 = vxpose.xlu0.b32.cont [12/16] %v274, 128
    %744 = vxpose.xlu0.b32.cont [13/16] %v276, 128
    %745 = vxpose.xlu0.b32.cont [14/16] %v278, 128
    %746 = vxpose.xlu0.b32.cont [15/16] %v280, 128
    %747 = vxpose.xlu0.b32.end [16/16] %v282, 128
    %v748 = vpop.trf.xlu0
    %v749 = vpop.trf.xlu0
    %v750 = vpop.trf.xlu0
    %v751 = vpop.trf.xlu0
    %v752 = vpop.trf.xlu0
    %v753 = vpop.trf.xlu0
    %v754 = vpop.trf.xlu0
    %v755 = vpop.trf.xlu0
    %v756 = vpop.trf.xlu0
    %v757 = vpop.trf.xlu0
    %v758 = vpop.trf.xlu0
    %v759 = vpop.trf.xlu0
    %v760 = vpop.trf.xlu0
    %v761 = vpop.trf.xlu0
    %v762 = vpop.trf.xlu0
    %v763 = vpop.trf.xlu0
    %764 = vxpose.xlu0.b32.start [1/16] %v253, 128
    %765 = vxpose.xlu0.b32.cont [2/16] %v255, 128
    %766 = vxpose.xlu0.b32.cont [3/16] %v257, 128
    %767 = vxpose.xlu0.b32.cont [4/16] %v259, 128
    %768 = vxpose.xlu0.b32.cont [5/16] %v261, 128
    %769 = vxpose.xlu0.b32.cont [6/16] %v263, 128
    %770 = vxpose.xlu0.b32.cont [7/16] %v265, 128
    %771 = vxpose.xlu0.b32.cont [8/16] %v267, 128
    %772 = vxpose.xlu0.b32.cont [9/16] %v269, 128
    %773 = vxpose.xlu0.b32.cont [10/16] %v271, 128
    %774 = vxpose.xlu0.b32.cont [11/16] %v273, 128
    %775 = vxpose.xlu0.b32.cont [12/16] %v275, 128
    %776 = vxpose.xlu0.b32.cont [13/16] %v277, 128
    %777 = vxpose.xlu0.b32.cont [14/16] %v279, 128
    %778 = vxpose.xlu0.b32.cont [15/16] %v281, 128
    %779 = vxpose.xlu0.b32.end [16/16] %v283, 128
    %v780 = vpop.trf.xlu0
    %v781 = vpop.trf.xlu0
    %v782 = vpop.trf.xlu0
    %v783 = vpop.trf.xlu0
    %v784 = vpop.trf.xlu0
    %v785 = vpop.trf.xlu0
    %v786 = vpop.trf.xlu0
    %v787 = vpop.trf.xlu0
    %v788 = vpop.trf.xlu0
    %v789 = vpop.trf.xlu0
    %v790 = vpop.trf.xlu0
    %v791 = vpop.trf.xlu0
    %v792 = vpop.trf.xlu0
    %v793 = vpop.trf.xlu0
    %v794 = vpop.trf.xlu0
    %v795 = vpop.trf.xlu0
    %v796 = vmax.f32 %v300, 0.0
    %v797 = vmax.f32 %v364, 0.0
    %v798 = vmax.f32 %v428, 0.0
    %v799 = vmax.f32 %v492, 0.0
    %v800 = vmax.f32 %v556, 0.0
    %v801 = vmax.f32 %v620, 0.0
    %v802 = vmax.f32 %v684, 0.0
    %v803 = vmax.f32 %v748, 0.0
    %v804 = vmax.f32 %v301, 0.0
    %v805 = vmax.f32 %v365, 0.0
    %v806 = vmax.f32 %v429, 0.0
    %v807 = vmax.f32 %v493, 0.0
    %v808 = vmax.f32 %v557, 0.0
    %v809 = vmax.f32 %v621, 0.0
    %v810 = vmax.f32 %v685, 0.0
    %v811 = vmax.f32 %v749, 0.0
    %v812 = vmax.f32 %v302, 0.0
    %v813 = vmax.f32 %v366, 0.0
    %v814 = vmax.f32 %v430, 0.0
    %v815 = vmax.f32 %v494, 0.0
    %v816 = vmax.f32 %v558, 0.0
    %v817 = vmax.f32 %v622, 0.0
    %v818 = vmax.f32 %v686, 0.0
    %v819 = vmax.f32 %v750, 0.0
    %v820 = vmax.f32 %v303, 0.0
    %v821 = vmax.f32 %v367, 0.0
    %v822 = vmax.f32 %v431, 0.0
    %v823 = vmax.f32 %v495, 0.0
    %v824 = vmax.f32 %v559, 0.0
    %v825 = vmax.f32 %v623, 0.0
    %v826 = vmax.f32 %v687, 0.0
    %v827 = vmax.f32 %v751, 0.0
    %v828 = vmax.f32 %v304, 0.0
    %v829 = vmax.f32 %v368, 0.0
    %v830 = vmax.f32 %v432, 0.0
    %v831 = vmax.f32 %v496, 0.0
    %v832 = vmax.f32 %v560, 0.0
    %v833 = vmax.f32 %v624, 0.0
    %v834 = vmax.f32 %v688, 0.0
    %v835 = vmax.f32 %v752, 0.0
    %v836 = vmax.f32 %v305, 0.0
    %v837 = vmax.f32 %v369, 0.0
    %v838 = vmax.f32 %v433, 0.0
    %v839 = vmax.f32 %v497, 0.0
    %v840 = vmax.f32 %v561, 0.0
    %v841 = vmax.f32 %v625, 0.0
    %v842 = vmax.f32 %v689, 0.0
    %v843 = vmax.f32 %v753, 0.0
    %v844 = vmax.f32 %v306, 0.0
    %v845 = vmax.f32 %v370, 0.0
    %v846 = vmax.f32 %v434, 0.0
    %v847 = vmax.f32 %v498, 0.0
    %v848 = vmax.f32 %v562, 0.0
    %v849 = vmax.f32 %v626, 0.0
    %v850 = vmax.f32 %v690, 0.0
    %v851 = vmax.f32 %v754, 0.0
    %v852 = vmax.f32 %v307, 0.0
    %v853 = vmax.f32 %v371, 0.0
    %v854 = vmax.f32 %v435, 0.0
    %v855 = vmax.f32 %v499, 0.0
    %v856 = vmax.f32 %v563, 0.0
    %v857 = vmax.f32 %v627, 0.0
    %v858 = vmax.f32 %v691, 0.0
    %v859 = vmax.f32 %v755, 0.0
    %v860 = vmax.f32 %v308, 0.0
    %v861 = vmax.f32 %v372, 0.0
    %v862 = vmax.f32 %v436, 0.0
    %v863 = vmax.f32 %v500, 0.0
    %v864 = vmax.f32 %v564, 0.0
    %v865 = vmax.f32 %v628, 0.0
    %v866 = vmax.f32 %v692, 0.0
    %v867 = vmax.f32 %v756, 0.0
    %v868 = vmax.f32 %v309, 0.0
    %v869 = vmax.f32 %v373, 0.0
    %v870 = vmax.f32 %v437, 0.0
    %v871 = vmax.f32 %v501, 0.0
    %v872 = vmax.f32 %v565, 0.0
    %v873 = vmax.f32 %v629, 0.0
    %v874 = vmax.f32 %v693, 0.0
    %v875 = vmax.f32 %v757, 0.0
    %v876 = vmax.f32 %v310, 0.0
    %v877 = vmax.f32 %v374, 0.0
    %v878 = vmax.f32 %v438, 0.0
    %v879 = vmax.f32 %v502, 0.0
    %v880 = vmax.f32 %v566, 0.0
    %v881 = vmax.f32 %v630, 0.0
    %v882 = vmax.f32 %v694, 0.0
    %v883 = vmax.f32 %v758, 0.0
    %v884 = vmax.f32 %v311, 0.0
    %v885 = vmax.f32 %v375, 0.0
    %v886 = vmax.f32 %v439, 0.0
    %v887 = vmax.f32 %v503, 0.0
    %v888 = vmax.f32 %v567, 0.0
    %v889 = vmax.f32 %v631, 0.0
    %v890 = vmax.f32 %v695, 0.0
    %v891 = vmax.f32 %v759, 0.0
    %v892 = vmax.f32 %v312, 0.0
    %v893 = vmax.f32 %v376, 0.0
    %v894 = vmax.f32 %v440, 0.0
    %v895 = vmax.f32 %v504, 0.0
    %v896 = vmax.f32 %v568, 0.0
    %v897 = vmax.f32 %v632, 0.0
    %v898 = vmax.f32 %v696, 0.0
    %v899 = vmax.f32 %v760, 0.0
    %v900 = vmax.f32 %v313, 0.0
    %v901 = vmax.f32 %v377, 0.0
    %v902 = vmax.f32 %v441, 0.0
    %v903 = vmax.f32 %v505, 0.0
    %v904 = vmax.f32 %v569, 0.0
    %v905 = vmax.f32 %v633, 0.0
    %v906 = vmax.f32 %v697, 0.0
    %v907 = vmax.f32 %v761, 0.0
    %v908 = vmax.f32 %v314, 0.0
    %v909 = vmax.f32 %v378, 0.0
    %v910 = vmax.f32 %v442, 0.0
    %v911 = vmax.f32 %v506, 0.0
    %v912 = vmax.f32 %v570, 0.0
    %v913 = vmax.f32 %v634, 0.0
    %v914 = vmax.f32 %v698, 0.0
    %v915 = vmax.f32 %v762, 0.0
    %v916 = vmax.f32 %v315, 0.0
    %v917 = vmax.f32 %v379, 0.0
    %v918 = vmax.f32 %v443, 0.0
    %v919 = vmax.f32 %v507, 0.0
    %v920 = vmax.f32 %v571, 0.0
    %v921 = vmax.f32 %v635, 0.0
    %v922 = vmax.f32 %v699, 0.0
    %v923 = vmax.f32 %v763, 0.0
    %v924 = vmax.f32 %v332, 0.0
    %v925 = vmax.f32 %v396, 0.0
    %v926 = vmax.f32 %v460, 0.0
    %v927 = vmax.f32 %v524, 0.0
    %v928 = vmax.f32 %v588, 0.0
    %v929 = vmax.f32 %v652, 0.0
    %v930 = vmax.f32 %v716, 0.0
    %v931 = vmax.f32 %v780, 0.0
    %v932 = vmax.f32 %v333, 0.0
    %v933 = vmax.f32 %v397, 0.0
    %v934 = vmax.f32 %v461, 0.0
    %v935 = vmax.f32 %v525, 0.0
    %v936 = vmax.f32 %v589, 0.0
    %v937 = vmax.f32 %v653, 0.0
    %v938 = vmax.f32 %v717, 0.0
    %v939 = vmax.f32 %v781, 0.0
    %v940 = vmax.f32 %v334, 0.0
    %v941 = vmax.f32 %v398, 0.0
    %v942 = vmax.f32 %v462, 0.0
    %v943 = vmax.f32 %v526, 0.0
    %v944 = vmax.f32 %v590, 0.0
    %v945 = vmax.f32 %v654, 0.0
    %v946 = vmax.f32 %v718, 0.0
    %v947 = vmax.f32 %v782, 0.0
    %v948 = vmax.f32 %v335, 0.0
    %v949 = vmax.f32 %v399, 0.0
    %v950 = vmax.f32 %v463, 0.0
    %v951 = vmax.f32 %v527, 0.0
    %v952 = vmax.f32 %v591, 0.0
    %v953 = vmax.f32 %v655, 0.0
    %v954 = vmax.f32 %v719, 0.0
    %v955 = vmax.f32 %v783, 0.0
    %v956 = vmax.f32 %v336, 0.0
    %v957 = vmax.f32 %v400, 0.0
    %v958 = vmax.f32 %v464, 0.0
    %v959 = vmax.f32 %v528, 0.0
    %v960 = vmax.f32 %v592, 0.0
    %v961 = vmax.f32 %v656, 0.0
    %v962 = vmax.f32 %v720, 0.0
    %v963 = vmax.f32 %v784, 0.0
    %v964 = vmax.f32 %v337, 0.0
    %v965 = vmax.f32 %v401, 0.0
    %v966 = vmax.f32 %v465, 0.0
    %v967 = vmax.f32 %v529, 0.0
    %v968 = vmax.f32 %v593, 0.0
    %v969 = vmax.f32 %v657, 0.0
    %v970 = vmax.f32 %v721, 0.0
    %v971 = vmax.f32 %v785, 0.0
    %v972 = vmax.f32 %v338, 0.0
    %v973 = vmax.f32 %v402, 0.0
    %v974 = vmax.f32 %v466, 0.0
    %v975 = vmax.f32 %v530, 0.0
    %v976 = vmax.f32 %v594, 0.0
    %v977 = vmax.f32 %v658, 0.0
    %v978 = vmax.f32 %v722, 0.0
    %v979 = vmax.f32 %v786, 0.0
    %v980 = vmax.f32 %v339, 0.0
    %v981 = vmax.f32 %v403, 0.0
    %v982 = vmax.f32 %v467, 0.0
    %v983 = vmax.f32 %v531, 0.0
    %v984 = vmax.f32 %v595, 0.0
    %v985 = vmax.f32 %v659, 0.0
    %v986 = vmax.f32 %v723, 0.0
    %v987 = vmax.f32 %v787, 0.0
    %v988 = vmax.f32 %v340, 0.0
    %v989 = vmax.f32 %v404, 0.0
    %v990 = vmax.f32 %v468, 0.0
    %v991 = vmax.f32 %v532, 0.0
    %v992 = vmax.f32 %v596, 0.0
    %v993 = vmax.f32 %v660, 0.0
    %v994 = vmax.f32 %v724, 0.0
    %v995 = vmax.f32 %v788, 0.0
    %v996 = vmax.f32 %v341, 0.0
    %v997 = vmax.f32 %v405, 0.0
    %v998 = vmax.f32 %v469, 0.0
    %v999 = vmax.f32 %v533, 0.0
    %v1000 = vmax.f32 %v597, 0.0
    %v1001 = vmax.f32 %v661, 0.0
    %v1002 = vmax.f32 %v725, 0.0
    %v1003 = vmax.f32 %v789, 0.0
    %v1004 = vmax.f32 %v342, 0.0
    %v1005 = vmax.f32 %v406, 0.0
    %v1006 = vmax.f32 %v470, 0.0
    %v1007 = vmax.f32 %v534, 0.0
    %v1008 = vmax.f32 %v598, 0.0
    %v1009 = vmax.f32 %v662, 0.0
    %v1010 = vmax.f32 %v726, 0.0
    %v1011 = vmax.f32 %v790, 0.0
    %v1012 = vmax.f32 %v343, 0.0
    %v1013 = vmax.f32 %v407, 0.0
    %v1014 = vmax.f32 %v471, 0.0
    %v1015 = vmax.f32 %v535, 0.0
    %v1016 = vmax.f32 %v599, 0.0
    %v1017 = vmax.f32 %v663, 0.0
    %v1018 = vmax.f32 %v727, 0.0
    %v1019 = vmax.f32 %v791, 0.0
    %v1020 = vmax.f32 %v344, 0.0
    %v1021 = vmax.f32 %v408, 0.0
    %v1022 = vmax.f32 %v472, 0.0
    %v1023 = vmax.f32 %v536, 0.0
    %v1024 = vmax.f32 %v600, 0.0
    %v1025 = vmax.f32 %v664, 0.0
    %v1026 = vmax.f32 %v728, 0.0
    %v1027 = vmax.f32 %v792, 0.0
    %v1028 = vmax.f32 %v345, 0.0
    %v1029 = vmax.f32 %v409, 0.0
    %v1030 = vmax.f32 %v473, 0.0
    %v1031 = vmax.f32 %v537, 0.0
    %v1032 = vmax.f32 %v601, 0.0
    %v1033 = vmax.f32 %v665, 0.0
    %v1034 = vmax.f32 %v729, 0.0
    %v1035 = vmax.f32 %v793, 0.0
    %v1036 = vmax.f32 %v346, 0.0
    %v1037 = vmax.f32 %v410, 0.0
    %v1038 = vmax.f32 %v474, 0.0
    %v1039 = vmax.f32 %v538, 0.0
    %v1040 = vmax.f32 %v602, 0.0
    %v1041 = vmax.f32 %v666, 0.0
    %v1042 = vmax.f32 %v730, 0.0
    %v1043 = vmax.f32 %v794, 0.0
    %v1044 = vmax.f32 %v347, 0.0
    %v1045 = vmax.f32 %v411, 0.0
    %v1046 = vmax.f32 %v475, 0.0
    %v1047 = vmax.f32 %v539, 0.0
    %v1048 = vmax.f32 %v603, 0.0
    %v1049 = vmax.f32 %v667, 0.0
    %v1050 = vmax.f32 %v731, 0.0
    %v1051 = vmax.f32 %v795, 0.0
    %v1052 = vadd.f32 %v796, %v804
    %v1053 = vadd.f32 %v1052, %v812
    %v1054 = vadd.f32 %v1053, %v820
    %v1055 = vadd.f32 %v1054, %v828
    %v1056 = vadd.f32 %v1055, %v836
    %v1057 = vadd.f32 %v1056, %v844
    %v1058 = vadd.f32 %v1057, %v852
    %v1059 = vadd.f32 %v1058, %v860
    %v1060 = vadd.f32 %v1059, %v868
    %v1061 = vadd.f32 %v1060, %v876
    %v1062 = vadd.f32 %v1061, %v884
    %v1063 = vadd.f32 %v1062, %v892
    %v1064 = vadd.f32 %v1063, %v900
    %v1065 = vadd.f32 %v1064, %v908
    %v1066 = vadd.f32 %v1065, %v916
    %v1067 = vadd.f32 %v1066, %v924
    %v1068 = vadd.f32 %v1067, %v932
    %v1069 = vadd.f32 %v1068, %v940
    %v1070 = vadd.f32 %v1069, %v948
    %v1071 = vadd.f32 %v1070, %v956
    %v1072 = vadd.f32 %v1071, %v964
    %v1073 = vadd.f32 %v1072, %v972
    %v1074 = vadd.f32 %v1073, %v980
    %v1075 = vadd.f32 %v1074, %v988
    %v1076 = vadd.f32 %v1075, %v996
    %v1077 = vadd.f32 %v1076, %v1004
    %v1078 = vadd.f32 %v1077, %v1012
    %v1079 = vadd.f32 %v1078, %v1020
    %v1080 = vadd.f32 %v1079, %v1028
    %v1081 = vadd.f32 %v1080, %v1036
    %v1082 = vadd.f32 %v1081, %v1044
    %v1083 = vrot.slane %v1082, 4
    %v1084 = vadd.f32 %v1082, %v1083
    %v1085 = vrot.slane %v1084, 2
    %v1086 = vadd.f32 %v1084, %v1085
    %v1087 = vrot.slane %v1086, 1
    %v1088 = vadd.f32 %v1086, %v1087
    %v1089 = vadd.f32 %v797, %v805
    %v1090 = vadd.f32 %v1089, %v813
    %v1091 = vadd.f32 %v1090, %v821
    %v1092 = vadd.f32 %v1091, %v829
    %v1093 = vadd.f32 %v1092, %v837
    %v1094 = vadd.f32 %v1093, %v845
    %v1095 = vadd.f32 %v1094, %v853
    %v1096 = vadd.f32 %v1095, %v861
    %v1097 = vadd.f32 %v1096, %v869
    %v1098 = vadd.f32 %v1097, %v877
    %v1099 = vadd.f32 %v1098, %v885
    %v1100 = vadd.f32 %v1099, %v893
    %v1101 = vadd.f32 %v1100, %v901
    %v1102 = vadd.f32 %v1101, %v909
    %v1103 = vadd.f32 %v1102, %v917
    %v1104 = vadd.f32 %v1103, %v925
    %v1105 = vadd.f32 %v1104, %v933
    %v1106 = vadd.f32 %v1105, %v941
    %v1107 = vadd.f32 %v1106, %v949
    %v1108 = vadd.f32 %v1107, %v957
    %v1109 = vadd.f32 %v1108, %v965
    %v1110 = vadd.f32 %v1109, %v973
    %v1111 = vadd.f32 %v1110, %v981
    %v1112 = vadd.f32 %v1111, %v989
    %v1113 = vadd.f32 %v1112, %v997
    %v1114 = vadd.f32 %v1113, %v1005
    %v1115 = vadd.f32 %v1114, %v1013
    %v1116 = vadd.f32 %v1115, %v1021
    %v1117 = vadd.f32 %v1116, %v1029
    %v1118 = vadd.f32 %v1117, %v1037
    %v1119 = vadd.f32 %v1118, %v1045
    %v1120 = vrot.slane %v1119, 4
    %v1121 = vadd.f32 %v1119, %v1120
    %v1122 = vrot.slane %v1121, 2
    %v1123 = vadd.f32 %v1121, %v1122
    %v1124 = vrot.slane %v1123, 1
    %v1125 = vadd.f32 %v1123, %v1124
    %v1126 = vadd.f32 %v798, %v806
    %v1127 = vadd.f32 %v1126, %v814
    %v1128 = vadd.f32 %v1127, %v822
    %v1129 = vadd.f32 %v1128, %v830
    %v1130 = vadd.f32 %v1129, %v838
    %v1131 = vadd.f32 %v1130, %v846
    %v1132 = vadd.f32 %v1131, %v854
    %v1133 = vadd.f32 %v1132, %v862
    %v1134 = vadd.f32 %v1133, %v870
    %v1135 = vadd.f32 %v1134, %v878
    %v1136 = vadd.f32 %v1135, %v886
    %v1137 = vadd.f32 %v1136, %v894
    %v1138 = vadd.f32 %v1137, %v902
    %v1139 = vadd.f32 %v1138, %v910
    %v1140 = vadd.f32 %v1139, %v918
    %v1141 = vadd.f32 %v1140, %v926
    %v1142 = vadd.f32 %v1141, %v934
    %v1143 = vadd.f32 %v1142, %v942
    %v1144 = vadd.f32 %v1143, %v950
    %v1145 = vadd.f32 %v1144, %v958
    %v1146 = vadd.f32 %v1145, %v966
    %v1147 = vadd.f32 %v1146, %v974
    %v1148 = vadd.f32 %v1147, %v982
    %v1149 = vadd.f32 %v1148, %v990
    %v1150 = vadd.f32 %v1149, %v998
    %v1151 = vadd.f32 %v1150, %v1006
    %v1152 = vadd.f32 %v1151, %v1014
    %v1153 = vadd.f32 %v1152, %v1022
    %v1154 = vadd.f32 %v1153, %v1030
    %v1155 = vadd.f32 %v1154, %v1038
    %v1156 = vadd.f32 %v1155, %v1046
    %v1157 = vrot.slane %v1156, 4
    %v1158 = vadd.f32 %v1156, %v1157
    %v1159 = vrot.slane %v1158, 2
    %v1160 = vadd.f32 %v1158, %v1159
    %v1161 = vrot.slane %v1160, 1
    %v1162 = vadd.f32 %v1160, %v1161
    %v1163 = vadd.f32 %v799, %v807
    %v1164 = vadd.f32 %v1163, %v815
    %v1165 = vadd.f32 %v1164, %v823
    %v1166 = vadd.f32 %v1165, %v831
    %v1167 = vadd.f32 %v1166, %v839
    %v1168 = vadd.f32 %v1167, %v847
    %v1169 = vadd.f32 %v1168, %v855
    %v1170 = vadd.f32 %v1169, %v863
    %v1171 = vadd.f32 %v1170, %v871
    %v1172 = vadd.f32 %v1171, %v879
    %v1173 = vadd.f32 %v1172, %v887
    %v1174 = vadd.f32 %v1173, %v895
    %v1175 = vadd.f32 %v1174, %v903
    %v1176 = vadd.f32 %v1175, %v911
    %v1177 = vadd.f32 %v1176, %v919
    %v1178 = vadd.f32 %v1177, %v927
    %v1179 = vadd.f32 %v1178, %v935
    %v1180 = vadd.f32 %v1179, %v943
    %v1181 = vadd.f32 %v1180, %v951
    %v1182 = vadd.f32 %v1181, %v959
    %v1183 = vadd.f32 %v1182, %v967
    %v1184 = vadd.f32 %v1183, %v975
    %v1185 = vadd.f32 %v1184, %v983
    %v1186 = vadd.f32 %v1185, %v991
    %v1187 = vadd.f32 %v1186, %v999
    %v1188 = vadd.f32 %v1187, %v1007
    %v1189 = vadd.f32 %v1188, %v1015
    %v1190 = vadd.f32 %v1189, %v1023
    %v1191 = vadd.f32 %v1190, %v1031
    %v1192 = vadd.f32 %v1191, %v1039
    %v1193 = vadd.f32 %v1192, %v1047
    %v1194 = vrot.slane %v1193, 4
    %v1195 = vadd.f32 %v1193, %v1194
    %v1196 = vrot.slane %v1195, 2
    %v1197 = vadd.f32 %v1195, %v1196
    %v1198 = vrot.slane %v1197, 1
    %v1199 = vadd.f32 %v1197, %v1198
    %v1200 = vadd.f32 %v800, %v808
    %v1201 = vadd.f32 %v1200, %v816
    %v1202 = vadd.f32 %v1201, %v824
    %v1203 = vadd.f32 %v1202, %v832
    %v1204 = vadd.f32 %v1203, %v840
    %v1205 = vadd.f32 %v1204, %v848
    %v1206 = vadd.f32 %v1205, %v856
    %v1207 = vadd.f32 %v1206, %v864
    %v1208 = vadd.f32 %v1207, %v872
    %v1209 = vadd.f32 %v1208, %v880
    %v1210 = vadd.f32 %v1209, %v888
    %v1211 = vadd.f32 %v1210, %v896
    %v1212 = vadd.f32 %v1211, %v904
    %v1213 = vadd.f32 %v1212, %v912
    %v1214 = vadd.f32 %v1213, %v920
    %v1215 = vadd.f32 %v1214, %v928
    %v1216 = vadd.f32 %v1215, %v936
    %v1217 = vadd.f32 %v1216, %v944
    %v1218 = vadd.f32 %v1217, %v952
    %v1219 = vadd.f32 %v1218, %v960
    %v1220 = vadd.f32 %v1219, %v968
    %v1221 = vadd.f32 %v1220, %v976
    %v1222 = vadd.f32 %v1221, %v984
    %v1223 = vadd.f32 %v1222, %v992
    %v1224 = vadd.f32 %v1223, %v1000
    %v1225 = vadd.f32 %v1224, %v1008
    %v1226 = vadd.f32 %v1225, %v1016
    %v1227 = vadd.f32 %v1226, %v1024
    %v1228 = vadd.f32 %v1227, %v1032
    %v1229 = vadd.f32 %v1228, %v1040
    %v1230 = vadd.f32 %v1229, %v1048
    %v1231 = vrot.slane %v1230, 4
    %v1232 = vadd.f32 %v1230, %v1231
    %v1233 = vrot.slane %v1232, 2
    %v1234 = vadd.f32 %v1232, %v1233
    %v1235 = vrot.slane %v1234, 1
    %v1236 = vadd.f32 %v1234, %v1235
    %v1237 = vadd.f32 %v801, %v809
    %v1238 = vadd.f32 %v1237, %v817
    %v1239 = vadd.f32 %v1238, %v825
    %v1240 = vadd.f32 %v1239, %v833
    %v1241 = vadd.f32 %v1240, %v841
    %v1242 = vadd.f32 %v1241, %v849
    %v1243 = vadd.f32 %v1242, %v857
    %v1244 = vadd.f32 %v1243, %v865
    %v1245 = vadd.f32 %v1244, %v873
    %v1246 = vadd.f32 %v1245, %v881
    %v1247 = vadd.f32 %v1246, %v889
    %v1248 = vadd.f32 %v1247, %v897
    %v1249 = vadd.f32 %v1248, %v905
    %v1250 = vadd.f32 %v1249, %v913
    %v1251 = vadd.f32 %v1250, %v921
    %v1252 = vadd.f32 %v1251, %v929
    %v1253 = vadd.f32 %v1252, %v937
    %v1254 = vadd.f32 %v1253, %v945
    %v1255 = vadd.f32 %v1254, %v953
    %v1256 = vadd.f32 %v1255, %v961
    %v1257 = vadd.f32 %v1256, %v969
    %v1258 = vadd.f32 %v1257, %v977
    %v1259 = vadd.f32 %v1258, %v985
    %v1260 = vadd.f32 %v1259, %v993
    %v1261 = vadd.f32 %v1260, %v1001
    %v1262 = vadd.f32 %v1261, %v1009
    %v1263 = vadd.f32 %v1262, %v1017
    %v1264 = vadd.f32 %v1263, %v1025
    %v1265 = vadd.f32 %v1264, %v1033
    %v1266 = vadd.f32 %v1265, %v1041
    %v1267 = vadd.f32 %v1266, %v1049
    %v1268 = vrot.slane %v1267, 4
    %v1269 = vadd.f32 %v1267, %v1268
    %v1270 = vrot.slane %v1269, 2
    %v1271 = vadd.f32 %v1269, %v1270
    %v1272 = vrot.slane %v1271, 1
    %v1273 = vadd.f32 %v1271, %v1272
    %v1274 = vadd.f32 %v802, %v810
    %v1275 = vadd.f32 %v1274, %v818
    %v1276 = vadd.f32 %v1275, %v826
    %v1277 = vadd.f32 %v1276, %v834
    %v1278 = vadd.f32 %v1277, %v842
    %v1279 = vadd.f32 %v1278, %v850
    %v1280 = vadd.f32 %v1279, %v858
    %v1281 = vadd.f32 %v1280, %v866
    %v1282 = vadd.f32 %v1281, %v874
    %v1283 = vadd.f32 %v1282, %v882
    %v1284 = vadd.f32 %v1283, %v890
    %v1285 = vadd.f32 %v1284, %v898
    %v1286 = vadd.f32 %v1285, %v906
    %v1287 = vadd.f32 %v1286, %v914
    %v1288 = vadd.f32 %v1287, %v922
    %v1289 = vadd.f32 %v1288, %v930
    %v1290 = vadd.f32 %v1289, %v938
    %v1291 = vadd.f32 %v1290, %v946
    %v1292 = vadd.f32 %v1291, %v954
    %v1293 = vadd.f32 %v1292, %v962
    %v1294 = vadd.f32 %v1293, %v970
    %v1295 = vadd.f32 %v1294, %v978
    %v1296 = vadd.f32 %v1295, %v986
    %v1297 = vadd.f32 %v1296, %v994
    %v1298 = vadd.f32 %v1297, %v1002
    %v1299 = vadd.f32 %v1298, %v1010
    %v1300 = vadd.f32 %v1299, %v1018
    %v1301 = vadd.f32 %v1300, %v1026
    %v1302 = vadd.f32 %v1301, %v1034
    %v1303 = vadd.f32 %v1302, %v1042
    %v1304 = vadd.f32 %v1303, %v1050
    %v1305 = vrot.slane %v1304, 4
    %v1306 = vadd.f32 %v1304, %v1305
    %v1307 = vrot.slane %v1306, 2
    %v1308 = vadd.f32 %v1306, %v1307
    %v1309 = vrot.slane %v1308, 1
    %v1310 = vadd.f32 %v1308, %v1309
    %v1311 = vadd.f32 %v803, %v811
    %v1312 = vadd.f32 %v1311, %v819
    %v1313 = vadd.f32 %v1312, %v827
    %v1314 = vadd.f32 %v1313, %v835
    %v1315 = vadd.f32 %v1314, %v843
    %v1316 = vadd.f32 %v1315, %v851
    %v1317 = vadd.f32 %v1316, %v859
    %v1318 = vadd.f32 %v1317, %v867
    %v1319 = vadd.f32 %v1318, %v875
    %v1320 = vadd.f32 %v1319, %v883
    %v1321 = vadd.f32 %v1320, %v891
    %v1322 = vadd.f32 %v1321, %v899
    %v1323 = vadd.f32 %v1322, %v907
    %v1324 = vadd.f32 %v1323, %v915
    %v1325 = vadd.f32 %v1324, %v923
    %v1326 = vadd.f32 %v1325, %v931
    %v1327 = vadd.f32 %v1326, %v939
    %v1328 = vadd.f32 %v1327, %v947
    %v1329 = vadd.f32 %v1328, %v955
    %v1330 = vadd.f32 %v1329, %v963
    %v1331 = vadd.f32 %v1330, %v971
    %v1332 = vadd.f32 %v1331, %v979
    %v1333 = vadd.f32 %v1332, %v987
    %v1334 = vadd.f32 %v1333, %v995
    %v1335 = vadd.f32 %v1334, %v1003
    %v1336 = vadd.f32 %v1335, %v1011
    %v1337 = vadd.f32 %v1336, %v1019
    %v1338 = vadd.f32 %v1337, %v1027
    %v1339 = vadd.f32 %v1338, %v1035
    %v1340 = vadd.f32 %v1339, %v1043
    %v1341 = vadd.f32 %v1340, %v1051
    %v1342 = vrot.slane %v1341, 4
    %v1343 = vadd.f32 %v1341, %v1342
    %v1344 = vrot.slane %v1343, 2
    %v1345 = vadd.f32 %v1343, %v1344
    %v1346 = vrot.slane %v1345, 1
    %v1347 = vadd.f32 %v1345, %v1346
    %v1348 = vrcp.pop 256.0
    %v1349 = vmul.f32 %v1088, %v1348
    %v1350 = vmul.f32 %v1125, %v1348
    %v1351 = vmul.f32 %v1162, %v1348
    %v1352 = vmul.f32 %v1199, %v1348
    %v1353 = vmul.f32 %v1236, %v1348
    %v1354 = vmul.f32 %v1273, %v1348
    %v1355 = vmul.f32 %v1310, %v1348
    %v1356 = vmul.f32 %v1347, %v1348
    %v1357 = vmax.f32 %v300, %v302
    %v1358 = vmax.f32 %v364, %v366
    %v1359 = vmax.f32 %v428, %v430
    %v1360 = vmax.f32 %v492, %v494
    %v1361 = vmax.f32 %v556, %v558
    %v1362 = vmax.f32 %v620, %v622
    %v1363 = vmax.f32 %v684, %v686
    %v1364 = vmax.f32 %v748, %v750
    %v1365 = vmax.f32 %v301, %v303
    %v1366 = vmax.f32 %v365, %v367
    %v1367 = vmax.f32 %v429, %v431
    %v1368 = vmax.f32 %v493, %v495
    %v1369 = vmax.f32 %v557, %v559
    %v1370 = vmax.f32 %v621, %v623
    %v1371 = vmax.f32 %v685, %v687
    %v1372 = vmax.f32 %v749, %v751
    %vm1373 = vcmask 1041408
    %v1374 = vsel %vm1373, %v1357, -inf
    %v1375 = vrot.slane %v1374, 4
    %v1376 = vmax.f32 %v1374, %v1375
    %v1377 = vrot.slane %v1376, 2
    %v1378 = vmax.f32 %v1376, %v1377
    %v1379 = vrot.slane %v1378, 1
    %v1380 = vmax.f32 %v1378, %v1379
    %v1381 = vsel %vm1373, %v1358, -inf
    %v1382 = vrot.slane %v1381, 4
    %v1383 = vmax.f32 %v1381, %v1382
    %v1384 = vrot.slane %v1383, 2
    %v1385 = vmax.f32 %v1383, %v1384
    %v1386 = vrot.slane %v1385, 1
    %v1387 = vmax.f32 %v1385, %v1386
    %v1388 = vsel %vm1373, %v1359, -inf
    %v1389 = vrot.slane %v1388, 4
    %v1390 = vmax.f32 %v1388, %v1389
    %v1391 = vrot.slane %v1390, 2
    %v1392 = vmax.f32 %v1390, %v1391
    %v1393 = vrot.slane %v1392, 1
    %v1394 = vmax.f32 %v1392, %v1393
    %v1395 = vsel %vm1373, %v1360, -inf
    %v1396 = vrot.slane %v1395, 4
    %v1397 = vmax.f32 %v1395, %v1396
    %v1398 = vrot.slane %v1397, 2
    %v1399 = vmax.f32 %v1397, %v1398
    %v1400 = vrot.slane %v1399, 1
    %v1401 = vmax.f32 %v1399, %v1400
    %v1402 = vsel %vm1373, %v1361, -inf
    %v1403 = vrot.slane %v1402, 4
    %v1404 = vmax.f32 %v1402, %v1403
    %v1405 = vrot.slane %v1404, 2
    %v1406 = vmax.f32 %v1404, %v1405
    %v1407 = vrot.slane %v1406, 1
    %v1408 = vmax.f32 %v1406, %v1407
    %v1409 = vsel %vm1373, %v1362, -inf
    %v1410 = vrot.slane %v1409, 4
    %v1411 = vmax.f32 %v1409, %v1410
    %v1412 = vrot.slane %v1411, 2
    %v1413 = vmax.f32 %v1411, %v1412
    %v1414 = vrot.slane %v1413, 1
    %v1415 = vmax.f32 %v1413, %v1414
    %v1416 = vsel %vm1373, %v1363, -inf
    %v1417 = vrot.slane %v1416, 4
    %v1418 = vmax.f32 %v1416, %v1417
    %v1419 = vrot.slane %v1418, 2
    %v1420 = vmax.f32 %v1418, %v1419
    %v1421 = vrot.slane %v1420, 1
    %v1422 = vmax.f32 %v1420, %v1421
    %v1423 = vsel %vm1373, %v1364, -inf
    %v1424 = vrot.slane %v1423, 4
    %v1425 = vmax.f32 %v1423, %v1424
    %v1426 = vrot.slane %v1425, 2
    %v1427 = vmax.f32 %v1425, %v1426
    %v1428 = vrot.slane %v1427, 1
    %v1429 = vmax.f32 %v1427, %v1428
    %vm1430 = vcmask 1044482
    %v1431 = vsel %vm1430, %v1357, -inf
    %v1432 = vrot.slane %v1431, 4
    %v1433 = vmax.f32 %v1431, %v1432
    %v1434 = vrot.slane %v1433, 2
    %v1435 = vmax.f32 %v1433, %v1434
    %v1436 = vrot.slane %v1435, 1
    %v1437 = vmax.f32 %v1435, %v1436
    %v1438 = vsel %vm1430, %v1358, -inf
    %v1439 = vrot.slane %v1438, 4
    %v1440 = vmax.f32 %v1438, %v1439
    %v1441 = vrot.slane %v1440, 2
    %v1442 = vmax.f32 %v1440, %v1441
    %v1443 = vrot.slane %v1442, 1
    %v1444 = vmax.f32 %v1442, %v1443
    %v1445 = vsel %vm1430, %v1359, -inf
    %v1446 = vrot.slane %v1445, 4
    %v1447 = vmax.f32 %v1445, %v1446
    %v1448 = vrot.slane %v1447, 2
    %v1449 = vmax.f32 %v1447, %v1448
    %v1450 = vrot.slane %v1449, 1
    %v1451 = vmax.f32 %v1449, %v1450
    %v1452 = vsel %vm1430, %v1360, -inf
    %v1453 = vrot.slane %v1452, 4
    %v1454 = vmax.f32 %v1452, %v1453
    %v1455 = vrot.slane %v1454, 2
    %v1456 = vmax.f32 %v1454, %v1455
    %v1457 = vrot.slane %v1456, 1
    %v1458 = vmax.f32 %v1456, %v1457
    %v1459 = vsel %vm1430, %v1361, -inf
    %v1460 = vrot.slane %v1459, 4
    %v1461 = vmax.f32 %v1459, %v1460
    %v1462 = vrot.slane %v1461, 2
    %v1463 = vmax.f32 %v1461, %v1462
    %v1464 = vrot.slane %v1463, 1
    %v1465 = vmax.f32 %v1463, %v1464
    %v1466 = vsel %vm1430, %v1362, -inf
    %v1467 = vrot.slane %v1466, 4
    %v1468 = vmax.f32 %v1466, %v1467
    %v1469 = vrot.slane %v1468, 2
    %v1470 = vmax.f32 %v1468, %v1469
    %v1471 = vrot.slane %v1470, 1
    %v1472 = vmax.f32 %v1470, %v1471
    %v1473 = vsel %vm1430, %v1363, -inf
    %v1474 = vrot.slane %v1473, 4
    %v1475 = vmax.f32 %v1473, %v1474
    %v1476 = vrot.slane %v1475, 2
    %v1477 = vmax.f32 %v1475, %v1476
    %v1478 = vrot.slane %v1477, 1
    %v1479 = vmax.f32 %v1477, %v1478
    %v1480 = vsel %vm1430, %v1364, -inf
    %v1481 = vrot.slane %v1480, 4
    %v1482 = vmax.f32 %v1480, %v1481
    %v1483 = vrot.slane %v1482, 2
    %v1484 = vmax.f32 %v1482, %v1483
    %v1485 = vrot.slane %v1484, 1
    %v1486 = vmax.f32 %v1484, %v1485
    %vm1487 = vcmask 1047557
    %v1488 = vsel %vm1487, %v1357, -inf
    %v1489 = vrot.slane %v1488, 4
    %v1490 = vmax.f32 %v1488, %v1489
    %v1491 = vrot.slane %v1490, 2
    %v1492 = vmax.f32 %v1490, %v1491
    %v1493 = vrot.slane %v1492, 1
    %v1494 = vmax.f32 %v1492, %v1493
    %v1495 = vsel %vm1487, %v1358, -inf
    %v1496 = vrot.slane %v1495, 4
    %v1497 = vmax.f32 %v1495, %v1496
    %v1498 = vrot.slane %v1497, 2
    %v1499 = vmax.f32 %v1497, %v1498
    %v1500 = vrot.slane %v1499, 1
    %v1501 = vmax.f32 %v1499, %v1500
    %v1502 = vsel %vm1487, %v1359, -inf
    %v1503 = vrot.slane %v1502, 4
    %v1504 = vmax.f32 %v1502, %v1503
    %v1505 = vrot.slane %v1504, 2
    %v1506 = vmax.f32 %v1504, %v1505
    %v1507 = vrot.slane %v1506, 1
    %v1508 = vmax.f32 %v1506, %v1507
    %v1509 = vsel %vm1487, %v1360, -inf
    %v1510 = vrot.slane %v1509, 4
    %v1511 = vmax.f32 %v1509, %v1510
    %v1512 = vrot.slane %v1511, 2
    %v1513 = vmax.f32 %v1511, %v1512
    %v1514 = vrot.slane %v1513, 1
    %v1515 = vmax.f32 %v1513, %v1514
    %v1516 = vsel %vm1487, %v1361, -inf
    %v1517 = vrot.slane %v1516, 4
    %v1518 = vmax.f32 %v1516, %v1517
    %v1519 = vrot.slane %v1518, 2
    %v1520 = vmax.f32 %v1518, %v1519
    %v1521 = vrot.slane %v1520, 1
    %v1522 = vmax.f32 %v1520, %v1521
    %v1523 = vsel %vm1487, %v1362, -inf
    %v1524 = vrot.slane %v1523, 4
    %v1525 = vmax.f32 %v1523, %v1524
    %v1526 = vrot.slane %v1525, 2
    %v1527 = vmax.f32 %v1525, %v1526
    %v1528 = vrot.slane %v1527, 1
    %v1529 = vmax.f32 %v1527, %v1528
    %v1530 = vsel %vm1487, %v1363, -inf
    %v1531 = vrot.slane %v1530, 4
    %v1532 = vmax.f32 %v1530, %v1531
    %v1533 = vrot.slane %v1532, 2
    %v1534 = vmax.f32 %v1532, %v1533
    %v1535 = vrot.slane %v1534, 1
    %v1536 = vmax.f32 %v1534, %v1535
    %v1537 = vsel %vm1487, %v1364, -inf
    %v1538 = vrot.slane %v1537, 4
    %v1539 = vmax.f32 %v1537, %v1538
    %v1540 = vrot.slane %v1539, 2
    %v1541 = vmax.f32 %v1539, %v1540
    %v1542 = vrot.slane %v1541, 1
    %v1543 = vmax.f32 %v1541, %v1542
    %vm1544 = vcmask 1042432
    %v1545 = vsel %vm1544, %v1365, -inf
    %v1546 = vrot.slane %v1545, 4
    %v1547 = vmax.f32 %v1545, %v1546
    %v1548 = vrot.slane %v1547, 2
    %v1549 = vmax.f32 %v1547, %v1548
    %v1550 = vrot.slane %v1549, 1
    %v1551 = vmax.f32 %v1549, %v1550
    %v1552 = vsel %vm1544, %v1366, -inf
    %v1553 = vrot.slane %v1552, 4
    %v1554 = vmax.f32 %v1552, %v1553
    %v1555 = vrot.slane %v1554, 2
    %v1556 = vmax.f32 %v1554, %v1555
    %v1557 = vrot.slane %v1556, 1
    %v1558 = vmax.f32 %v1556, %v1557
    %v1559 = vsel %vm1544, %v1367, -inf
    %v1560 = vrot.slane %v1559, 4
    %v1561 = vmax.f32 %v1559, %v1560
    %v1562 = vrot.slane %v1561, 2
    %v1563 = vmax.f32 %v1561, %v1562
    %v1564 = vrot.slane %v1563, 1
    %v1565 = vmax.f32 %v1563, %v1564
    %v1566 = vsel %vm1544, %v1368, -inf
    %v1567 = vrot.slane %v1566, 4
    %v1568 = vmax.f32 %v1566, %v1567
    %v1569 = vrot.slane %v1568, 2
    %v1570 = vmax.f32 %v1568, %v1569
    %v1571 = vrot.slane %v1570, 1
    %v1572 = vmax.f32 %v1570, %v1571
    %v1573 = vsel %vm1544, %v1369, -inf
    %v1574 = vrot.slane %v1573, 4
    %v1575 = vmax.f32 %v1573, %v1574
    %v1576 = vrot.slane %v1575, 2
    %v1577 = vmax.f32 %v1575, %v1576
    %v1578 = vrot.slane %v1577, 1
    %v1579 = vmax.f32 %v1577, %v1578
    %v1580 = vsel %vm1544, %v1370, -inf
    %v1581 = vrot.slane %v1580, 4
    %v1582 = vmax.f32 %v1580, %v1581
    %v1583 = vrot.slane %v1582, 2
    %v1584 = vmax.f32 %v1582, %v1583
    %v1585 = vrot.slane %v1584, 1
    %v1586 = vmax.f32 %v1584, %v1585
    %v1587 = vsel %vm1544, %v1371, -inf
    %v1588 = vrot.slane %v1587, 4
    %v1589 = vmax.f32 %v1587, %v1588
    %v1590 = vrot.slane %v1589, 2
    %v1591 = vmax.f32 %v1589, %v1590
    %v1592 = vrot.slane %v1591, 1
    %v1593 = vmax.f32 %v1591, %v1592
    %v1594 = vsel %vm1544, %v1372, -inf
    %v1595 = vrot.slane %v1594, 4
    %v1596 = vmax.f32 %v1594, %v1595
    %v1597 = vrot.slane %v1596, 2
    %v1598 = vmax.f32 %v1596, %v1597
    %v1599 = vrot.slane %v1598, 1
    %v1600 = vmax.f32 %v1598, %v1599
    %vm1601 = vcmask 1045507
    %v1602 = vsel %vm1601, %v1365, -inf
    %v1603 = vrot.slane %v1602, 4
    %v1604 = vmax.f32 %v1602, %v1603
    %v1605 = vrot.slane %v1604, 2
    %v1606 = vmax.f32 %v1604, %v1605
    %v1607 = vrot.slane %v1606, 1
    %v1608 = vmax.f32 %v1606, %v1607
    %v1609 = vsel %vm1601, %v1366, -inf
    %v1610 = vrot.slane %v1609, 4
    %v1611 = vmax.f32 %v1609, %v1610
    %v1612 = vrot.slane %v1611, 2
    %v1613 = vmax.f32 %v1611, %v1612
    %v1614 = vrot.slane %v1613, 1
    %v1615 = vmax.f32 %v1613, %v1614
    %v1616 = vsel %vm1601, %v1367, -inf
    %v1617 = vrot.slane %v1616, 4
    %v1618 = vmax.f32 %v1616, %v1617
    %v1619 = vrot.slane %v1618, 2
    %v1620 = vmax.f32 %v1618, %v1619
    %v1621 = vrot.slane %v1620, 1
    %v1622 = vmax.f32 %v1620, %v1621
    %v1623 = vsel %vm1601, %v1368, -inf
    %v1624 = vrot.slane %v1623, 4
    %v1625 = vmax.f32 %v1623, %v1624
    %v1626 = vrot.slane %v1625, 2
    %v1627 = vmax.f32 %v1625, %v1626
    %v1628 = vrot.slane %v1627, 1
    %v1629 = vmax.f32 %v1627, %v1628
    %v1630 = vsel %vm1601, %v1369, -inf
    %v1631 = vrot.slane %v1630, 4
    %v1632 = vmax.f32 %v1630, %v1631
    %v1633 = vrot.slane %v1632, 2
    %v1634 = vmax.f32 %v1632, %v1633
    %v1635 = vrot.slane %v1634, 1
    %v1636 = vmax.f32 %v1634, %v1635
    %v1637 = vsel %vm1601, %v1370, -inf
    %v1638 = vrot.slane %v1637, 4
    %v1639 = vmax.f32 %v1637, %v1638
    %v1640 = vrot.slane %v1639, 2
    %v1641 = vmax.f32 %v1639, %v1640
    %v1642 = vrot.slane %v1641, 1
    %v1643 = vmax.f32 %v1641, %v1642
    %v1644 = vsel %vm1601, %v1371, -inf
    %v1645 = vrot.slane %v1644, 4
    %v1646 = vmax.f32 %v1644, %v1645
    %v1647 = vrot.slane %v1646, 2
    %v1648 = vmax.f32 %v1646, %v1647
    %v1649 = vrot.slane %v1648, 1
    %v1650 = vmax.f32 %v1648, %v1649
    %v1651 = vsel %vm1601, %v1372, -inf
    %v1652 = vrot.slane %v1651, 4
    %v1653 = vmax.f32 %v1651, %v1652
    %v1654 = vrot.slane %v1653, 2
    %v1655 = vmax.f32 %v1653, %v1654
    %v1656 = vrot.slane %v1655, 1
    %v1657 = vmax.f32 %v1655, %v1656
    %vm1658 = vcmask 1047558
    %v1659 = vsel %vm1658, %v1365, -inf
    %v1660 = vrot.slane %v1659, 4
    %v1661 = vmax.f32 %v1659, %v1660
    %v1662 = vrot.slane %v1661, 2
    %v1663 = vmax.f32 %v1661, %v1662
    %v1664 = vrot.slane %v1663, 1
    %v1665 = vmax.f32 %v1663, %v1664
    %v1666 = vsel %vm1658, %v1366, -inf
    %v1667 = vrot.slane %v1666, 4
    %v1668 = vmax.f32 %v1666, %v1667
    %v1669 = vrot.slane %v1668, 2
    %v1670 = vmax.f32 %v1668, %v1669
    %v1671 = vrot.slane %v1670, 1
    %v1672 = vmax.f32 %v1670, %v1671
    %v1673 = vsel %vm1658, %v1367, -inf
    %v1674 = vrot.slane %v1673, 4
    %v1675 = vmax.f32 %v1673, %v1674
    %v1676 = vrot.slane %v1675, 2
    %v1677 = vmax.f32 %v1675, %v1676
    %v1678 = vrot.slane %v1677, 1
    %v1679 = vmax.f32 %v1677, %v1678
    %v1680 = vsel %vm1658, %v1368, -inf
    %v1681 = vrot.slane %v1680, 4
    %v1682 = vmax.f32 %v1680, %v1681
    %v1683 = vrot.slane %v1682, 2
    %v1684 = vmax.f32 %v1682, %v1683
    %v1685 = vrot.slane %v1684, 1
    %v1686 = vmax.f32 %v1684, %v1685
    %v1687 = vsel %vm1658, %v1369, -inf
    %v1688 = vrot.slane %v1687, 4
    %v1689 = vmax.f32 %v1687, %v1688
    %v1690 = vrot.slane %v1689, 2
    %v1691 = vmax.f32 %v1689, %v1690
    %v1692 = vrot.slane %v1691, 1
    %v1693 = vmax.f32 %v1691, %v1692
    %v1694 = vsel %vm1658, %v1370, -inf
    %v1695 = vrot.slane %v1694, 4
    %v1696 = vmax.f32 %v1694, %v1695
    %v1697 = vrot.slane %v1696, 2
    %v1698 = vmax.f32 %v1696, %v1697
    %v1699 = vrot.slane %v1698, 1
    %v1700 = vmax.f32 %v1698, %v1699
    %v1701 = vsel %vm1658, %v1371, -inf
    %v1702 = vrot.slane %v1701, 4
    %v1703 = vmax.f32 %v1701, %v1702
    %v1704 = vrot.slane %v1703, 2
    %v1705 = vmax.f32 %v1703, %v1704
    %v1706 = vrot.slane %v1705, 1
    %v1707 = vmax.f32 %v1705, %v1706
    %v1708 = vsel %vm1658, %v1372, -inf
    %v1709 = vrot.slane %v1708, 4
    %v1710 = vmax.f32 %v1708, %v1709
    %v1711 = vrot.slane %v1710, 2
    %v1712 = vmax.f32 %v1710, %v1711
    %v1713 = vrot.slane %v1712, 1
    %v1714 = vmax.f32 %v1712, %v1713
    %v1715 = vadd.f32 %v1380, %v1437
    %v1716 = vadd.f32 %v1387, %v1444
    %v1717 = vadd.f32 %v1394, %v1451
    %v1718 = vadd.f32 %v1401, %v1458
    %v1719 = vadd.f32 %v1408, %v1465
    %v1720 = vadd.f32 %v1415, %v1472
    %v1721 = vadd.f32 %v1422, %v1479
    %v1722 = vadd.f32 %v1429, %v1486
    %v1723 = vadd.f32 %v1494, %v1551
    %v1724 = vadd.f32 %v1501, %v1558
    %v1725 = vadd.f32 %v1508, %v1565
    %v1726 = vadd.f32 %v1515, %v1572
    %v1727 = vadd.f32 %v1522, %v1579
    %v1728 = vadd.f32 %v1529, %v1586
    %v1729 = vadd.f32 %v1536, %v1593
    %v1730 = vadd.f32 %v1543, %v1600
    %v1731 = vadd.f32 %v1715, %v1723
    %v1732 = vadd.f32 %v1716, %v1724
    %v1733 = vadd.f32 %v1717, %v1725
    %v1734 = vadd.f32 %v1718, %v1726
    %v1735 = vadd.f32 %v1719, %v1727
    %v1736 = vadd.f32 %v1720, %v1728
    %v1737 = vadd.f32 %v1721, %v1729
    %v1738 = vadd.f32 %v1722, %v1730
    %v1739 = vadd.f32 %v1608, %v1665
    %v1740 = vadd.f32 %v1615, %v1672
    %v1741 = vadd.f32 %v1622, %v1679
    %v1742 = vadd.f32 %v1629, %v1686
    %v1743 = vadd.f32 %v1636, %v1693
    %v1744 = vadd.f32 %v1643, %v1700
    %v1745 = vadd.f32 %v1650, %v1707
    %v1746 = vadd.f32 %v1657, %v1714
    %v1747 = vadd.f32 %v1731, %v1739
    %v1748 = vadd.f32 %v1732, %v1740
    %v1749 = vadd.f32 %v1733, %v1741
    %v1750 = vadd.f32 %v1734, %v1742
    %v1751 = vadd.f32 %v1735, %v1743
    %v1752 = vadd.f32 %v1736, %v1744
    %v1753 = vadd.f32 %v1737, %v1745
    %v1754 = vadd.f32 %v1738, %v1746
    %v1755 = vmax.f32 %v304, %v306
    %v1756 = vmax.f32 %v1755, %v308
    %v1757 = vmax.f32 %v368, %v370
    %v1758 = vmax.f32 %v1757, %v372
    %v1759 = vmax.f32 %v432, %v434
    %v1760 = vmax.f32 %v1759, %v436
    %v1761 = vmax.f32 %v496, %v498
    %v1762 = vmax.f32 %v1761, %v500
    %v1763 = vmax.f32 %v560, %v562
    %v1764 = vmax.f32 %v1763, %v564
    %v1765 = vmax.f32 %v624, %v626
    %v1766 = vmax.f32 %v1765, %v628
    %v1767 = vmax.f32 %v688, %v690
    %v1768 = vmax.f32 %v1767, %v692
    %v1769 = vmax.f32 %v752, %v754
    %v1770 = vmax.f32 %v1769, %v756
    %v1771 = vmax.f32 %v305, %v307
    %v1772 = vmax.f32 %v1771, %v309
    %v1773 = vmax.f32 %v369, %v371
    %v1774 = vmax.f32 %v1773, %v373
    %v1775 = vmax.f32 %v433, %v435
    %v1776 = vmax.f32 %v1775, %v437
    %v1777 = vmax.f32 %v497, %v499
    %v1778 = vmax.f32 %v1777, %v501
    %v1779 = vmax.f32 %v561, %v563
    %v1780 = vmax.f32 %v1779, %v565
    %v1781 = vmax.f32 %v625, %v627
    %v1782 = vmax.f32 %v1781, %v629
    %v1783 = vmax.f32 %v689, %v691
    %v1784 = vmax.f32 %v1783, %v693
    %v1785 = vmax.f32 %v753, %v755
    %v1786 = vmax.f32 %v1785, %v757
    %v1787 = vsel %vm1373, %v1756, -inf
    %v1788 = vrot.slane %v1787, 4
    %v1789 = vmax.f32 %v1787, %v1788
    %v1790 = vrot.slane %v1789, 2
    %v1791 = vmax.f32 %v1789, %v1790
    %v1792 = vrot.slane %v1791, 1
    %v1793 = vmax.f32 %v1791, %v1792
    %v1794 = vsel %vm1373, %v1758, -inf
    %v1795 = vrot.slane %v1794, 4
    %v1796 = vmax.f32 %v1794, %v1795
    %v1797 = vrot.slane %v1796, 2
    %v1798 = vmax.f32 %v1796, %v1797
    %v1799 = vrot.slane %v1798, 1
    %v1800 = vmax.f32 %v1798, %v1799
    %v1801 = vsel %vm1373, %v1760, -inf
    %v1802 = vrot.slane %v1801, 4
    %v1803 = vmax.f32 %v1801, %v1802
    %v1804 = vrot.slane %v1803, 2
    %v1805 = vmax.f32 %v1803, %v1804
    %v1806 = vrot.slane %v1805, 1
    %v1807 = vmax.f32 %v1805, %v1806
    %v1808 = vsel %vm1373, %v1762, -inf
    %v1809 = vrot.slane %v1808, 4
    %v1810 = vmax.f32 %v1808, %v1809
    %v1811 = vrot.slane %v1810, 2
    %v1812 = vmax.f32 %v1810, %v1811
    %v1813 = vrot.slane %v1812, 1
    %v1814 = vmax.f32 %v1812, %v1813
    %v1815 = vsel %vm1373, %v1764, -inf
    %v1816 = vrot.slane %v1815, 4
    %v1817 = vmax.f32 %v1815, %v1816
    %v1818 = vrot.slane %v1817, 2
    %v1819 = vmax.f32 %v1817, %v1818
    %v1820 = vrot.slane %v1819, 1
    %v1821 = vmax.f32 %v1819, %v1820
    %v1822 = vsel %vm1373, %v1766, -inf
    %v1823 = vrot.slane %v1822, 4
    %v1824 = vmax.f32 %v1822, %v1823
    %v1825 = vrot.slane %v1824, 2
    %v1826 = vmax.f32 %v1824, %v1825
    %v1827 = vrot.slane %v1826, 1
    %v1828 = vmax.f32 %v1826, %v1827
    %v1829 = vsel %vm1373, %v1768, -inf
    %v1830 = vrot.slane %v1829, 4
    %v1831 = vmax.f32 %v1829, %v1830
    %v1832 = vrot.slane %v1831, 2
    %v1833 = vmax.f32 %v1831, %v1832
    %v1834 = vrot.slane %v1833, 1
    %v1835 = vmax.f32 %v1833, %v1834
    %v1836 = vsel %vm1373, %v1770, -inf
    %v1837 = vrot.slane %v1836, 4
    %v1838 = vmax.f32 %v1836, %v1837
    %v1839 = vrot.slane %v1838, 2
    %v1840 = vmax.f32 %v1838, %v1839
    %v1841 = vrot.slane %v1840, 1
    %v1842 = vmax.f32 %v1840, %v1841
    %v1843 = vsel %vm1430, %v1756, -inf
    %v1844 = vrot.slane %v1843, 4
    %v1845 = vmax.f32 %v1843, %v1844
    %v1846 = vrot.slane %v1845, 2
    %v1847 = vmax.f32 %v1845, %v1846
    %v1848 = vrot.slane %v1847, 1
    %v1849 = vmax.f32 %v1847, %v1848
    %v1850 = vsel %vm1430, %v1758, -inf
    %v1851 = vrot.slane %v1850, 4
    %v1852 = vmax.f32 %v1850, %v1851
    %v1853 = vrot.slane %v1852, 2
    %v1854 = vmax.f32 %v1852, %v1853
    %v1855 = vrot.slane %v1854, 1
    %v1856 = vmax.f32 %v1854, %v1855
    %v1857 = vsel %vm1430, %v1760, -inf
    %v1858 = vrot.slane %v1857, 4
    %v1859 = vmax.f32 %v1857, %v1858
    %v1860 = vrot.slane %v1859, 2
    %v1861 = vmax.f32 %v1859, %v1860
    %v1862 = vrot.slane %v1861, 1
    %v1863 = vmax.f32 %v1861, %v1862
    %v1864 = vsel %vm1430, %v1762, -inf
    %v1865 = vrot.slane %v1864, 4
    %v1866 = vmax.f32 %v1864, %v1865
    %v1867 = vrot.slane %v1866, 2
    %v1868 = vmax.f32 %v1866, %v1867
    %v1869 = vrot.slane %v1868, 1
    %v1870 = vmax.f32 %v1868, %v1869
    %v1871 = vsel %vm1430, %v1764, -inf
    %v1872 = vrot.slane %v1871, 4
    %v1873 = vmax.f32 %v1871, %v1872
    %v1874 = vrot.slane %v1873, 2
    %v1875 = vmax.f32 %v1873, %v1874
    %v1876 = vrot.slane %v1875, 1
    %v1877 = vmax.f32 %v1875, %v1876
    %v1878 = vsel %vm1430, %v1766, -inf
    %v1879 = vrot.slane %v1878, 4
    %v1880 = vmax.f32 %v1878, %v1879
    %v1881 = vrot.slane %v1880, 2
    %v1882 = vmax.f32 %v1880, %v1881
    %v1883 = vrot.slane %v1882, 1
    %v1884 = vmax.f32 %v1882, %v1883
    %v1885 = vsel %vm1430, %v1768, -inf
    %v1886 = vrot.slane %v1885, 4
    %v1887 = vmax.f32 %v1885, %v1886
    %v1888 = vrot.slane %v1887, 2
    %v1889 = vmax.f32 %v1887, %v1888
    %v1890 = vrot.slane %v1889, 1
    %v1891 = vmax.f32 %v1889, %v1890
    %v1892 = vsel %vm1430, %v1770, -inf
    %v1893 = vrot.slane %v1892, 4
    %v1894 = vmax.f32 %v1892, %v1893
    %v1895 = vrot.slane %v1894, 2
    %v1896 = vmax.f32 %v1894, %v1895
    %v1897 = vrot.slane %v1896, 1
    %v1898 = vmax.f32 %v1896, %v1897
    %v1899 = vsel %vm1487, %v1756, -inf
    %v1900 = vrot.slane %v1899, 4
    %v1901 = vmax.f32 %v1899, %v1900
    %v1902 = vrot.slane %v1901, 2
    %v1903 = vmax.f32 %v1901, %v1902
    %v1904 = vrot.slane %v1903, 1
    %v1905 = vmax.f32 %v1903, %v1904
    %v1906 = vsel %vm1487, %v1758, -inf
    %v1907 = vrot.slane %v1906, 4
    %v1908 = vmax.f32 %v1906, %v1907
    %v1909 = vrot.slane %v1908, 2
    %v1910 = vmax.f32 %v1908, %v1909
    %v1911 = vrot.slane %v1910, 1
    %v1912 = vmax.f32 %v1910, %v1911
    %v1913 = vsel %vm1487, %v1760, -inf
    %v1914 = vrot.slane %v1913, 4
    %v1915 = vmax.f32 %v1913, %v1914
    %v1916 = vrot.slane %v1915, 2
    %v1917 = vmax.f32 %v1915, %v1916
    %v1918 = vrot.slane %v1917, 1
    %v1919 = vmax.f32 %v1917, %v1918
    %v1920 = vsel %vm1487, %v1762, -inf
    %v1921 = vrot.slane %v1920, 4
    %v1922 = vmax.f32 %v1920, %v1921
    %v1923 = vrot.slane %v1922, 2
    %v1924 = vmax.f32 %v1922, %v1923
    %v1925 = vrot.slane %v1924, 1
    %v1926 = vmax.f32 %v1924, %v1925
    %v1927 = vsel %vm1487, %v1764, -inf
    %v1928 = vrot.slane %v1927, 4
    %v1929 = vmax.f32 %v1927, %v1928
    %v1930 = vrot.slane %v1929, 2
    %v1931 = vmax.f32 %v1929, %v1930
    %v1932 = vrot.slane %v1931, 1
    %v1933 = vmax.f32 %v1931, %v1932
    %v1934 = vsel %vm1487, %v1766, -inf
    %v1935 = vrot.slane %v1934, 4
    %v1936 = vmax.f32 %v1934, %v1935
    %v1937 = vrot.slane %v1936, 2
    %v1938 = vmax.f32 %v1936, %v1937
    %v1939 = vrot.slane %v1938, 1
    %v1940 = vmax.f32 %v1938, %v1939
    %v1941 = vsel %vm1487, %v1768, -inf
    %v1942 = vrot.slane %v1941, 4
    %v1943 = vmax.f32 %v1941, %v1942
    %v1944 = vrot.slane %v1943, 2
    %v1945 = vmax.f32 %v1943, %v1944
    %v1946 = vrot.slane %v1945, 1
    %v1947 = vmax.f32 %v1945, %v1946
    %v1948 = vsel %vm1487, %v1770, -inf
    %v1949 = vrot.slane %v1948, 4
    %v1950 = vmax.f32 %v1948, %v1949
    %v1951 = vrot.slane %v1950, 2
    %v1952 = vmax.f32 %v1950, %v1951
    %v1953 = vrot.slane %v1952, 1
    %v1954 = vmax.f32 %v1952, %v1953
    %v1955 = vsel %vm1544, %v1772, -inf
    %v1956 = vrot.slane %v1955, 4
    %v1957 = vmax.f32 %v1955, %v1956
    %v1958 = vrot.slane %v1957, 2
    %v1959 = vmax.f32 %v1957, %v1958
    %v1960 = vrot.slane %v1959, 1
    %v1961 = vmax.f32 %v1959, %v1960
    %v1962 = vsel %vm1544, %v1774, -inf
    %v1963 = vrot.slane %v1962, 4
    %v1964 = vmax.f32 %v1962, %v1963
    %v1965 = vrot.slane %v1964, 2
    %v1966 = vmax.f32 %v1964, %v1965
    %v1967 = vrot.slane %v1966, 1
    %v1968 = vmax.f32 %v1966, %v1967
    %v1969 = vsel %vm1544, %v1776, -inf
    %v1970 = vrot.slane %v1969, 4
    %v1971 = vmax.f32 %v1969, %v1970
    %v1972 = vrot.slane %v1971, 2
    %v1973 = vmax.f32 %v1971, %v1972
    %v1974 = vrot.slane %v1973, 1
    %v1975 = vmax.f32 %v1973, %v1974
    %v1976 = vsel %vm1544, %v1778, -inf
    %v1977 = vrot.slane %v1976, 4
    %v1978 = vmax.f32 %v1976, %v1977
    %v1979 = vrot.slane %v1978, 2
    %v1980 = vmax.f32 %v1978, %v1979
    %v1981 = vrot.slane %v1980, 1
    %v1982 = vmax.f32 %v1980, %v1981
    %v1983 = vsel %vm1544, %v1780, -inf
    %v1984 = vrot.slane %v1983, 4
    %v1985 = vmax.f32 %v1983, %v1984
    %v1986 = vrot.slane %v1985, 2
    %v1987 = vmax.f32 %v1985, %v1986
    %v1988 = vrot.slane %v1987, 1
    %v1989 = vmax.f32 %v1987, %v1988
    %v1990 = vsel %vm1544, %v1782, -inf
    %v1991 = vrot.slane %v1990, 4
    %v1992 = vmax.f32 %v1990, %v1991
    %v1993 = vrot.slane %v1992, 2
    %v1994 = vmax.f32 %v1992, %v1993
    %v1995 = vrot.slane %v1994, 1
    %v1996 = vmax.f32 %v1994, %v1995
    %v1997 = vsel %vm1544, %v1784, -inf
    %v1998 = vrot.slane %v1997, 4
    %v1999 = vmax.f32 %v1997, %v1998
    %v2000 = vrot.slane %v1999, 2
    %v2001 = vmax.f32 %v1999, %v2000
    %v2002 = vrot.slane %v2001, 1
    %v2003 = vmax.f32 %v2001, %v2002
    %v2004 = vsel %vm1544, %v1786, -inf
    %v2005 = vrot.slane %v2004, 4
    %v2006 = vmax.f32 %v2004, %v2005
    %v2007 = vrot.slane %v2006, 2
    %v2008 = vmax.f32 %v2006, %v2007
    %v2009 = vrot.slane %v2008, 1
    %v2010 = vmax.f32 %v2008, %v2009
    %v2011 = vsel %vm1601, %v1772, -inf
    %v2012 = vrot.slane %v2011, 4
    %v2013 = vmax.f32 %v2011, %v2012
    %v2014 = vrot.slane %v2013, 2
    %v2015 = vmax.f32 %v2013, %v2014
    %v2016 = vrot.slane %v2015, 1
    %v2017 = vmax.f32 %v2015, %v2016
    %v2018 = vsel %vm1601, %v1774, -inf
    %v2019 = vrot.slane %v2018, 4
    %v2020 = vmax.f32 %v2018, %v2019
    %v2021 = vrot.slane %v2020, 2
    %v2022 = vmax.f32 %v2020, %v2021
    %v2023 = vrot.slane %v2022, 1
    %v2024 = vmax.f32 %v2022, %v2023
    %v2025 = vsel %vm1601, %v1776, -inf
    %v2026 = vrot.slane %v2025, 4
    %v2027 = vmax.f32 %v2025, %v2026
    %v2028 = vrot.slane %v2027, 2
    %v2029 = vmax.f32 %v2027, %v2028
    %v2030 = vrot.slane %v2029, 1
    %v2031 = vmax.f32 %v2029, %v2030
    %v2032 = vsel %vm1601, %v1778, -inf
    %v2033 = vrot.slane %v2032, 4
    %v2034 = vmax.f32 %v2032, %v2033
    %v2035 = vrot.slane %v2034, 2
    %v2036 = vmax.f32 %v2034, %v2035
    %v2037 = vrot.slane %v2036, 1
    %v2038 = vmax.f32 %v2036, %v2037
    %v2039 = vsel %vm1601, %v1780, -inf
    %v2040 = vrot.slane %v2039, 4
    %v2041 = vmax.f32 %v2039, %v2040
    %v2042 = vrot.slane %v2041, 2
    %v2043 = vmax.f32 %v2041, %v2042
    %v2044 = vrot.slane %v2043, 1
    %v2045 = vmax.f32 %v2043, %v2044
    %v2046 = vsel %vm1601, %v1782, -inf
    %v2047 = vrot.slane %v2046, 4
    %v2048 = vmax.f32 %v2046, %v2047
    %v2049 = vrot.slane %v2048, 2
    %v2050 = vmax.f32 %v2048, %v2049
    %v2051 = vrot.slane %v2050, 1
    %v2052 = vmax.f32 %v2050, %v2051
    %v2053 = vsel %vm1601, %v1784, -inf
    %v2054 = vrot.slane %v2053, 4
    %v2055 = vmax.f32 %v2053, %v2054
    %v2056 = vrot.slane %v2055, 2
    %v2057 = vmax.f32 %v2055, %v2056
    %v2058 = vrot.slane %v2057, 1
    %v2059 = vmax.f32 %v2057, %v2058
    %v2060 = vsel %vm1601, %v1786, -inf
    %v2061 = vrot.slane %v2060, 4
    %v2062 = vmax.f32 %v2060, %v2061
    %v2063 = vrot.slane %v2062, 2
    %v2064 = vmax.f32 %v2062, %v2063
    %v2065 = vrot.slane %v2064, 1
    %v2066 = vmax.f32 %v2064, %v2065
    %v2067 = vsel %vm1658, %v1772, -inf
    %v2068 = vrot.slane %v2067, 4
    %v2069 = vmax.f32 %v2067, %v2068
    %v2070 = vrot.slane %v2069, 2
    %v2071 = vmax.f32 %v2069, %v2070
    %v2072 = vrot.slane %v2071, 1
    %v2073 = vmax.f32 %v2071, %v2072
    %v2074 = vsel %vm1658, %v1774, -inf
    %v2075 = vrot.slane %v2074, 4
    %v2076 = vmax.f32 %v2074, %v2075
    %v2077 = vrot.slane %v2076, 2
    %v2078 = vmax.f32 %v2076, %v2077
    %v2079 = vrot.slane %v2078, 1
    %v2080 = vmax.f32 %v2078, %v2079
    %v2081 = vsel %vm1658, %v1776, -inf
    %v2082 = vrot.slane %v2081, 4
    %v2083 = vmax.f32 %v2081, %v2082
    %v2084 = vrot.slane %v2083, 2
    %v2085 = vmax.f32 %v2083, %v2084
    %v2086 = vrot.slane %v2085, 1
    %v2087 = vmax.f32 %v2085, %v2086
    %v2088 = vsel %vm1658, %v1778, -inf
    %v2089 = vrot.slane %v2088, 4
    %v2090 = vmax.f32 %v2088, %v2089
    %v2091 = vrot.slane %v2090, 2
    %v2092 = vmax.f32 %v2090, %v2091
    %v2093 = vrot.slane %v2092, 1
    %v2094 = vmax.f32 %v2092, %v2093
    %v2095 = vsel %vm1658, %v1780, -inf
    %v2096 = vrot.slane %v2095, 4
    %v2097 = vmax.f32 %v2095, %v2096
    %v2098 = vrot.slane %v2097, 2
    %v2099 = vmax.f32 %v2097, %v2098
    %v2100 = vrot.slane %v2099, 1
    %v2101 = vmax.f32 %v2099, %v2100
    %v2102 = vsel %vm1658, %v1782, -inf
    %v2103 = vrot.slane %v2102, 4
    %v2104 = vmax.f32 %v2102, %v2103
    %v2105 = vrot.slane %v2104, 2
    %v2106 = vmax.f32 %v2104, %v2105
    %v2107 = vrot.slane %v2106, 1
    %v2108 = vmax.f32 %v2106, %v2107
    %v2109 = vsel %vm1658, %v1784, -inf
    %v2110 = vrot.slane %v2109, 4
    %v2111 = vmax.f32 %v2109, %v2110
    %v2112 = vrot.slane %v2111, 2
    %v2113 = vmax.f32 %v2111, %v2112
    %v2114 = vrot.slane %v2113, 1
    %v2115 = vmax.f32 %v2113, %v2114
    %v2116 = vsel %vm1658, %v1786, -inf
    %v2117 = vrot.slane %v2116, 4
    %v2118 = vmax.f32 %v2116, %v2117
    %v2119 = vrot.slane %v2118, 2
    %v2120 = vmax.f32 %v2118, %v2119
    %v2121 = vrot.slane %v2120, 1
    %v2122 = vmax.f32 %v2120, %v2121
    %v2123 = vadd.f32 %v1793, %v1849
    %v2124 = vadd.f32 %v1800, %v1856
    %v2125 = vadd.f32 %v1807, %v1863
    %v2126 = vadd.f32 %v1814, %v1870
    %v2127 = vadd.f32 %v1821, %v1877
    %v2128 = vadd.f32 %v1828, %v1884
    %v2129 = vadd.f32 %v1835, %v1891
    %v2130 = vadd.f32 %v1842, %v1898
    %v2131 = vadd.f32 %v1905, %v1961
    %v2132 = vadd.f32 %v1912, %v1968
    %v2133 = vadd.f32 %v1919, %v1975
    %v2134 = vadd.f32 %v1926, %v1982
    %v2135 = vadd.f32 %v1933, %v1989
    %v2136 = vadd.f32 %v1940, %v1996
    %v2137 = vadd.f32 %v1947, %v2003
    %v2138 = vadd.f32 %v1954, %v2010
    %v2139 = vadd.f32 %v2123, %v2131
    %v2140 = vadd.f32 %v2124, %v2132
    %v2141 = vadd.f32 %v2125, %v2133
    %v2142 = vadd.f32 %v2126, %v2134
    %v2143 = vadd.f32 %v2127, %v2135
    %v2144 = vadd.f32 %v2128, %v2136
    %v2145 = vadd.f32 %v2129, %v2137
    %v2146 = vadd.f32 %v2130, %v2138
    %v2147 = vadd.f32 %v2017, %v2073
    %v2148 = vadd.f32 %v2024, %v2080
    %v2149 = vadd.f32 %v2031, %v2087
    %v2150 = vadd.f32 %v2038, %v2094
    %v2151 = vadd.f32 %v2045, %v2101
    %v2152 = vadd.f32 %v2052, %v2108
    %v2153 = vadd.f32 %v2059, %v2115
    %v2154 = vadd.f32 %v2066, %v2122
    %v2155 = vadd.f32 %v2139, %v2147
    %v2156 = vadd.f32 %v2140, %v2148
    %v2157 = vadd.f32 %v2141, %v2149
    %v2158 = vadd.f32 %v2142, %v2150
    %v2159 = vadd.f32 %v2143, %v2151
    %v2160 = vadd.f32 %v2144, %v2152
    %v2161 = vadd.f32 %v2145, %v2153
    %v2162 = vadd.f32 %v2146, %v2154
    %v2163 = vmax.f32 %v310, %v312
    %v2164 = vmax.f32 %v2163, %v314
    %v2165 = vmax.f32 %v374, %v376
    %v2166 = vmax.f32 %v2165, %v378
    %v2167 = vmax.f32 %v438, %v440
    %v2168 = vmax.f32 %v2167, %v442
    %v2169 = vmax.f32 %v502, %v504
    %v2170 = vmax.f32 %v2169, %v506
    %v2171 = vmax.f32 %v566, %v568
    %v2172 = vmax.f32 %v2171, %v570
    %v2173 = vmax.f32 %v630, %v632
    %v2174 = vmax.f32 %v2173, %v634
    %v2175 = vmax.f32 %v694, %v696
    %v2176 = vmax.f32 %v2175, %v698
    %v2177 = vmax.f32 %v758, %v760
    %v2178 = vmax.f32 %v2177, %v762
    %v2179 = vmax.f32 %v311, %v313
    %v2180 = vmax.f32 %v2179, %v315
    %v2181 = vmax.f32 %v375, %v377
    %v2182 = vmax.f32 %v2181, %v379
    %v2183 = vmax.f32 %v439, %v441
    %v2184 = vmax.f32 %v2183, %v443
    %v2185 = vmax.f32 %v503, %v505
    %v2186 = vmax.f32 %v2185, %v507
    %v2187 = vmax.f32 %v567, %v569
    %v2188 = vmax.f32 %v2187, %v571
    %v2189 = vmax.f32 %v631, %v633
    %v2190 = vmax.f32 %v2189, %v635
    %v2191 = vmax.f32 %v695, %v697
    %v2192 = vmax.f32 %v2191, %v699
    %v2193 = vmax.f32 %v759, %v761
    %v2194 = vmax.f32 %v2193, %v763
    %v2195 = vsel %vm1373, %v2164, -inf
    %v2196 = vrot.slane %v2195, 4
    %v2197 = vmax.f32 %v2195, %v2196
    %v2198 = vrot.slane %v2197, 2
    %v2199 = vmax.f32 %v2197, %v2198
    %v2200 = vrot.slane %v2199, 1
    %v2201 = vmax.f32 %v2199, %v2200
    %v2202 = vsel %vm1373, %v2166, -inf
    %v2203 = vrot.slane %v2202, 4
    %v2204 = vmax.f32 %v2202, %v2203
    %v2205 = vrot.slane %v2204, 2
    %v2206 = vmax.f32 %v2204, %v2205
    %v2207 = vrot.slane %v2206, 1
    %v2208 = vmax.f32 %v2206, %v2207
    %v2209 = vsel %vm1373, %v2168, -inf
    %v2210 = vrot.slane %v2209, 4
    %v2211 = vmax.f32 %v2209, %v2210
    %v2212 = vrot.slane %v2211, 2
    %v2213 = vmax.f32 %v2211, %v2212
    %v2214 = vrot.slane %v2213, 1
    %v2215 = vmax.f32 %v2213, %v2214
    %v2216 = vsel %vm1373, %v2170, -inf
    %v2217 = vrot.slane %v2216, 4
    %v2218 = vmax.f32 %v2216, %v2217
    %v2219 = vrot.slane %v2218, 2
    %v2220 = vmax.f32 %v2218, %v2219
    %v2221 = vrot.slane %v2220, 1
    %v2222 = vmax.f32 %v2220, %v2221
    %v2223 = vsel %vm1373, %v2172, -inf
    %v2224 = vrot.slane %v2223, 4
    %v2225 = vmax.f32 %v2223, %v2224
    %v2226 = vrot.slane %v2225, 2
    %v2227 = vmax.f32 %v2225, %v2226
    %v2228 = vrot.slane %v2227, 1
    %v2229 = vmax.f32 %v2227, %v2228
    %v2230 = vsel %vm1373, %v2174, -inf
    %v2231 = vrot.slane %v2230, 4
    %v2232 = vmax.f32 %v2230, %v2231
    %v2233 = vrot.slane %v2232, 2
    %v2234 = vmax.f32 %v2232, %v2233
    %v2235 = vrot.slane %v2234, 1
    %v2236 = vmax.f32 %v2234, %v2235
    %v2237 = vsel %vm1373, %v2176, -inf
    %v2238 = vrot.slane %v2237, 4
    %v2239 = vmax.f32 %v2237, %v2238
    %v2240 = vrot.slane %v2239, 2
    %v2241 = vmax.f32 %v2239, %v2240
    %v2242 = vrot.slane %v2241, 1
    %v2243 = vmax.f32 %v2241, %v2242
    %v2244 = vsel %vm1373, %v2178, -inf
    %v2245 = vrot.slane %v2244, 4
    %v2246 = vmax.f32 %v2244, %v2245
    %v2247 = vrot.slane %v2246, 2
    %v2248 = vmax.f32 %v2246, %v2247
    %v2249 = vrot.slane %v2248, 1
    %v2250 = vmax.f32 %v2248, %v2249
    %v2251 = vsel %vm1430, %v2164, -inf
    %v2252 = vrot.slane %v2251, 4
    %v2253 = vmax.f32 %v2251, %v2252
    %v2254 = vrot.slane %v2253, 2
    %v2255 = vmax.f32 %v2253, %v2254
    %v2256 = vrot.slane %v2255, 1
    %v2257 = vmax.f32 %v2255, %v2256
    %v2258 = vsel %vm1430, %v2166, -inf
    %v2259 = vrot.slane %v2258, 4
    %v2260 = vmax.f32 %v2258, %v2259
    %v2261 = vrot.slane %v2260, 2
    %v2262 = vmax.f32 %v2260, %v2261
    %v2263 = vrot.slane %v2262, 1
    %v2264 = vmax.f32 %v2262, %v2263
    %v2265 = vsel %vm1430, %v2168, -inf
    %v2266 = vrot.slane %v2265, 4
    %v2267 = vmax.f32 %v2265, %v2266
    %v2268 = vrot.slane %v2267, 2
    %v2269 = vmax.f32 %v2267, %v2268
    %v2270 = vrot.slane %v2269, 1
    %v2271 = vmax.f32 %v2269, %v2270
    %v2272 = vsel %vm1430, %v2170, -inf
    %v2273 = vrot.slane %v2272, 4
    %v2274 = vmax.f32 %v2272, %v2273
    %v2275 = vrot.slane %v2274, 2
    %v2276 = vmax.f32 %v2274, %v2275
    %v2277 = vrot.slane %v2276, 1
    %v2278 = vmax.f32 %v2276, %v2277
    %v2279 = vsel %vm1430, %v2172, -inf
    %v2280 = vrot.slane %v2279, 4
    %v2281 = vmax.f32 %v2279, %v2280
    %v2282 = vrot.slane %v2281, 2
    %v2283 = vmax.f32 %v2281, %v2282
    %v2284 = vrot.slane %v2283, 1
    %v2285 = vmax.f32 %v2283, %v2284
    %v2286 = vsel %vm1430, %v2174, -inf
    %v2287 = vrot.slane %v2286, 4
    %v2288 = vmax.f32 %v2286, %v2287
    %v2289 = vrot.slane %v2288, 2
    %v2290 = vmax.f32 %v2288, %v2289
    %v2291 = vrot.slane %v2290, 1
    %v2292 = vmax.f32 %v2290, %v2291
    %v2293 = vsel %vm1430, %v2176, -inf
    %v2294 = vrot.slane %v2293, 4
    %v2295 = vmax.f32 %v2293, %v2294
    %v2296 = vrot.slane %v2295, 2
    %v2297 = vmax.f32 %v2295, %v2296
    %v2298 = vrot.slane %v2297, 1
    %v2299 = vmax.f32 %v2297, %v2298
    %v2300 = vsel %vm1430, %v2178, -inf
    %v2301 = vrot.slane %v2300, 4
    %v2302 = vmax.f32 %v2300, %v2301
    %v2303 = vrot.slane %v2302, 2
    %v2304 = vmax.f32 %v2302, %v2303
    %v2305 = vrot.slane %v2304, 1
    %v2306 = vmax.f32 %v2304, %v2305
    %v2307 = vsel %vm1487, %v2164, -inf
    %v2308 = vrot.slane %v2307, 4
    %v2309 = vmax.f32 %v2307, %v2308
    %v2310 = vrot.slane %v2309, 2
    %v2311 = vmax.f32 %v2309, %v2310
    %v2312 = vrot.slane %v2311, 1
    %v2313 = vmax.f32 %v2311, %v2312
    %v2314 = vsel %vm1487, %v2166, -inf
    %v2315 = vrot.slane %v2314, 4
    %v2316 = vmax.f32 %v2314, %v2315
    %v2317 = vrot.slane %v2316, 2
    %v2318 = vmax.f32 %v2316, %v2317
    %v2319 = vrot.slane %v2318, 1
    %v2320 = vmax.f32 %v2318, %v2319
    %v2321 = vsel %vm1487, %v2168, -inf
    %v2322 = vrot.slane %v2321, 4
    %v2323 = vmax.f32 %v2321, %v2322
    %v2324 = vrot.slane %v2323, 2
    %v2325 = vmax.f32 %v2323, %v2324
    %v2326 = vrot.slane %v2325, 1
    %v2327 = vmax.f32 %v2325, %v2326
    %v2328 = vsel %vm1487, %v2170, -inf
    %v2329 = vrot.slane %v2328, 4
    %v2330 = vmax.f32 %v2328, %v2329
    %v2331 = vrot.slane %v2330, 2
    %v2332 = vmax.f32 %v2330, %v2331
    %v2333 = vrot.slane %v2332, 1
    %v2334 = vmax.f32 %v2332, %v2333
    %v2335 = vsel %vm1487, %v2172, -inf
    %v2336 = vrot.slane %v2335, 4
    %v2337 = vmax.f32 %v2335, %v2336
    %v2338 = vrot.slane %v2337, 2
    %v2339 = vmax.f32 %v2337, %v2338
    %v2340 = vrot.slane %v2339, 1
    %v2341 = vmax.f32 %v2339, %v2340
    %v2342 = vsel %vm1487, %v2174, -inf
    %v2343 = vrot.slane %v2342, 4
    %v2344 = vmax.f32 %v2342, %v2343
    %v2345 = vrot.slane %v2344, 2
    %v2346 = vmax.f32 %v2344, %v2345
    %v2347 = vrot.slane %v2346, 1
    %v2348 = vmax.f32 %v2346, %v2347
    %v2349 = vsel %vm1487, %v2176, -inf
    %v2350 = vrot.slane %v2349, 4
    %v2351 = vmax.f32 %v2349, %v2350
    %v2352 = vrot.slane %v2351, 2
    %v2353 = vmax.f32 %v2351, %v2352
    %v2354 = vrot.slane %v2353, 1
    %v2355 = vmax.f32 %v2353, %v2354
    %v2356 = vsel %vm1487, %v2178, -inf
    %v2357 = vrot.slane %v2356, 4
    %v2358 = vmax.f32 %v2356, %v2357
    %v2359 = vrot.slane %v2358, 2
    %v2360 = vmax.f32 %v2358, %v2359
    %v2361 = vrot.slane %v2360, 1
    %v2362 = vmax.f32 %v2360, %v2361
    %v2363 = vsel %vm1544, %v2180, -inf
    %v2364 = vrot.slane %v2363, 4
    %v2365 = vmax.f32 %v2363, %v2364
    %v2366 = vrot.slane %v2365, 2
    %v2367 = vmax.f32 %v2365, %v2366
    %v2368 = vrot.slane %v2367, 1
    %v2369 = vmax.f32 %v2367, %v2368
    %v2370 = vsel %vm1544, %v2182, -inf
    %v2371 = vrot.slane %v2370, 4
    %v2372 = vmax.f32 %v2370, %v2371
    %v2373 = vrot.slane %v2372, 2
    %v2374 = vmax.f32 %v2372, %v2373
    %v2375 = vrot.slane %v2374, 1
    %v2376 = vmax.f32 %v2374, %v2375
    %v2377 = vsel %vm1544, %v2184, -inf
    %v2378 = vrot.slane %v2377, 4
    %v2379 = vmax.f32 %v2377, %v2378
    %v2380 = vrot.slane %v2379, 2
    %v2381 = vmax.f32 %v2379, %v2380
    %v2382 = vrot.slane %v2381, 1
    %v2383 = vmax.f32 %v2381, %v2382
    %v2384 = vsel %vm1544, %v2186, -inf
    %v2385 = vrot.slane %v2384, 4
    %v2386 = vmax.f32 %v2384, %v2385
    %v2387 = vrot.slane %v2386, 2
    %v2388 = vmax.f32 %v2386, %v2387
    %v2389 = vrot.slane %v2388, 1
    %v2390 = vmax.f32 %v2388, %v2389
    %v2391 = vsel %vm1544, %v2188, -inf
    %v2392 = vrot.slane %v2391, 4
    %v2393 = vmax.f32 %v2391, %v2392
    %v2394 = vrot.slane %v2393, 2
    %v2395 = vmax.f32 %v2393, %v2394
    %v2396 = vrot.slane %v2395, 1
    %v2397 = vmax.f32 %v2395, %v2396
    %v2398 = vsel %vm1544, %v2190, -inf
    %v2399 = vrot.slane %v2398, 4
    %v2400 = vmax.f32 %v2398, %v2399
    %v2401 = vrot.slane %v2400, 2
    %v2402 = vmax.f32 %v2400, %v2401
    %v2403 = vrot.slane %v2402, 1
    %v2404 = vmax.f32 %v2402, %v2403
    %v2405 = vsel %vm1544, %v2192, -inf
    %v2406 = vrot.slane %v2405, 4
    %v2407 = vmax.f32 %v2405, %v2406
    %v2408 = vrot.slane %v2407, 2
    %v2409 = vmax.f32 %v2407, %v2408
    %v2410 = vrot.slane %v2409, 1
    %v2411 = vmax.f32 %v2409, %v2410
    %v2412 = vsel %vm1544, %v2194, -inf
    %v2413 = vrot.slane %v2412, 4
    %v2414 = vmax.f32 %v2412, %v2413
    %v2415 = vrot.slane %v2414, 2
    %v2416 = vmax.f32 %v2414, %v2415
    %v2417 = vrot.slane %v2416, 1
    %v2418 = vmax.f32 %v2416, %v2417
    %v2419 = vsel %vm1601, %v2180, -inf
    %v2420 = vrot.slane %v2419, 4
    %v2421 = vmax.f32 %v2419, %v2420
    %v2422 = vrot.slane %v2421, 2
    %v2423 = vmax.f32 %v2421, %v2422
    %v2424 = vrot.slane %v2423, 1
    %v2425 = vmax.f32 %v2423, %v2424
    %v2426 = vsel %vm1601, %v2182, -inf
    %v2427 = vrot.slane %v2426, 4
    %v2428 = vmax.f32 %v2426, %v2427
    %v2429 = vrot.slane %v2428, 2
    %v2430 = vmax.f32 %v2428, %v2429
    %v2431 = vrot.slane %v2430, 1
    %v2432 = vmax.f32 %v2430, %v2431
    %v2433 = vsel %vm1601, %v2184, -inf
    %v2434 = vrot.slane %v2433, 4
    %v2435 = vmax.f32 %v2433, %v2434
    %v2436 = vrot.slane %v2435, 2
    %v2437 = vmax.f32 %v2435, %v2436
    %v2438 = vrot.slane %v2437, 1
    %v2439 = vmax.f32 %v2437, %v2438
    %v2440 = vsel %vm1601, %v2186, -inf
    %v2441 = vrot.slane %v2440, 4
    %v2442 = vmax.f32 %v2440, %v2441
    %v2443 = vrot.slane %v2442, 2
    %v2444 = vmax.f32 %v2442, %v2443
    %v2445 = vrot.slane %v2444, 1
    %v2446 = vmax.f32 %v2444, %v2445
    %v2447 = vsel %vm1601, %v2188, -inf
    %v2448 = vrot.slane %v2447, 4
    %v2449 = vmax.f32 %v2447, %v2448
    %v2450 = vrot.slane %v2449, 2
    %v2451 = vmax.f32 %v2449, %v2450
    %v2452 = vrot.slane %v2451, 1
    %v2453 = vmax.f32 %v2451, %v2452
    %v2454 = vsel %vm1601, %v2190, -inf
    %v2455 = vrot.slane %v2454, 4
    %v2456 = vmax.f32 %v2454, %v2455
    %v2457 = vrot.slane %v2456, 2
    %v2458 = vmax.f32 %v2456, %v2457
    %v2459 = vrot.slane %v2458, 1
    %v2460 = vmax.f32 %v2458, %v2459
    %v2461 = vsel %vm1601, %v2192, -inf
    %v2462 = vrot.slane %v2461, 4
    %v2463 = vmax.f32 %v2461, %v2462
    %v2464 = vrot.slane %v2463, 2
    %v2465 = vmax.f32 %v2463, %v2464
    %v2466 = vrot.slane %v2465, 1
    %v2467 = vmax.f32 %v2465, %v2466
    %v2468 = vsel %vm1601, %v2194, -inf
    %v2469 = vrot.slane %v2468, 4
    %v2470 = vmax.f32 %v2468, %v2469
    %v2471 = vrot.slane %v2470, 2
    %v2472 = vmax.f32 %v2470, %v2471
    %v2473 = vrot.slane %v2472, 1
    %v2474 = vmax.f32 %v2472, %v2473
    %v2475 = vsel %vm1658, %v2180, -inf
    %v2476 = vrot.slane %v2475, 4
    %v2477 = vmax.f32 %v2475, %v2476
    %v2478 = vrot.slane %v2477, 2
    %v2479 = vmax.f32 %v2477, %v2478
    %v2480 = vrot.slane %v2479, 1
    %v2481 = vmax.f32 %v2479, %v2480
    %v2482 = vsel %vm1658, %v2182, -inf
    %v2483 = vrot.slane %v2482, 4
    %v2484 = vmax.f32 %v2482, %v2483
    %v2485 = vrot.slane %v2484, 2
    %v2486 = vmax.f32 %v2484, %v2485
    %v2487 = vrot.slane %v2486, 1
    %v2488 = vmax.f32 %v2486, %v2487
    %v2489 = vsel %vm1658, %v2184, -inf
    %v2490 = vrot.slane %v2489, 4
    %v2491 = vmax.f32 %v2489, %v2490
    %v2492 = vrot.slane %v2491, 2
    %v2493 = vmax.f32 %v2491, %v2492
    %v2494 = vrot.slane %v2493, 1
    %v2495 = vmax.f32 %v2493, %v2494
    %v2496 = vsel %vm1658, %v2186, -inf
    %v2497 = vrot.slane %v2496, 4
    %v2498 = vmax.f32 %v2496, %v2497
    %v2499 = vrot.slane %v2498, 2
    %v2500 = vmax.f32 %v2498, %v2499
    %v2501 = vrot.slane %v2500, 1
    %v2502 = vmax.f32 %v2500, %v2501
    %v2503 = vsel %vm1658, %v2188, -inf
    %v2504 = vrot.slane %v2503, 4
    %v2505 = vmax.f32 %v2503, %v2504
    %v2506 = vrot.slane %v2505, 2
    %v2507 = vmax.f32 %v2505, %v2506
    %v2508 = vrot.slane %v2507, 1
    %v2509 = vmax.f32 %v2507, %v2508
    %v2510 = vsel %vm1658, %v2190, -inf
    %v2511 = vrot.slane %v2510, 4
    %v2512 = vmax.f32 %v2510, %v2511
    %v2513 = vrot.slane %v2512, 2
    %v2514 = vmax.f32 %v2512, %v2513
    %v2515 = vrot.slane %v2514, 1
    %v2516 = vmax.f32 %v2514, %v2515
    %v2517 = vsel %vm1658, %v2192, -inf
    %v2518 = vrot.slane %v2517, 4
    %v2519 = vmax.f32 %v2517, %v2518
    %v2520 = vrot.slane %v2519, 2
    %v2521 = vmax.f32 %v2519, %v2520
    %v2522 = vrot.slane %v2521, 1
    %v2523 = vmax.f32 %v2521, %v2522
    %v2524 = vsel %vm1658, %v2194, -inf
    %v2525 = vrot.slane %v2524, 4
    %v2526 = vmax.f32 %v2524, %v2525
    %v2527 = vrot.slane %v2526, 2
    %v2528 = vmax.f32 %v2526, %v2527
    %v2529 = vrot.slane %v2528, 1
    %v2530 = vmax.f32 %v2528, %v2529
    %v2531 = vadd.f32 %v2201, %v2257
    %v2532 = vadd.f32 %v2208, %v2264
    %v2533 = vadd.f32 %v2215, %v2271
    %v2534 = vadd.f32 %v2222, %v2278
    %v2535 = vadd.f32 %v2229, %v2285
    %v2536 = vadd.f32 %v2236, %v2292
    %v2537 = vadd.f32 %v2243, %v2299
    %v2538 = vadd.f32 %v2250, %v2306
    %v2539 = vadd.f32 %v2313, %v2369
    %v2540 = vadd.f32 %v2320, %v2376
    %v2541 = vadd.f32 %v2327, %v2383
    %v2542 = vadd.f32 %v2334, %v2390
    %v2543 = vadd.f32 %v2341, %v2397
    %v2544 = vadd.f32 %v2348, %v2404
    %v2545 = vadd.f32 %v2355, %v2411
    %v2546 = vadd.f32 %v2362, %v2418
    %v2547 = vadd.f32 %v2531, %v2539
    %v2548 = vadd.f32 %v2532, %v2540
    %v2549 = vadd.f32 %v2533, %v2541
    %v2550 = vadd.f32 %v2534, %v2542
    %v2551 = vadd.f32 %v2535, %v2543
    %v2552 = vadd.f32 %v2536, %v2544
    %v2553 = vadd.f32 %v2537, %v2545
    %v2554 = vadd.f32 %v2538, %v2546
    %v2555 = vadd.f32 %v2425, %v2481
    %v2556 = vadd.f32 %v2432, %v2488
    %v2557 = vadd.f32 %v2439, %v2495
    %v2558 = vadd.f32 %v2446, %v2502
    %v2559 = vadd.f32 %v2453, %v2509
    %v2560 = vadd.f32 %v2460, %v2516
    %v2561 = vadd.f32 %v2467, %v2523
    %v2562 = vadd.f32 %v2474, %v2530
    %v2563 = vadd.f32 %v2547, %v2555
    %v2564 = vadd.f32 %v2548, %v2556
    %v2565 = vadd.f32 %v2549, %v2557
    %v2566 = vadd.f32 %v2550, %v2558
    %v2567 = vadd.f32 %v2551, %v2559
    %v2568 = vadd.f32 %v2552, %v2560
    %v2569 = vadd.f32 %v2553, %v2561
    %v2570 = vadd.f32 %v2554, %v2562
    %v2571 = vmax.f32 %v332, %v334
    %v2572 = vmax.f32 %v2571, %v336
    %v2573 = vmax.f32 %v396, %v398
    %v2574 = vmax.f32 %v2573, %v400
    %v2575 = vmax.f32 %v460, %v462
    %v2576 = vmax.f32 %v2575, %v464
    %v2577 = vmax.f32 %v524, %v526
    %v2578 = vmax.f32 %v2577, %v528
    %v2579 = vmax.f32 %v588, %v590
    %v2580 = vmax.f32 %v2579, %v592
    %v2581 = vmax.f32 %v652, %v654
    %v2582 = vmax.f32 %v2581, %v656
    %v2583 = vmax.f32 %v716, %v718
    %v2584 = vmax.f32 %v2583, %v720
    %v2585 = vmax.f32 %v780, %v782
    %v2586 = vmax.f32 %v2585, %v784
    %v2587 = vmax.f32 %v333, %v335
    %v2588 = vmax.f32 %v2587, %v337
    %v2589 = vmax.f32 %v397, %v399
    %v2590 = vmax.f32 %v2589, %v401
    %v2591 = vmax.f32 %v461, %v463
    %v2592 = vmax.f32 %v2591, %v465
    %v2593 = vmax.f32 %v525, %v527
    %v2594 = vmax.f32 %v2593, %v529
    %v2595 = vmax.f32 %v589, %v591
    %v2596 = vmax.f32 %v2595, %v593
    %v2597 = vmax.f32 %v653, %v655
    %v2598 = vmax.f32 %v2597, %v657
    %v2599 = vmax.f32 %v717, %v719
    %v2600 = vmax.f32 %v2599, %v721
    %v2601 = vmax.f32 %v781, %v783
    %v2602 = vmax.f32 %v2601, %v785
    %v2603 = vsel %vm1373, %v2572, -inf
    %v2604 = vrot.slane %v2603, 4
    %v2605 = vmax.f32 %v2603, %v2604
    %v2606 = vrot.slane %v2605, 2
    %v2607 = vmax.f32 %v2605, %v2606
    %v2608 = vrot.slane %v2607, 1
    %v2609 = vmax.f32 %v2607, %v2608
    %v2610 = vsel %vm1373, %v2574, -inf
    %v2611 = vrot.slane %v2610, 4
    %v2612 = vmax.f32 %v2610, %v2611
    %v2613 = vrot.slane %v2612, 2
    %v2614 = vmax.f32 %v2612, %v2613
    %v2615 = vrot.slane %v2614, 1
    %v2616 = vmax.f32 %v2614, %v2615
    %v2617 = vsel %vm1373, %v2576, -inf
    %v2618 = vrot.slane %v2617, 4
    %v2619 = vmax.f32 %v2617, %v2618
    %v2620 = vrot.slane %v2619, 2
    %v2621 = vmax.f32 %v2619, %v2620
    %v2622 = vrot.slane %v2621, 1
    %v2623 = vmax.f32 %v2621, %v2622
    %v2624 = vsel %vm1373, %v2578, -inf
    %v2625 = vrot.slane %v2624, 4
    %v2626 = vmax.f32 %v2624, %v2625
    %v2627 = vrot.slane %v2626, 2
    %v2628 = vmax.f32 %v2626, %v2627
    %v2629 = vrot.slane %v2628, 1
    %v2630 = vmax.f32 %v2628, %v2629
    %v2631 = vsel %vm1373, %v2580, -inf
    %v2632 = vrot.slane %v2631, 4
    %v2633 = vmax.f32 %v2631, %v2632
    %v2634 = vrot.slane %v2633, 2
    %v2635 = vmax.f32 %v2633, %v2634
    %v2636 = vrot.slane %v2635, 1
    %v2637 = vmax.f32 %v2635, %v2636
    %v2638 = vsel %vm1373, %v2582, -inf
    %v2639 = vrot.slane %v2638, 4
    %v2640 = vmax.f32 %v2638, %v2639
    %v2641 = vrot.slane %v2640, 2
    %v2642 = vmax.f32 %v2640, %v2641
    %v2643 = vrot.slane %v2642, 1
    %v2644 = vmax.f32 %v2642, %v2643
    %v2645 = vsel %vm1373, %v2584, -inf
    %v2646 = vrot.slane %v2645, 4
    %v2647 = vmax.f32 %v2645, %v2646
    %v2648 = vrot.slane %v2647, 2
    %v2649 = vmax.f32 %v2647, %v2648
    %v2650 = vrot.slane %v2649, 1
    %v2651 = vmax.f32 %v2649, %v2650
    %v2652 = vsel %vm1373, %v2586, -inf
    %v2653 = vrot.slane %v2652, 4
    %v2654 = vmax.f32 %v2652, %v2653
    %v2655 = vrot.slane %v2654, 2
    %v2656 = vmax.f32 %v2654, %v2655
    %v2657 = vrot.slane %v2656, 1
    %v2658 = vmax.f32 %v2656, %v2657
    %v2659 = vsel %vm1430, %v2572, -inf
    %v2660 = vrot.slane %v2659, 4
    %v2661 = vmax.f32 %v2659, %v2660
    %v2662 = vrot.slane %v2661, 2
    %v2663 = vmax.f32 %v2661, %v2662
    %v2664 = vrot.slane %v2663, 1
    %v2665 = vmax.f32 %v2663, %v2664
    %v2666 = vsel %vm1430, %v2574, -inf
    %v2667 = vrot.slane %v2666, 4
    %v2668 = vmax.f32 %v2666, %v2667
    %v2669 = vrot.slane %v2668, 2
    %v2670 = vmax.f32 %v2668, %v2669
    %v2671 = vrot.slane %v2670, 1
    %v2672 = vmax.f32 %v2670, %v2671
    %v2673 = vsel %vm1430, %v2576, -inf
    %v2674 = vrot.slane %v2673, 4
    %v2675 = vmax.f32 %v2673, %v2674
    %v2676 = vrot.slane %v2675, 2
    %v2677 = vmax.f32 %v2675, %v2676
    %v2678 = vrot.slane %v2677, 1
    %v2679 = vmax.f32 %v2677, %v2678
    %v2680 = vsel %vm1430, %v2578, -inf
    %v2681 = vrot.slane %v2680, 4
    %v2682 = vmax.f32 %v2680, %v2681
    %v2683 = vrot.slane %v2682, 2
    %v2684 = vmax.f32 %v2682, %v2683
    %v2685 = vrot.slane %v2684, 1
    %v2686 = vmax.f32 %v2684, %v2685
    %v2687 = vsel %vm1430, %v2580, -inf
    %v2688 = vrot.slane %v2687, 4
    %v2689 = vmax.f32 %v2687, %v2688
    %v2690 = vrot.slane %v2689, 2
    %v2691 = vmax.f32 %v2689, %v2690
    %v2692 = vrot.slane %v2691, 1
    %v2693 = vmax.f32 %v2691, %v2692
    %v2694 = vsel %vm1430, %v2582, -inf
    %v2695 = vrot.slane %v2694, 4
    %v2696 = vmax.f32 %v2694, %v2695
    %v2697 = vrot.slane %v2696, 2
    %v2698 = vmax.f32 %v2696, %v2697
    %v2699 = vrot.slane %v2698, 1
    %v2700 = vmax.f32 %v2698, %v2699
    %v2701 = vsel %vm1430, %v2584, -inf
    %v2702 = vrot.slane %v2701, 4
    %v2703 = vmax.f32 %v2701, %v2702
    %v2704 = vrot.slane %v2703, 2
    %v2705 = vmax.f32 %v2703, %v2704
    %v2706 = vrot.slane %v2705, 1
    %v2707 = vmax.f32 %v2705, %v2706
    %v2708 = vsel %vm1430, %v2586, -inf
    %v2709 = vrot.slane %v2708, 4
    %v2710 = vmax.f32 %v2708, %v2709
    %v2711 = vrot.slane %v2710, 2
    %v2712 = vmax.f32 %v2710, %v2711
    %v2713 = vrot.slane %v2712, 1
    %v2714 = vmax.f32 %v2712, %v2713
    %v2715 = vsel %vm1487, %v2572, -inf
    %v2716 = vrot.slane %v2715, 4
    %v2717 = vmax.f32 %v2715, %v2716
    %v2718 = vrot.slane %v2717, 2
    %v2719 = vmax.f32 %v2717, %v2718
    %v2720 = vrot.slane %v2719, 1
    %v2721 = vmax.f32 %v2719, %v2720
    %v2722 = vsel %vm1487, %v2574, -inf
    %v2723 = vrot.slane %v2722, 4
    %v2724 = vmax.f32 %v2722, %v2723
    %v2725 = vrot.slane %v2724, 2
    %v2726 = vmax.f32 %v2724, %v2725
    %v2727 = vrot.slane %v2726, 1
    %v2728 = vmax.f32 %v2726, %v2727
    %v2729 = vsel %vm1487, %v2576, -inf
    %v2730 = vrot.slane %v2729, 4
    %v2731 = vmax.f32 %v2729, %v2730
    %v2732 = vrot.slane %v2731, 2
    %v2733 = vmax.f32 %v2731, %v2732
    %v2734 = vrot.slane %v2733, 1
    %v2735 = vmax.f32 %v2733, %v2734
    %v2736 = vsel %vm1487, %v2578, -inf
    %v2737 = vrot.slane %v2736, 4
    %v2738 = vmax.f32 %v2736, %v2737
    %v2739 = vrot.slane %v2738, 2
    %v2740 = vmax.f32 %v2738, %v2739
    %v2741 = vrot.slane %v2740, 1
    %v2742 = vmax.f32 %v2740, %v2741
    %v2743 = vsel %vm1487, %v2580, -inf
    %v2744 = vrot.slane %v2743, 4
    %v2745 = vmax.f32 %v2743, %v2744
    %v2746 = vrot.slane %v2745, 2
    %v2747 = vmax.f32 %v2745, %v2746
    %v2748 = vrot.slane %v2747, 1
    %v2749 = vmax.f32 %v2747, %v2748
    %v2750 = vsel %vm1487, %v2582, -inf
    %v2751 = vrot.slane %v2750, 4
    %v2752 = vmax.f32 %v2750, %v2751
    %v2753 = vrot.slane %v2752, 2
    %v2754 = vmax.f32 %v2752, %v2753
    %v2755 = vrot.slane %v2754, 1
    %v2756 = vmax.f32 %v2754, %v2755
    %v2757 = vsel %vm1487, %v2584, -inf
    %v2758 = vrot.slane %v2757, 4
    %v2759 = vmax.f32 %v2757, %v2758
    %v2760 = vrot.slane %v2759, 2
    %v2761 = vmax.f32 %v2759, %v2760
    %v2762 = vrot.slane %v2761, 1
    %v2763 = vmax.f32 %v2761, %v2762
    %v2764 = vsel %vm1487, %v2586, -inf
    %v2765 = vrot.slane %v2764, 4
    %v2766 = vmax.f32 %v2764, %v2765
    %v2767 = vrot.slane %v2766, 2
    %v2768 = vmax.f32 %v2766, %v2767
    %v2769 = vrot.slane %v2768, 1
    %v2770 = vmax.f32 %v2768, %v2769
    %v2771 = vsel %vm1544, %v2588, -inf
    %v2772 = vrot.slane %v2771, 4
    %v2773 = vmax.f32 %v2771, %v2772
    %v2774 = vrot.slane %v2773, 2
    %v2775 = vmax.f32 %v2773, %v2774
    %v2776 = vrot.slane %v2775, 1
    %v2777 = vmax.f32 %v2775, %v2776
    %v2778 = vsel %vm1544, %v2590, -inf
    %v2779 = vrot.slane %v2778, 4
    %v2780 = vmax.f32 %v2778, %v2779
    %v2781 = vrot.slane %v2780, 2
    %v2782 = vmax.f32 %v2780, %v2781
    %v2783 = vrot.slane %v2782, 1
    %v2784 = vmax.f32 %v2782, %v2783
    %v2785 = vsel %vm1544, %v2592, -inf
    %v2786 = vrot.slane %v2785, 4
    %v2787 = vmax.f32 %v2785, %v2786
    %v2788 = vrot.slane %v2787, 2
    %v2789 = vmax.f32 %v2787, %v2788
    %v2790 = vrot.slane %v2789, 1
    %v2791 = vmax.f32 %v2789, %v2790
    %v2792 = vsel %vm1544, %v2594, -inf
    %v2793 = vrot.slane %v2792, 4
    %v2794 = vmax.f32 %v2792, %v2793
    %v2795 = vrot.slane %v2794, 2
    %v2796 = vmax.f32 %v2794, %v2795
    %v2797 = vrot.slane %v2796, 1
    %v2798 = vmax.f32 %v2796, %v2797
    %v2799 = vsel %vm1544, %v2596, -inf
    %v2800 = vrot.slane %v2799, 4
    %v2801 = vmax.f32 %v2799, %v2800
    %v2802 = vrot.slane %v2801, 2
    %v2803 = vmax.f32 %v2801, %v2802
    %v2804 = vrot.slane %v2803, 1
    %v2805 = vmax.f32 %v2803, %v2804
    %v2806 = vsel %vm1544, %v2598, -inf
    %v2807 = vrot.slane %v2806, 4
    %v2808 = vmax.f32 %v2806, %v2807
    %v2809 = vrot.slane %v2808, 2
    %v2810 = vmax.f32 %v2808, %v2809
    %v2811 = vrot.slane %v2810, 1
    %v2812 = vmax.f32 %v2810, %v2811
    %v2813 = vsel %vm1544, %v2600, -inf
    %v2814 = vrot.slane %v2813, 4
    %v2815 = vmax.f32 %v2813, %v2814
    %v2816 = vrot.slane %v2815, 2
    %v2817 = vmax.f32 %v2815, %v2816
    %v2818 = vrot.slane %v2817, 1
    %v2819 = vmax.f32 %v2817, %v2818
    %v2820 = vsel %vm1544, %v2602, -inf
    %v2821 = vrot.slane %v2820, 4
    %v2822 = vmax.f32 %v2820, %v2821
    %v2823 = vrot.slane %v2822, 2
    %v2824 = vmax.f32 %v2822, %v2823
    %v2825 = vrot.slane %v2824, 1
    %v2826 = vmax.f32 %v2824, %v2825
    %v2827 = vsel %vm1601, %v2588, -inf
    %v2828 = vrot.slane %v2827, 4
    %v2829 = vmax.f32 %v2827, %v2828
    %v2830 = vrot.slane %v2829, 2
    %v2831 = vmax.f32 %v2829, %v2830
    %v2832 = vrot.slane %v2831, 1
    %v2833 = vmax.f32 %v2831, %v2832
    %v2834 = vsel %vm1601, %v2590, -inf
    %v2835 = vrot.slane %v2834, 4
    %v2836 = vmax.f32 %v2834, %v2835
    %v2837 = vrot.slane %v2836, 2
    %v2838 = vmax.f32 %v2836, %v2837
    %v2839 = vrot.slane %v2838, 1
    %v2840 = vmax.f32 %v2838, %v2839
    %v2841 = vsel %vm1601, %v2592, -inf
    %v2842 = vrot.slane %v2841, 4
    %v2843 = vmax.f32 %v2841, %v2842
    %v2844 = vrot.slane %v2843, 2
    %v2845 = vmax.f32 %v2843, %v2844
    %v2846 = vrot.slane %v2845, 1
    %v2847 = vmax.f32 %v2845, %v2846
    %v2848 = vsel %vm1601, %v2594, -inf
    %v2849 = vrot.slane %v2848, 4
    %v2850 = vmax.f32 %v2848, %v2849
    %v2851 = vrot.slane %v2850, 2
    %v2852 = vmax.f32 %v2850, %v2851
    %v2853 = vrot.slane %v2852, 1
    %v2854 = vmax.f32 %v2852, %v2853
    %v2855 = vsel %vm1601, %v2596, -inf
    %v2856 = vrot.slane %v2855, 4
    %v2857 = vmax.f32 %v2855, %v2856
    %v2858 = vrot.slane %v2857, 2
    %v2859 = vmax.f32 %v2857, %v2858
    %v2860 = vrot.slane %v2859, 1
    %v2861 = vmax.f32 %v2859, %v2860
    %v2862 = vsel %vm1601, %v2598, -inf
    %v2863 = vrot.slane %v2862, 4
    %v2864 = vmax.f32 %v2862, %v2863
    %v2865 = vrot.slane %v2864, 2
    %v2866 = vmax.f32 %v2864, %v2865
    %v2867 = vrot.slane %v2866, 1
    %v2868 = vmax.f32 %v2866, %v2867
    %v2869 = vsel %vm1601, %v2600, -inf
    %v2870 = vrot.slane %v2869, 4
    %v2871 = vmax.f32 %v2869, %v2870
    %v2872 = vrot.slane %v2871, 2
    %v2873 = vmax.f32 %v2871, %v2872
    %v2874 = vrot.slane %v2873, 1
    %v2875 = vmax.f32 %v2873, %v2874
    %v2876 = vsel %vm1601, %v2602, -inf
    %v2877 = vrot.slane %v2876, 4
    %v2878 = vmax.f32 %v2876, %v2877
    %v2879 = vrot.slane %v2878, 2
    %v2880 = vmax.f32 %v2878, %v2879
    %v2881 = vrot.slane %v2880, 1
    %v2882 = vmax.f32 %v2880, %v2881
    %v2883 = vsel %vm1658, %v2588, -inf
    %v2884 = vrot.slane %v2883, 4
    %v2885 = vmax.f32 %v2883, %v2884
    %v2886 = vrot.slane %v2885, 2
    %v2887 = vmax.f32 %v2885, %v2886
    %v2888 = vrot.slane %v2887, 1
    %v2889 = vmax.f32 %v2887, %v2888
    %v2890 = vsel %vm1658, %v2590, -inf
    %v2891 = vrot.slane %v2890, 4
    %v2892 = vmax.f32 %v2890, %v2891
    %v2893 = vrot.slane %v2892, 2
    %v2894 = vmax.f32 %v2892, %v2893
    %v2895 = vrot.slane %v2894, 1
    %v2896 = vmax.f32 %v2894, %v2895
    %v2897 = vsel %vm1658, %v2592, -inf
    %v2898 = vrot.slane %v2897, 4
    %v2899 = vmax.f32 %v2897, %v2898
    %v2900 = vrot.slane %v2899, 2
    %v2901 = vmax.f32 %v2899, %v2900
    %v2902 = vrot.slane %v2901, 1
    %v2903 = vmax.f32 %v2901, %v2902
    %v2904 = vsel %vm1658, %v2594, -inf
    %v2905 = vrot.slane %v2904, 4
    %v2906 = vmax.f32 %v2904, %v2905
    %v2907 = vrot.slane %v2906, 2
    %v2908 = vmax.f32 %v2906, %v2907
    %v2909 = vrot.slane %v2908, 1
    %v2910 = vmax.f32 %v2908, %v2909
    %v2911 = vsel %vm1658, %v2596, -inf
    %v2912 = vrot.slane %v2911, 4
    %v2913 = vmax.f32 %v2911, %v2912
    %v2914 = vrot.slane %v2913, 2
    %v2915 = vmax.f32 %v2913, %v2914
    %v2916 = vrot.slane %v2915, 1
    %v2917 = vmax.f32 %v2915, %v2916
    %v2918 = vsel %vm1658, %v2598, -inf
    %v2919 = vrot.slane %v2918, 4
    %v2920 = vmax.f32 %v2918, %v2919
    %v2921 = vrot.slane %v2920, 2
    %v2922 = vmax.f32 %v2920, %v2921
    %v2923 = vrot.slane %v2922, 1
    %v2924 = vmax.f32 %v2922, %v2923
    %v2925 = vsel %vm1658, %v2600, -inf
    %v2926 = vrot.slane %v2925, 4
    %v2927 = vmax.f32 %v2925, %v2926
    %v2928 = vrot.slane %v2927, 2
    %v2929 = vmax.f32 %v2927, %v2928
    %v2930 = vrot.slane %v2929, 1
    %v2931 = vmax.f32 %v2929, %v2930
    %v2932 = vsel %vm1658, %v2602, -inf
    %v2933 = vrot.slane %v2932, 4
    %v2934 = vmax.f32 %v2932, %v2933
    %v2935 = vrot.slane %v2934, 2
    %v2936 = vmax.f32 %v2934, %v2935
    %v2937 = vrot.slane %v2936, 1
    %v2938 = vmax.f32 %v2936, %v2937
    %v2939 = vadd.f32 %v2609, %v2665
    %v2940 = vadd.f32 %v2616, %v2672
    %v2941 = vadd.f32 %v2623, %v2679
    %v2942 = vadd.f32 %v2630, %v2686
    %v2943 = vadd.f32 %v2637, %v2693
    %v2944 = vadd.f32 %v2644, %v2700
    %v2945 = vadd.f32 %v2651, %v2707
    %v2946 = vadd.f32 %v2658, %v2714
    %v2947 = vadd.f32 %v2721, %v2777
    %v2948 = vadd.f32 %v2728, %v2784
    %v2949 = vadd.f32 %v2735, %v2791
    %v2950 = vadd.f32 %v2742, %v2798
    %v2951 = vadd.f32 %v2749, %v2805
    %v2952 = vadd.f32 %v2756, %v2812
    %v2953 = vadd.f32 %v2763, %v2819
    %v2954 = vadd.f32 %v2770, %v2826
    %v2955 = vadd.f32 %v2939, %v2947
    %v2956 = vadd.f32 %v2940, %v2948
    %v2957 = vadd.f32 %v2941, %v2949
    %v2958 = vadd.f32 %v2942, %v2950
    %v2959 = vadd.f32 %v2943, %v2951
    %v2960 = vadd.f32 %v2944, %v2952
    %v2961 = vadd.f32 %v2945, %v2953
    %v2962 = vadd.f32 %v2946, %v2954
    %v2963 = vadd.f32 %v2833, %v2889
    %v2964 = vadd.f32 %v2840, %v2896
    %v2965 = vadd.f32 %v2847, %v2903
    %v2966 = vadd.f32 %v2854, %v2910
    %v2967 = vadd.f32 %v2861, %v2917
    %v2968 = vadd.f32 %v2868, %v2924
    %v2969 = vadd.f32 %v2875, %v2931
    %v2970 = vadd.f32 %v2882, %v2938
    %v2971 = vadd.f32 %v2955, %v2963
    %v2972 = vadd.f32 %v2956, %v2964
    %v2973 = vadd.f32 %v2957, %v2965
    %v2974 = vadd.f32 %v2958, %v2966
    %v2975 = vadd.f32 %v2959, %v2967
    %v2976 = vadd.f32 %v2960, %v2968
    %v2977 = vadd.f32 %v2961, %v2969
    %v2978 = vadd.f32 %v2962, %v2970
    %v2979 = vmax.f32 %v338, %v340
    %v2980 = vmax.f32 %v2979, %v342
    %v2981 = vmax.f32 %v402, %v404
    %v2982 = vmax.f32 %v2981, %v406
    %v2983 = vmax.f32 %v466, %v468
    %v2984 = vmax.f32 %v2983, %v470
    %v2985 = vmax.f32 %v530, %v532
    %v2986 = vmax.f32 %v2985, %v534
    %v2987 = vmax.f32 %v594, %v596
    %v2988 = vmax.f32 %v2987, %v598
    %v2989 = vmax.f32 %v658, %v660
    %v2990 = vmax.f32 %v2989, %v662
    %v2991 = vmax.f32 %v722, %v724
    %v2992 = vmax.f32 %v2991, %v726
    %v2993 = vmax.f32 %v786, %v788
    %v2994 = vmax.f32 %v2993, %v790
    %v2995 = vmax.f32 %v339, %v341
    %v2996 = vmax.f32 %v2995, %v343
    %v2997 = vmax.f32 %v403, %v405
    %v2998 = vmax.f32 %v2997, %v407
    %v2999 = vmax.f32 %v467, %v469
    %v3000 = vmax.f32 %v2999, %v471
    %v3001 = vmax.f32 %v531, %v533
    %v3002 = vmax.f32 %v3001, %v535
    %v3003 = vmax.f32 %v595, %v597
    %v3004 = vmax.f32 %v3003, %v599
    %v3005 = vmax.f32 %v659, %v661
    %v3006 = vmax.f32 %v3005, %v663
    %v3007 = vmax.f32 %v723, %v725
    %v3008 = vmax.f32 %v3007, %v727
    %v3009 = vmax.f32 %v787, %v789
    %v3010 = vmax.f32 %v3009, %v791
    %v3011 = vsel %vm1373, %v2980, -inf
    %v3012 = vrot.slane %v3011, 4
    %v3013 = vmax.f32 %v3011, %v3012
    %v3014 = vrot.slane %v3013, 2
    %v3015 = vmax.f32 %v3013, %v3014
    %v3016 = vrot.slane %v3015, 1
    %v3017 = vmax.f32 %v3015, %v3016
    %v3018 = vsel %vm1373, %v2982, -inf
    %v3019 = vrot.slane %v3018, 4
    %v3020 = vmax.f32 %v3018, %v3019
    %v3021 = vrot.slane %v3020, 2
    %v3022 = vmax.f32 %v3020, %v3021
    %v3023 = vrot.slane %v3022, 1
    %v3024 = vmax.f32 %v3022, %v3023
    %v3025 = vsel %vm1373, %v2984, -inf
    %v3026 = vrot.slane %v3025, 4
    %v3027 = vmax.f32 %v3025, %v3026
    %v3028 = vrot.slane %v3027, 2
    %v3029 = vmax.f32 %v3027, %v3028
    %v3030 = vrot.slane %v3029, 1
    %v3031 = vmax.f32 %v3029, %v3030
    %v3032 = vsel %vm1373, %v2986, -inf
    %v3033 = vrot.slane %v3032, 4
    %v3034 = vmax.f32 %v3032, %v3033
    %v3035 = vrot.slane %v3034, 2
    %v3036 = vmax.f32 %v3034, %v3035
    %v3037 = vrot.slane %v3036, 1
    %v3038 = vmax.f32 %v3036, %v3037
    %v3039 = vsel %vm1373, %v2988, -inf
    %v3040 = vrot.slane %v3039, 4
    %v3041 = vmax.f32 %v3039, %v3040
    %v3042 = vrot.slane %v3041, 2
    %v3043 = vmax.f32 %v3041, %v3042
    %v3044 = vrot.slane %v3043, 1
    %v3045 = vmax.f32 %v3043, %v3044
    %v3046 = vsel %vm1373, %v2990, -inf
    %v3047 = vrot.slane %v3046, 4
    %v3048 = vmax.f32 %v3046, %v3047
    %v3049 = vrot.slane %v3048, 2
    %v3050 = vmax.f32 %v3048, %v3049
    %v3051 = vrot.slane %v3050, 1
    %v3052 = vmax.f32 %v3050, %v3051
    %v3053 = vsel %vm1373, %v2992, -inf
    %v3054 = vrot.slane %v3053, 4
    %v3055 = vmax.f32 %v3053, %v3054
    %v3056 = vrot.slane %v3055, 2
    %v3057 = vmax.f32 %v3055, %v3056
    %v3058 = vrot.slane %v3057, 1
    %v3059 = vmax.f32 %v3057, %v3058
    %v3060 = vsel %vm1373, %v2994, -inf
    %v3061 = vrot.slane %v3060, 4
    %v3062 = vmax.f32 %v3060, %v3061
    %v3063 = vrot.slane %v3062, 2
    %v3064 = vmax.f32 %v3062, %v3063
    %v3065 = vrot.slane %v3064, 1
    %v3066 = vmax.f32 %v3064, %v3065
    %v3067 = vsel %vm1430, %v2980, -inf
    %v3068 = vrot.slane %v3067, 4
    %v3069 = vmax.f32 %v3067, %v3068
    %v3070 = vrot.slane %v3069, 2
    %v3071 = vmax.f32 %v3069, %v3070
    %v3072 = vrot.slane %v3071, 1
    %v3073 = vmax.f32 %v3071, %v3072
    %v3074 = vsel %vm1430, %v2982, -inf
    %v3075 = vrot.slane %v3074, 4
    %v3076 = vmax.f32 %v3074, %v3075
    %v3077 = vrot.slane %v3076, 2
    %v3078 = vmax.f32 %v3076, %v3077
    %v3079 = vrot.slane %v3078, 1
    %v3080 = vmax.f32 %v3078, %v3079
    %v3081 = vsel %vm1430, %v2984, -inf
    %v3082 = vrot.slane %v3081, 4
    %v3083 = vmax.f32 %v3081, %v3082
    %v3084 = vrot.slane %v3083, 2
    %v3085 = vmax.f32 %v3083, %v3084
    %v3086 = vrot.slane %v3085, 1
    %v3087 = vmax.f32 %v3085, %v3086
    %v3088 = vsel %vm1430, %v2986, -inf
    %v3089 = vrot.slane %v3088, 4
    %v3090 = vmax.f32 %v3088, %v3089
    %v3091 = vrot.slane %v3090, 2
    %v3092 = vmax.f32 %v3090, %v3091
    %v3093 = vrot.slane %v3092, 1
    %v3094 = vmax.f32 %v3092, %v3093
    %v3095 = vsel %vm1430, %v2988, -inf
    %v3096 = vrot.slane %v3095, 4
    %v3097 = vmax.f32 %v3095, %v3096
    %v3098 = vrot.slane %v3097, 2
    %v3099 = vmax.f32 %v3097, %v3098
    %v3100 = vrot.slane %v3099, 1
    %v3101 = vmax.f32 %v3099, %v3100
    %v3102 = vsel %vm1430, %v2990, -inf
    %v3103 = vrot.slane %v3102, 4
    %v3104 = vmax.f32 %v3102, %v3103
    %v3105 = vrot.slane %v3104, 2
    %v3106 = vmax.f32 %v3104, %v3105
    %v3107 = vrot.slane %v3106, 1
    %v3108 = vmax.f32 %v3106, %v3107
    %v3109 = vsel %vm1430, %v2992, -inf
    %v3110 = vrot.slane %v3109, 4
    %v3111 = vmax.f32 %v3109, %v3110
    %v3112 = vrot.slane %v3111, 2
    %v3113 = vmax.f32 %v3111, %v3112
    %v3114 = vrot.slane %v3113, 1
    %v3115 = vmax.f32 %v3113, %v3114
    %v3116 = vsel %vm1430, %v2994, -inf
    %v3117 = vrot.slane %v3116, 4
    %v3118 = vmax.f32 %v3116, %v3117
    %v3119 = vrot.slane %v3118, 2
    %v3120 = vmax.f32 %v3118, %v3119
    %v3121 = vrot.slane %v3120, 1
    %v3122 = vmax.f32 %v3120, %v3121
    %v3123 = vsel %vm1487, %v2980, -inf
    %v3124 = vrot.slane %v3123, 4
    %v3125 = vmax.f32 %v3123, %v3124
    %v3126 = vrot.slane %v3125, 2
    %v3127 = vmax.f32 %v3125, %v3126
    %v3128 = vrot.slane %v3127, 1
    %v3129 = vmax.f32 %v3127, %v3128
    %v3130 = vsel %vm1487, %v2982, -inf
    %v3131 = vrot.slane %v3130, 4
    %v3132 = vmax.f32 %v3130, %v3131
    %v3133 = vrot.slane %v3132, 2
    %v3134 = vmax.f32 %v3132, %v3133
    %v3135 = vrot.slane %v3134, 1
    %v3136 = vmax.f32 %v3134, %v3135
    %v3137 = vsel %vm1487, %v2984, -inf
    %v3138 = vrot.slane %v3137, 4
    %v3139 = vmax.f32 %v3137, %v3138
    %v3140 = vrot.slane %v3139, 2
    %v3141 = vmax.f32 %v3139, %v3140
    %v3142 = vrot.slane %v3141, 1
    %v3143 = vmax.f32 %v3141, %v3142
    %v3144 = vsel %vm1487, %v2986, -inf
    %v3145 = vrot.slane %v3144, 4
    %v3146 = vmax.f32 %v3144, %v3145
    %v3147 = vrot.slane %v3146, 2
    %v3148 = vmax.f32 %v3146, %v3147
    %v3149 = vrot.slane %v3148, 1
    %v3150 = vmax.f32 %v3148, %v3149
    %v3151 = vsel %vm1487, %v2988, -inf
    %v3152 = vrot.slane %v3151, 4
    %v3153 = vmax.f32 %v3151, %v3152
    %v3154 = vrot.slane %v3153, 2
    %v3155 = vmax.f32 %v3153, %v3154
    %v3156 = vrot.slane %v3155, 1
    %v3157 = vmax.f32 %v3155, %v3156
    %v3158 = vsel %vm1487, %v2990, -inf
    %v3159 = vrot.slane %v3158, 4
    %v3160 = vmax.f32 %v3158, %v3159
    %v3161 = vrot.slane %v3160, 2
    %v3162 = vmax.f32 %v3160, %v3161
    %v3163 = vrot.slane %v3162, 1
    %v3164 = vmax.f32 %v3162, %v3163
    %v3165 = vsel %vm1487, %v2992, -inf
    %v3166 = vrot.slane %v3165, 4
    %v3167 = vmax.f32 %v3165, %v3166
    %v3168 = vrot.slane %v3167, 2
    %v3169 = vmax.f32 %v3167, %v3168
    %v3170 = vrot.slane %v3169, 1
    %v3171 = vmax.f32 %v3169, %v3170
    %v3172 = vsel %vm1487, %v2994, -inf
    %v3173 = vrot.slane %v3172, 4
    %v3174 = vmax.f32 %v3172, %v3173
    %v3175 = vrot.slane %v3174, 2
    %v3176 = vmax.f32 %v3174, %v3175
    %v3177 = vrot.slane %v3176, 1
    %v3178 = vmax.f32 %v3176, %v3177
    %v3179 = vsel %vm1544, %v2996, -inf
    %v3180 = vrot.slane %v3179, 4
    %v3181 = vmax.f32 %v3179, %v3180
    %v3182 = vrot.slane %v3181, 2
    %v3183 = vmax.f32 %v3181, %v3182
    %v3184 = vrot.slane %v3183, 1
    %v3185 = vmax.f32 %v3183, %v3184
    %v3186 = vsel %vm1544, %v2998, -inf
    %v3187 = vrot.slane %v3186, 4
    %v3188 = vmax.f32 %v3186, %v3187
    %v3189 = vrot.slane %v3188, 2
    %v3190 = vmax.f32 %v3188, %v3189
    %v3191 = vrot.slane %v3190, 1
    %v3192 = vmax.f32 %v3190, %v3191
    %v3193 = vsel %vm1544, %v3000, -inf
    %v3194 = vrot.slane %v3193, 4
    %v3195 = vmax.f32 %v3193, %v3194
    %v3196 = vrot.slane %v3195, 2
    %v3197 = vmax.f32 %v3195, %v3196
    %v3198 = vrot.slane %v3197, 1
    %v3199 = vmax.f32 %v3197, %v3198
    %v3200 = vsel %vm1544, %v3002, -inf
    %v3201 = vrot.slane %v3200, 4
    %v3202 = vmax.f32 %v3200, %v3201
    %v3203 = vrot.slane %v3202, 2
    %v3204 = vmax.f32 %v3202, %v3203
    %v3205 = vrot.slane %v3204, 1
    %v3206 = vmax.f32 %v3204, %v3205
    %v3207 = vsel %vm1544, %v3004, -inf
    %v3208 = vrot.slane %v3207, 4
    %v3209 = vmax.f32 %v3207, %v3208
    %v3210 = vrot.slane %v3209, 2
    %v3211 = vmax.f32 %v3209, %v3210
    %v3212 = vrot.slane %v3211, 1
    %v3213 = vmax.f32 %v3211, %v3212
    %v3214 = vsel %vm1544, %v3006, -inf
    %v3215 = vrot.slane %v3214, 4
    %v3216 = vmax.f32 %v3214, %v3215
    %v3217 = vrot.slane %v3216, 2
    %v3218 = vmax.f32 %v3216, %v3217
    %v3219 = vrot.slane %v3218, 1
    %v3220 = vmax.f32 %v3218, %v3219
    %v3221 = vsel %vm1544, %v3008, -inf
    %v3222 = vrot.slane %v3221, 4
    %v3223 = vmax.f32 %v3221, %v3222
    %v3224 = vrot.slane %v3223, 2
    %v3225 = vmax.f32 %v3223, %v3224
    %v3226 = vrot.slane %v3225, 1
    %v3227 = vmax.f32 %v3225, %v3226
    %v3228 = vsel %vm1544, %v3010, -inf
    %v3229 = vrot.slane %v3228, 4
    %v3230 = vmax.f32 %v3228, %v3229
    %v3231 = vrot.slane %v3230, 2
    %v3232 = vmax.f32 %v3230, %v3231
    %v3233 = vrot.slane %v3232, 1
    %v3234 = vmax.f32 %v3232, %v3233
    %v3235 = vsel %vm1601, %v2996, -inf
    %v3236 = vrot.slane %v3235, 4
    %v3237 = vmax.f32 %v3235, %v3236
    %v3238 = vrot.slane %v3237, 2
    %v3239 = vmax.f32 %v3237, %v3238
    %v3240 = vrot.slane %v3239, 1
    %v3241 = vmax.f32 %v3239, %v3240
    %v3242 = vsel %vm1601, %v2998, -inf
    %v3243 = vrot.slane %v3242, 4
    %v3244 = vmax.f32 %v3242, %v3243
    %v3245 = vrot.slane %v3244, 2
    %v3246 = vmax.f32 %v3244, %v3245
    %v3247 = vrot.slane %v3246, 1
    %v3248 = vmax.f32 %v3246, %v3247
    %v3249 = vsel %vm1601, %v3000, -inf
    %v3250 = vrot.slane %v3249, 4
    %v3251 = vmax.f32 %v3249, %v3250
    %v3252 = vrot.slane %v3251, 2
    %v3253 = vmax.f32 %v3251, %v3252
    %v3254 = vrot.slane %v3253, 1
    %v3255 = vmax.f32 %v3253, %v3254
    %v3256 = vsel %vm1601, %v3002, -inf
    %v3257 = vrot.slane %v3256, 4
    %v3258 = vmax.f32 %v3256, %v3257
    %v3259 = vrot.slane %v3258, 2
    %v3260 = vmax.f32 %v3258, %v3259
    %v3261 = vrot.slane %v3260, 1
    %v3262 = vmax.f32 %v3260, %v3261
    %v3263 = vsel %vm1601, %v3004, -inf
    %v3264 = vrot.slane %v3263, 4
    %v3265 = vmax.f32 %v3263, %v3264
    %v3266 = vrot.slane %v3265, 2
    %v3267 = vmax.f32 %v3265, %v3266
    %v3268 = vrot.slane %v3267, 1
    %v3269 = vmax.f32 %v3267, %v3268
    %v3270 = vsel %vm1601, %v3006, -inf
    %v3271 = vrot.slane %v3270, 4
    %v3272 = vmax.f32 %v3270, %v3271
    %v3273 = vrot.slane %v3272, 2
    %v3274 = vmax.f32 %v3272, %v3273
    %v3275 = vrot.slane %v3274, 1
    %v3276 = vmax.f32 %v3274, %v3275
    %v3277 = vsel %vm1601, %v3008, -inf
    %v3278 = vrot.slane %v3277, 4
    %v3279 = vmax.f32 %v3277, %v3278
    %v3280 = vrot.slane %v3279, 2
    %v3281 = vmax.f32 %v3279, %v3280
    %v3282 = vrot.slane %v3281, 1
    %v3283 = vmax.f32 %v3281, %v3282
    %v3284 = vsel %vm1601, %v3010, -inf
    %v3285 = vrot.slane %v3284, 4
    %v3286 = vmax.f32 %v3284, %v3285
    %v3287 = vrot.slane %v3286, 2
    %v3288 = vmax.f32 %v3286, %v3287
    %v3289 = vrot.slane %v3288, 1
    %v3290 = vmax.f32 %v3288, %v3289
    %v3291 = vsel %vm1658, %v2996, -inf
    %v3292 = vrot.slane %v3291, 4
    %v3293 = vmax.f32 %v3291, %v3292
    %v3294 = vrot.slane %v3293, 2
    %v3295 = vmax.f32 %v3293, %v3294
    %v3296 = vrot.slane %v3295, 1
    %v3297 = vmax.f32 %v3295, %v3296
    %v3298 = vsel %vm1658, %v2998, -inf
    %v3299 = vrot.slane %v3298, 4
    %v3300 = vmax.f32 %v3298, %v3299
    %v3301 = vrot.slane %v3300, 2
    %v3302 = vmax.f32 %v3300, %v3301
    %v3303 = vrot.slane %v3302, 1
    %v3304 = vmax.f32 %v3302, %v3303
    %v3305 = vsel %vm1658, %v3000, -inf
    %v3306 = vrot.slane %v3305, 4
    %v3307 = vmax.f32 %v3305, %v3306
    %v3308 = vrot.slane %v3307, 2
    %v3309 = vmax.f32 %v3307, %v3308
    %v3310 = vrot.slane %v3309, 1
    %v3311 = vmax.f32 %v3309, %v3310
    %v3312 = vsel %vm1658, %v3002, -inf
    %v3313 = vrot.slane %v3312, 4
    %v3314 = vmax.f32 %v3312, %v3313
    %v3315 = vrot.slane %v3314, 2
    %v3316 = vmax.f32 %v3314, %v3315
    %v3317 = vrot.slane %v3316, 1
    %v3318 = vmax.f32 %v3316, %v3317
    %v3319 = vsel %vm1658, %v3004, -inf
    %v3320 = vrot.slane %v3319, 4
    %v3321 = vmax.f32 %v3319, %v3320
    %v3322 = vrot.slane %v3321, 2
    %v3323 = vmax.f32 %v3321, %v3322
    %v3324 = vrot.slane %v3323, 1
    %v3325 = vmax.f32 %v3323, %v3324
    %v3326 = vsel %vm1658, %v3006, -inf
    %v3327 = vrot.slane %v3326, 4
    %v3328 = vmax.f32 %v3326, %v3327
    %v3329 = vrot.slane %v3328, 2
    %v3330 = vmax.f32 %v3328, %v3329
    %v3331 = vrot.slane %v3330, 1
    %v3332 = vmax.f32 %v3330, %v3331
    %v3333 = vsel %vm1658, %v3008, -inf
    %v3334 = vrot.slane %v3333, 4
    %v3335 = vmax.f32 %v3333, %v3334
    %v3336 = vrot.slane %v3335, 2
    %v3337 = vmax.f32 %v3335, %v3336
    %v3338 = vrot.slane %v3337, 1
    %v3339 = vmax.f32 %v3337, %v3338
    %v3340 = vsel %vm1658, %v3010, -inf
    %v3341 = vrot.slane %v3340, 4
    %v3342 = vmax.f32 %v3340, %v3341
    %v3343 = vrot.slane %v3342, 2
    %v3344 = vmax.f32 %v3342, %v3343
    %v3345 = vrot.slane %v3344, 1
    %v3346 = vmax.f32 %v3344, %v3345
    %v3347 = vadd.f32 %v3017, %v3073
    %v3348 = vadd.f32 %v3024, %v3080
    %v3349 = vadd.f32 %v3031, %v3087
    %v3350 = vadd.f32 %v3038, %v3094
    %v3351 = vadd.f32 %v3045, %v3101
    %v3352 = vadd.f32 %v3052, %v3108
    %v3353 = vadd.f32 %v3059, %v3115
    %v3354 = vadd.f32 %v3066, %v3122
    %v3355 = vadd.f32 %v3129, %v3185
    %v3356 = vadd.f32 %v3136, %v3192
    %v3357 = vadd.f32 %v3143, %v3199
    %v3358 = vadd.f32 %v3150, %v3206
    %v3359 = vadd.f32 %v3157, %v3213
    %v3360 = vadd.f32 %v3164, %v3220
    %v3361 = vadd.f32 %v3171, %v3227
    %v3362 = vadd.f32 %v3178, %v3234
    %v3363 = vadd.f32 %v3347, %v3355
    %v3364 = vadd.f32 %v3348, %v3356
    %v3365 = vadd.f32 %v3349, %v3357
    %v3366 = vadd.f32 %v3350, %v3358
    %v3367 = vadd.f32 %v3351, %v3359
    %v3368 = vadd.f32 %v3352, %v3360
    %v3369 = vadd.f32 %v3353, %v3361
    %v3370 = vadd.f32 %v3354, %v3362
    %v3371 = vadd.f32 %v3241, %v3297
    %v3372 = vadd.f32 %v3248, %v3304
    %v3373 = vadd.f32 %v3255, %v3311
    %v3374 = vadd.f32 %v3262, %v3318
    %v3375 = vadd.f32 %v3269, %v3325
    %v3376 = vadd.f32 %v3276, %v3332
    %v3377 = vadd.f32 %v3283, %v3339
    %v3378 = vadd.f32 %v3290, %v3346
    %v3379 = vadd.f32 %v3363, %v3371
    %v3380 = vadd.f32 %v3364, %v3372
    %v3381 = vadd.f32 %v3365, %v3373
    %v3382 = vadd.f32 %v3366, %v3374
    %v3383 = vadd.f32 %v3367, %v3375
    %v3384 = vadd.f32 %v3368, %v3376
    %v3385 = vadd.f32 %v3369, %v3377
    %v3386 = vadd.f32 %v3370, %v3378
    %v3387 = vmax.f32 %v344, %v346
    %v3388 = vmax.f32 %v408, %v410
    %v3389 = vmax.f32 %v472, %v474
    %v3390 = vmax.f32 %v536, %v538
    %v3391 = vmax.f32 %v600, %v602
    %v3392 = vmax.f32 %v664, %v666
    %v3393 = vmax.f32 %v728, %v730
    %v3394 = vmax.f32 %v792, %v794
    %v3395 = vmax.f32 %v345, %v347
    %v3396 = vmax.f32 %v409, %v411
    %v3397 = vmax.f32 %v473, %v475
    %v3398 = vmax.f32 %v537, %v539
    %v3399 = vmax.f32 %v601, %v603
    %v3400 = vmax.f32 %v665, %v667
    %v3401 = vmax.f32 %v729, %v731
    %v3402 = vmax.f32 %v793, %v795
    %v3403 = vsel %vm1373, %v3387, -inf
    %v3404 = vrot.slane %v3403, 4
    %v3405 = vmax.f32 %v3403, %v3404
    %v3406 = vrot.slane %v3405, 2
    %v3407 = vmax.f32 %v3405, %v3406
    %v3408 = vrot.slane %v3407, 1
    %v3409 = vmax.f32 %v3407, %v3408
    %v3410 = vsel %vm1373, %v3388, -inf
    %v3411 = vrot.slane %v3410, 4
    %v3412 = vmax.f32 %v3410, %v3411
    %v3413 = vrot.slane %v3412, 2
    %v3414 = vmax.f32 %v3412, %v3413
    %v3415 = vrot.slane %v3414, 1
    %v3416 = vmax.f32 %v3414, %v3415
    %v3417 = vsel %vm1373, %v3389, -inf
    %v3418 = vrot.slane %v3417, 4
    %v3419 = vmax.f32 %v3417, %v3418
    %v3420 = vrot.slane %v3419, 2
    %v3421 = vmax.f32 %v3419, %v3420
    %v3422 = vrot.slane %v3421, 1
    %v3423 = vmax.f32 %v3421, %v3422
    %v3424 = vsel %vm1373, %v3390, -inf
    %v3425 = vrot.slane %v3424, 4
    %v3426 = vmax.f32 %v3424, %v3425
    %v3427 = vrot.slane %v3426, 2
    %v3428 = vmax.f32 %v3426, %v3427
    %v3429 = vrot.slane %v3428, 1
    %v3430 = vmax.f32 %v3428, %v3429
    %v3431 = vsel %vm1373, %v3391, -inf
    %v3432 = vrot.slane %v3431, 4
    %v3433 = vmax.f32 %v3431, %v3432
    %v3434 = vrot.slane %v3433, 2
    %v3435 = vmax.f32 %v3433, %v3434
    %v3436 = vrot.slane %v3435, 1
    %v3437 = vmax.f32 %v3435, %v3436
    %v3438 = vsel %vm1373, %v3392, -inf
    %v3439 = vrot.slane %v3438, 4
    %v3440 = vmax.f32 %v3438, %v3439
    %v3441 = vrot.slane %v3440, 2
    %v3442 = vmax.f32 %v3440, %v3441
    %v3443 = vrot.slane %v3442, 1
    %v3444 = vmax.f32 %v3442, %v3443
    %v3445 = vsel %vm1373, %v3393, -inf
    %v3446 = vrot.slane %v3445, 4
    %v3447 = vmax.f32 %v3445, %v3446
    %v3448 = vrot.slane %v3447, 2
    %v3449 = vmax.f32 %v3447, %v3448
    %v3450 = vrot.slane %v3449, 1
    %v3451 = vmax.f32 %v3449, %v3450
    %v3452 = vsel %vm1373, %v3394, -inf
    %v3453 = vrot.slane %v3452, 4
    %v3454 = vmax.f32 %v3452, %v3453
    %v3455 = vrot.slane %v3454, 2
    %v3456 = vmax.f32 %v3454, %v3455
    %v3457 = vrot.slane %v3456, 1
    %v3458 = vmax.f32 %v3456, %v3457
    %v3459 = vsel %vm1430, %v3387, -inf
    %v3460 = vrot.slane %v3459, 4
    %v3461 = vmax.f32 %v3459, %v3460
    %v3462 = vrot.slane %v3461, 2
    %v3463 = vmax.f32 %v3461, %v3462
    %v3464 = vrot.slane %v3463, 1
    %v3465 = vmax.f32 %v3463, %v3464
    %v3466 = vsel %vm1430, %v3388, -inf
    %v3467 = vrot.slane %v3466, 4
    %v3468 = vmax.f32 %v3466, %v3467
    %v3469 = vrot.slane %v3468, 2
    %v3470 = vmax.f32 %v3468, %v3469
    %v3471 = vrot.slane %v3470, 1
    %v3472 = vmax.f32 %v3470, %v3471
    %v3473 = vsel %vm1430, %v3389, -inf
    %v3474 = vrot.slane %v3473, 4
    %v3475 = vmax.f32 %v3473, %v3474
    %v3476 = vrot.slane %v3475, 2
    %v3477 = vmax.f32 %v3475, %v3476
    %v3478 = vrot.slane %v3477, 1
    %v3479 = vmax.f32 %v3477, %v3478
    %v3480 = vsel %vm1430, %v3390, -inf
    %v3481 = vrot.slane %v3480, 4
    %v3482 = vmax.f32 %v3480, %v3481
    %v3483 = vrot.slane %v3482, 2
    %v3484 = vmax.f32 %v3482, %v3483
    %v3485 = vrot.slane %v3484, 1
    %v3486 = vmax.f32 %v3484, %v3485
    %v3487 = vsel %vm1430, %v3391, -inf
    %v3488 = vrot.slane %v3487, 4
    %v3489 = vmax.f32 %v3487, %v3488
    %v3490 = vrot.slane %v3489, 2
    %v3491 = vmax.f32 %v3489, %v3490
    %v3492 = vrot.slane %v3491, 1
    %v3493 = vmax.f32 %v3491, %v3492
    %v3494 = vsel %vm1430, %v3392, -inf
    %v3495 = vrot.slane %v3494, 4
    %v3496 = vmax.f32 %v3494, %v3495
    %v3497 = vrot.slane %v3496, 2
    %v3498 = vmax.f32 %v3496, %v3497
    %v3499 = vrot.slane %v3498, 1
    %v3500 = vmax.f32 %v3498, %v3499
    %v3501 = vsel %vm1430, %v3393, -inf
    %v3502 = vrot.slane %v3501, 4
    %v3503 = vmax.f32 %v3501, %v3502
    %v3504 = vrot.slane %v3503, 2
    %v3505 = vmax.f32 %v3503, %v3504
    %v3506 = vrot.slane %v3505, 1
    %v3507 = vmax.f32 %v3505, %v3506
    %v3508 = vsel %vm1430, %v3394, -inf
    %v3509 = vrot.slane %v3508, 4
    %v3510 = vmax.f32 %v3508, %v3509
    %v3511 = vrot.slane %v3510, 2
    %v3512 = vmax.f32 %v3510, %v3511
    %v3513 = vrot.slane %v3512, 1
    %v3514 = vmax.f32 %v3512, %v3513
    %v3515 = vsel %vm1487, %v3387, -inf
    %v3516 = vrot.slane %v3515, 4
    %v3517 = vmax.f32 %v3515, %v3516
    %v3518 = vrot.slane %v3517, 2
    %v3519 = vmax.f32 %v3517, %v3518
    %v3520 = vrot.slane %v3519, 1
    %v3521 = vmax.f32 %v3519, %v3520
    %v3522 = vsel %vm1487, %v3388, -inf
    %v3523 = vrot.slane %v3522, 4
    %v3524 = vmax.f32 %v3522, %v3523
    %v3525 = vrot.slane %v3524, 2
    %v3526 = vmax.f32 %v3524, %v3525
    %v3527 = vrot.slane %v3526, 1
    %v3528 = vmax.f32 %v3526, %v3527
    %v3529 = vsel %vm1487, %v3389, -inf
    %v3530 = vrot.slane %v3529, 4
    %v3531 = vmax.f32 %v3529, %v3530
    %v3532 = vrot.slane %v3531, 2
    %v3533 = vmax.f32 %v3531, %v3532
    %v3534 = vrot.slane %v3533, 1
    %v3535 = vmax.f32 %v3533, %v3534
    %v3536 = vsel %vm1487, %v3390, -inf
    %v3537 = vrot.slane %v3536, 4
    %v3538 = vmax.f32 %v3536, %v3537
    %v3539 = vrot.slane %v3538, 2
    %v3540 = vmax.f32 %v3538, %v3539
    %v3541 = vrot.slane %v3540, 1
    %v3542 = vmax.f32 %v3540, %v3541
    %v3543 = vsel %vm1487, %v3391, -inf
    %v3544 = vrot.slane %v3543, 4
    %v3545 = vmax.f32 %v3543, %v3544
    %v3546 = vrot.slane %v3545, 2
    %v3547 = vmax.f32 %v3545, %v3546
    %v3548 = vrot.slane %v3547, 1
    %v3549 = vmax.f32 %v3547, %v3548
    %v3550 = vsel %vm1487, %v3392, -inf
    %v3551 = vrot.slane %v3550, 4
    %v3552 = vmax.f32 %v3550, %v3551
    %v3553 = vrot.slane %v3552, 2
    %v3554 = vmax.f32 %v3552, %v3553
    %v3555 = vrot.slane %v3554, 1
    %v3556 = vmax.f32 %v3554, %v3555
    %v3557 = vsel %vm1487, %v3393, -inf
    %v3558 = vrot.slane %v3557, 4
    %v3559 = vmax.f32 %v3557, %v3558
    %v3560 = vrot.slane %v3559, 2
    %v3561 = vmax.f32 %v3559, %v3560
    %v3562 = vrot.slane %v3561, 1
    %v3563 = vmax.f32 %v3561, %v3562
    %v3564 = vsel %vm1487, %v3394, -inf
    %v3565 = vrot.slane %v3564, 4
    %v3566 = vmax.f32 %v3564, %v3565
    %v3567 = vrot.slane %v3566, 2
    %v3568 = vmax.f32 %v3566, %v3567
    %v3569 = vrot.slane %v3568, 1
    %v3570 = vmax.f32 %v3568, %v3569
    %v3571 = vsel %vm1544, %v3395, -inf
    %v3572 = vrot.slane %v3571, 4
    %v3573 = vmax.f32 %v3571, %v3572
    %v3574 = vrot.slane %v3573, 2
    %v3575 = vmax.f32 %v3573, %v3574
    %v3576 = vrot.slane %v3575, 1
    %v3577 = vmax.f32 %v3575, %v3576
    %v3578 = vsel %vm1544, %v3396, -inf
    %v3579 = vrot.slane %v3578, 4
    %v3580 = vmax.f32 %v3578, %v3579
    %v3581 = vrot.slane %v3580, 2
    %v3582 = vmax.f32 %v3580, %v3581
    %v3583 = vrot.slane %v3582, 1
    %v3584 = vmax.f32 %v3582, %v3583
    %v3585 = vsel %vm1544, %v3397, -inf
    %v3586 = vrot.slane %v3585, 4
    %v3587 = vmax.f32 %v3585, %v3586
    %v3588 = vrot.slane %v3587, 2
    %v3589 = vmax.f32 %v3587, %v3588
    %v3590 = vrot.slane %v3589, 1
    %v3591 = vmax.f32 %v3589, %v3590
    %v3592 = vsel %vm1544, %v3398, -inf
    %v3593 = vrot.slane %v3592, 4
    %v3594 = vmax.f32 %v3592, %v3593
    %v3595 = vrot.slane %v3594, 2
    %v3596 = vmax.f32 %v3594, %v3595
    %v3597 = vrot.slane %v3596, 1
    %v3598 = vmax.f32 %v3596, %v3597
    %v3599 = vsel %vm1544, %v3399, -inf
    %v3600 = vrot.slane %v3599, 4
    %v3601 = vmax.f32 %v3599, %v3600
    %v3602 = vrot.slane %v3601, 2
    %v3603 = vmax.f32 %v3601, %v3602
    %v3604 = vrot.slane %v3603, 1
    %v3605 = vmax.f32 %v3603, %v3604
    %v3606 = vsel %vm1544, %v3400, -inf
    %v3607 = vrot.slane %v3606, 4
    %v3608 = vmax.f32 %v3606, %v3607
    %v3609 = vrot.slane %v3608, 2
    %v3610 = vmax.f32 %v3608, %v3609
    %v3611 = vrot.slane %v3610, 1
    %v3612 = vmax.f32 %v3610, %v3611
    %v3613 = vsel %vm1544, %v3401, -inf
    %v3614 = vrot.slane %v3613, 4
    %v3615 = vmax.f32 %v3613, %v3614
    %v3616 = vrot.slane %v3615, 2
    %v3617 = vmax.f32 %v3615, %v3616
    %v3618 = vrot.slane %v3617, 1
    %v3619 = vmax.f32 %v3617, %v3618
    %v3620 = vsel %vm1544, %v3402, -inf
    %v3621 = vrot.slane %v3620, 4
    %v3622 = vmax.f32 %v3620, %v3621
    %v3623 = vrot.slane %v3622, 2
    %v3624 = vmax.f32 %v3622, %v3623
    %v3625 = vrot.slane %v3624, 1
    %v3626 = vmax.f32 %v3624, %v3625
    %v3627 = vsel %vm1601, %v3395, -inf
    %v3628 = vrot.slane %v3627, 4
    %v3629 = vmax.f32 %v3627, %v3628
    %v3630 = vrot.slane %v3629, 2
    %v3631 = vmax.f32 %v3629, %v3630
    %v3632 = vrot.slane %v3631, 1
    %v3633 = vmax.f32 %v3631, %v3632
    %v3634 = vsel %vm1601, %v3396, -inf
    %v3635 = vrot.slane %v3634, 4
    %v3636 = vmax.f32 %v3634, %v3635
    %v3637 = vrot.slane %v3636, 2
    %v3638 = vmax.f32 %v3636, %v3637
    %v3639 = vrot.slane %v3638, 1
    %v3640 = vmax.f32 %v3638, %v3639
    %v3641 = vsel %vm1601, %v3397, -inf
    %v3642 = vrot.slane %v3641, 4
    %v3643 = vmax.f32 %v3641, %v3642
    %v3644 = vrot.slane %v3643, 2
    %v3645 = vmax.f32 %v3643, %v3644
    %v3646 = vrot.slane %v3645, 1
    %v3647 = vmax.f32 %v3645, %v3646
    %v3648 = vsel %vm1601, %v3398, -inf
    %v3649 = vrot.slane %v3648, 4
    %v3650 = vmax.f32 %v3648, %v3649
    %v3651 = vrot.slane %v3650, 2
    %v3652 = vmax.f32 %v3650, %v3651
    %v3653 = vrot.slane %v3652, 1
    %v3654 = vmax.f32 %v3652, %v3653
    %v3655 = vsel %vm1601, %v3399, -inf
    %v3656 = vrot.slane %v3655, 4
    %v3657 = vmax.f32 %v3655, %v3656
    %v3658 = vrot.slane %v3657, 2
    %v3659 = vmax.f32 %v3657, %v3658
    %v3660 = vrot.slane %v3659, 1
    %v3661 = vmax.f32 %v3659, %v3660
    %v3662 = vsel %vm1601, %v3400, -inf
    %v3663 = vrot.slane %v3662, 4
    %v3664 = vmax.f32 %v3662, %v3663
    %v3665 = vrot.slane %v3664, 2
    %v3666 = vmax.f32 %v3664, %v3665
    %v3667 = vrot.slane %v3666, 1
    %v3668 = vmax.f32 %v3666, %v3667
    %v3669 = vsel %vm1601, %v3401, -inf
    %v3670 = vrot.slane %v3669, 4
    %v3671 = vmax.f32 %v3669, %v3670
    %v3672 = vrot.slane %v3671, 2
    %v3673 = vmax.f32 %v3671, %v3672
    %v3674 = vrot.slane %v3673, 1
    %v3675 = vmax.f32 %v3673, %v3674
    %v3676 = vsel %vm1601, %v3402, -inf
    %v3677 = vrot.slane %v3676, 4
    %v3678 = vmax.f32 %v3676, %v3677
    %v3679 = vrot.slane %v3678, 2
    %v3680 = vmax.f32 %v3678, %v3679
    %v3681 = vrot.slane %v3680, 1
    %v3682 = vmax.f32 %v3680, %v3681
    %v3683 = vsel %vm1658, %v3395, -inf
    %v3684 = vrot.slane %v3683, 4
    %v3685 = vmax.f32 %v3683, %v3684
    %v3686 = vrot.slane %v3685, 2
    %v3687 = vmax.f32 %v3685, %v3686
    %v3688 = vrot.slane %v3687, 1
    %v3689 = vmax.f32 %v3687, %v3688
    %v3690 = vsel %vm1658, %v3396, -inf
    %v3691 = vrot.slane %v3690, 4
    %v3692 = vmax.f32 %v3690, %v3691
    %v3693 = vrot.slane %v3692, 2
    %v3694 = vmax.f32 %v3692, %v3693
    %v3695 = vrot.slane %v3694, 1
    %v3696 = vmax.f32 %v3694, %v3695
    %v3697 = vsel %vm1658, %v3397, -inf
    %v3698 = vrot.slane %v3697, 4
    %v3699 = vmax.f32 %v3697, %v3698
    %v3700 = vrot.slane %v3699, 2
    %v3701 = vmax.f32 %v3699, %v3700
    %v3702 = vrot.slane %v3701, 1
    %v3703 = vmax.f32 %v3701, %v3702
    %v3704 = vsel %vm1658, %v3398, -inf
    %v3705 = vrot.slane %v3704, 4
    %v3706 = vmax.f32 %v3704, %v3705
    %v3707 = vrot.slane %v3706, 2
    %v3708 = vmax.f32 %v3706, %v3707
    %v3709 = vrot.slane %v3708, 1
    %v3710 = vmax.f32 %v3708, %v3709
    %v3711 = vsel %vm1658, %v3399, -inf
    %v3712 = vrot.slane %v3711, 4
    %v3713 = vmax.f32 %v3711, %v3712
    %v3714 = vrot.slane %v3713, 2
    %v3715 = vmax.f32 %v3713, %v3714
    %v3716 = vrot.slane %v3715, 1
    %v3717 = vmax.f32 %v3715, %v3716
    %v3718 = vsel %vm1658, %v3400, -inf
    %v3719 = vrot.slane %v3718, 4
    %v3720 = vmax.f32 %v3718, %v3719
    %v3721 = vrot.slane %v3720, 2
    %v3722 = vmax.f32 %v3720, %v3721
    %v3723 = vrot.slane %v3722, 1
    %v3724 = vmax.f32 %v3722, %v3723
    %v3725 = vsel %vm1658, %v3401, -inf
    %v3726 = vrot.slane %v3725, 4
    %v3727 = vmax.f32 %v3725, %v3726
    %v3728 = vrot.slane %v3727, 2
    %v3729 = vmax.f32 %v3727, %v3728
    %v3730 = vrot.slane %v3729, 1
    %v3731 = vmax.f32 %v3729, %v3730
    %v3732 = vsel %vm1658, %v3402, -inf
    %v3733 = vrot.slane %v3732, 4
    %v3734 = vmax.f32 %v3732, %v3733
    %v3735 = vrot.slane %v3734, 2
    %v3736 = vmax.f32 %v3734, %v3735
    %v3737 = vrot.slane %v3736, 1
    %v3738 = vmax.f32 %v3736, %v3737
    %v3739 = vadd.f32 %v3409, %v3465
    %v3740 = vadd.f32 %v3416, %v3472
    %v3741 = vadd.f32 %v3423, %v3479
    %v3742 = vadd.f32 %v3430, %v3486
    %v3743 = vadd.f32 %v3437, %v3493
    %v3744 = vadd.f32 %v3444, %v3500
    %v3745 = vadd.f32 %v3451, %v3507
    %v3746 = vadd.f32 %v3458, %v3514
    %v3747 = vadd.f32 %v3521, %v3577
    %v3748 = vadd.f32 %v3528, %v3584
    %v3749 = vadd.f32 %v3535, %v3591
    %v3750 = vadd.f32 %v3542, %v3598
    %v3751 = vadd.f32 %v3549, %v3605
    %v3752 = vadd.f32 %v3556, %v3612
    %v3753 = vadd.f32 %v3563, %v3619
    %v3754 = vadd.f32 %v3570, %v3626
    %v3755 = vadd.f32 %v3739, %v3747
    %v3756 = vadd.f32 %v3740, %v3748
    %v3757 = vadd.f32 %v3741, %v3749
    %v3758 = vadd.f32 %v3742, %v3750
    %v3759 = vadd.f32 %v3743, %v3751
    %v3760 = vadd.f32 %v3744, %v3752
    %v3761 = vadd.f32 %v3745, %v3753
    %v3762 = vadd.f32 %v3746, %v3754
    %v3763 = vadd.f32 %v3633, %v3689
    %v3764 = vadd.f32 %v3640, %v3696
    %v3765 = vadd.f32 %v3647, %v3703
    %v3766 = vadd.f32 %v3654, %v3710
    %v3767 = vadd.f32 %v3661, %v3717
    %v3768 = vadd.f32 %v3668, %v3724
    %v3769 = vadd.f32 %v3675, %v3731
    %v3770 = vadd.f32 %v3682, %v3738
    %v3771 = vadd.f32 %v3755, %v3763
    %v3772 = vadd.f32 %v3756, %v3764
    %v3773 = vadd.f32 %v3757, %v3765
    %v3774 = vadd.f32 %v3758, %v3766
    %v3775 = vadd.f32 %v3759, %v3767
    %v3776 = vadd.f32 %v3760, %v3768
    %v3777 = vadd.f32 %v3761, %v3769
    %v3778 = vadd.f32 %v3762, %v3770
    %v3779 = vadd.f32 %v1747, %v2155
    %v3780 = vadd.f32 %v1748, %v2156
    %v3781 = vadd.f32 %v1749, %v2157
    %v3782 = vadd.f32 %v1750, %v2158
    %v3783 = vadd.f32 %v1751, %v2159
    %v3784 = vadd.f32 %v1752, %v2160
    %v3785 = vadd.f32 %v1753, %v2161
    %v3786 = vadd.f32 %v1754, %v2162
    %v3787 = vadd.f32 %v2563, %v2971
    %v3788 = vadd.f32 %v2564, %v2972
    %v3789 = vadd.f32 %v2565, %v2973
    %v3790 = vadd.f32 %v2566, %v2974
    %v3791 = vadd.f32 %v2567, %v2975
    %v3792 = vadd.f32 %v2568, %v2976
    %v3793 = vadd.f32 %v2569, %v2977
    %v3794 = vadd.f32 %v2570, %v2978
    %v3795 = vadd.f32 %v3779, %v3787
    %v3796 = vadd.f32 %v3780, %v3788
    %v3797 = vadd.f32 %v3781, %v3789
    %v3798 = vadd.f32 %v3782, %v3790
    %v3799 = vadd.f32 %v3783, %v3791
    %v3800 = vadd.f32 %v3784, %v3792
    %v3801 = vadd.f32 %v3785, %v3793
    %v3802 = vadd.f32 %v3786, %v3794
    %v3803 = vadd.f32 %v3379, %v3771
    %v3804 = vadd.f32 %v3380, %v3772
    %v3805 = vadd.f32 %v3381, %v3773
    %v3806 = vadd.f32 %v3382, %v3774
    %v3807 = vadd.f32 %v3383, %v3775
    %v3808 = vadd.f32 %v3384, %v3776
    %v3809 = vadd.f32 %v3385, %v3777
    %v3810 = vadd.f32 %v3386, %v3778
    %v3811 = vadd.f32 %v3795, %v3803
    %v3812 = vadd.f32 %v3796, %v3804
    %v3813 = vadd.f32 %v3797, %v3805
    %v3814 = vadd.f32 %v3798, %v3806
    %v3815 = vadd.f32 %v3799, %v3807
    %v3816 = vadd.f32 %v3800, %v3808
    %v3817 = vadd.f32 %v3801, %v3809
    %v3818 = vadd.f32 %v3802, %v3810
    %v3819 = vmul.f32 %v3811, 0.027777778
    %v3820 = vmul.f32 %v3812, 0.027777778
    %v3821 = vmul.f32 %v3813, 0.027777778
    %v3822 = vmul.f32 %v3814, 0.027777778
    %v3823 = vmul.f32 %v3815, 0.027777778
    %v3824 = vmul.f32 %v3816, 0.027777778
    %v3825 = vmul.f32 %v3817, 0.027777778
    %v3826 = vmul.f32 %v3818, 0.027777778
    %v3835 = vcombine.low %v3819, %v3820
    %v3836 = vcombine.low %v3821, %v3822
    %v3837 = vcombine.low %v3823, %v3824
    %v3838 = vcombine.low %v3825, %v3826
    %v3840 = vunpack.c.l.s4 1966171168
    %v3841 = vunpack.c.0.s8 %v3840
    %v3842 = vlaneseq
    %v3843 = vshrl.u32 %v3842, 7
    %v3844 = vsub.s32 %v3841, %v3843
    %v3845 = vrot.slane %v3835, %v3844
    %v3847 = vunpack.c.l.s4 1966171168
    %v3848 = vunpack.c.0.s8 %v3847
    %v3849 = vlaneseq
    %v3850 = vshrl.u32 %v3849, 7
    %v3851 = vsub.s32 %v3848, %v3850
    %v3852 = vrot.slane %v3836, %v3851
    %v3854 = vunpack.c.l.s4 1966171168
    %v3855 = vunpack.c.0.s8 %v3854
    %v3856 = vlaneseq
    %v3857 = vshrl.u32 %v3856, 7
    %v3858 = vsub.s32 %v3855, %v3857
    %v3859 = vrot.slane %v3837, %v3858
    %v3861 = vunpack.c.l.s4 1966171168
    %v3862 = vunpack.c.0.s8 %v3861
    %v3863 = vlaneseq
    %v3864 = vshrl.u32 %v3863, 7
    %v3865 = vsub.s32 %v3862, %v3864
    %v3866 = vrot.slane %v3838, %v3865
    %v3867 = vcombine.low %v3845, %v3852
    %v3868 = vcombine.low %v3859, %v3866
    %v3870 = vunpack.c.l.s4 1966171168
    %v3871 = vunpack.c.0.s8 %v3870
    %v3872 = vlaneseq
    %v3873 = vshrl.u32 %v3872, 7
    %v3874 = vsub.s32 %v3871, %v3873
    %v3875 = vrot.slane %v3867, %v3874
    %v3877 = vunpack.c.l.s4 1966171168
    %v3878 = vunpack.c.0.s8 %v3877
    %v3879 = vlaneseq
    %v3880 = vshrl.u32 %v3879, 7
    %v3881 = vsub.s32 %v3878, %v3880
    %v3882 = vrot.slane %v3868, %v3881
    %v3883 = vcombine.low %v3875, %v3882
    %3885 = vst [vmem:[#allocation4] ss:$2 sm:$0xff] %v3883
    %v3894 = vcombine.low %v1349, %v1350
    %v3895 = vcombine.low %v1351, %v1352
    %v3896 = vcombine.low %v1353, %v1354
    %v3897 = vcombine.low %v1355, %v1356
    %v3899 = vunpack.c.l.s4 1966171168
    %v3900 = vunpack.c.0.s8 %v3899
    %v3901 = vlaneseq
    %v3902 = vshrl.u32 %v3901, 7
    %v3903 = vsub.s32 %v3900, %v3902
    %v3904 = vrot.slane %v3894, %v3903
    %v3906 = vunpack.c.l.s4 1966171168
    %v3907 = vunpack.c.0.s8 %v3906
    %v3908 = vlaneseq
    %v3909 = vshrl.u32 %v3908, 7
    %v3910 = vsub.s32 %v3907, %v3909
    %v3911 = vrot.slane %v3895, %v3910
    %v3913 = vunpack.c.l.s4 1966171168
    %v3914 = vunpack.c.0.s8 %v3913
    %v3915 = vlaneseq
    %v3916 = vshrl.u32 %v3915, 7
    %v3917 = vsub.s32 %v3914, %v3916
    %v3918 = vrot.slane %v3896, %v3917
    %v3920 = vunpack.c.l.s4 1966171168
    %v3921 = vunpack.c.0.s8 %v3920
    %v3922 = vlaneseq
    %v3923 = vshrl.u32 %v3922, 7
    %v3924 = vsub.s32 %v3921, %v3923
    %v3925 = vrot.slane %v3897, %v3924
    %v3926 = vcombine.low %v3904, %v3911
    %v3927 = vcombine.low %v3918, %v3925
    %v3929 = vunpack.c.l.s4 1966171168
    %v3930 = vunpack.c.0.s8 %v3929
    %v3931 = vlaneseq
    %v3932 = vshrl.u32 %v3931, 7
    %v3933 = vsub.s32 %v3930, %v3932
    %v3934 = vrot.slane %v3926, %v3933
    %v3936 = vunpack.c.l.s4 1966171168
    %v3937 = vunpack.c.0.s8 %v3936
    %v3938 = vlaneseq
    %v3939 = vshrl.u32 %v3938, 7
    %v3940 = vsub.s32 %v3937, %v3939
    %v3941 = vrot.slane %v3927, %v3940
    %v3942 = vcombine.low %v3934, %v3941
    %s3944 = scalar_lea.vmem [#allocation4], 1
    %3945 = vst [vmem:[%s3944] ss:$2 sm:$0xff] %v3942
    %v3946 = vpack.c.bf16 %v3819, %v3819
    %v3947 = vpack.c.bf16 %v3820, %v3820
    %v3948 = vpack.c.bf16 %v3821, %v3821
    %v3949 = vpack.c.bf16 %v3822, %v3822
    %v3950 = vpack.c.bf16 %v3823, %v3823
    %v3951 = vpack.c.bf16 %v3824, %v3824
    %v3952 = vpack.c.bf16 %v3825, %v3825
    %v3953 = vpack.c.bf16 %v3826, %v3826
    %v3954 = vld [vmem:[%s1] sm:$0xf]
    %v3955 = vld [vmem:[%s1 + $0x4] sm:$0xf]
    %v3956 = vld [vmem:[%s1 + $0x8] sm:$0xf]
    %v3957 = vld [vmem:[%s1 + $0xc] sm:$0xf]
    %v3958 = vld [vmem:[%s1 + $0x10] sm:$0xf]
    %v3959 = vld [vmem:[%s1 + $0x14] sm:$0xf]
    %v3960 = vld [vmem:[%s1 + $0x18] sm:$0xf]
    %v3961 = vld [vmem:[%s1 + $0x1c] sm:$0xf]
    %v3962 = vld [vmem:[%s1 + $0x20] sm:$0xf]
    %v3963 = vld [vmem:[%s1 + $0x24] sm:$0xf]
    %v3964 = vld [vmem:[%s1 + $0x28] sm:$0xf]
    %v3965 = vld [vmem:[%s1 + $0x2c] sm:$0xf]
    %v3966 = vld [vmem:[%s1 + $0x30] sm:$0xf]
    %v3967 = vld [vmem:[%s1 + $0x34] sm:$0xf]
    %v3968 = vld [vmem:[%s1 + $0x38] sm:$0xf]
    %v3969 = vld [vmem:[%s1 + $0x3c] sm:$0xf]
    %v3970 = vld [vmem:[%s1 + $0x40] sm:$0xf]
    %v3971 = vld [vmem:[%s1 + $0x44] sm:$0xf]
    %v3972 = vld [vmem:[%s1 + $0x48] sm:$0xf]
    %v3973 = vld [vmem:[%s1 + $0x4c] sm:$0xf]
    %v3974 = vld [vmem:[%s1 + $0x50] sm:$0xf]
    %v3975 = vld [vmem:[%s1 + $0x54] sm:$0xf]
    %v3976 = vld [vmem:[%s1 + $0x58] sm:$0xf]
    %v3977 = vld [vmem:[%s1 + $0x5c] sm:$0xf]
    %v3978 = vld [vmem:[%s1 + $0x60] sm:$0xf]
    %v3979 = vld [vmem:[%s1 + $0x64] sm:$0xf]
    %v3980 = vld [vmem:[%s1 + $0x68] sm:$0xf]
    %v3981 = vld [vmem:[%s1 + $0x6c] sm:$0xf]
    %v3982 = vld [vmem:[%s1 + $0x70] sm:$0xf]
    %v3983 = vld [vmem:[%s1 + $0x74] sm:$0xf]
    %v3984 = vld [vmem:[%s1 + $0x78] sm:$0xf]
    %v3985 = vld [vmem:[%s1 + $0x7c] sm:$0xf]
    %v3986 = vld [vmem:[%s1 + $0x80] sm:$0xf]
    %v3987 = vld [vmem:[%s1 + $0x84] sm:$0xf]
    %v3988 = vld [vmem:[%s1 + $0x88] sm:$0xf]
    %v3989 = vld [vmem:[%s1 + $0x8c] sm:$0xf]
    %v3990 = vld [vmem:[%s1 + $0x90] sm:$0xf]
    %v3991 = vld [vmem:[%s1 + $0x94] sm:$0xf]
    %v3992 = vld [vmem:[%s1 + $0x98] sm:$0xf]
    %v3993 = vld [vmem:[%s1 + $0x9c] sm:$0xf]
    %v3994 = vld [vmem:[%s1 + $0xa0] sm:$0xf]
    %v3995 = vld [vmem:[%s1 + $0xa4] sm:$0xf]
    %v3996 = vld [vmem:[%s1 + $0xa8] sm:$0xf]
    %v3997 = vld [vmem:[%s1 + $0xac] sm:$0xf]
    %v3998 = vld [vmem:[%s1 + $0xb0] sm:$0xf]
    %v3999 = vld [vmem:[%s1 + $0xb4] sm:$0xf]
    %v4000 = vld [vmem:[%s1 + $0xb8] sm:$0xf]
    %v4001 = vld [vmem:[%s1 + $0xbc] sm:$0xf]
    %v4002 = vld [vmem:[%s1 + $0xc0] sm:$0xf]
    %v4003 = vld [vmem:[%s1 + $0xc4] sm:$0xf]
    %v4004 = vld [vmem:[%s1 + $0xc8] sm:$0xf]
    %v4005 = vld [vmem:[%s1 + $0xcc] sm:$0xf]
    %v4006 = vld [vmem:[%s1 + $0xd0] sm:$0xf]
    %v4007 = vld [vmem:[%s1 + $0xd4] sm:$0xf]
    %v4008 = vld [vmem:[%s1 + $0xd8] sm:$0xf]
    %v4009 = vld [vmem:[%s1 + $0xdc] sm:$0xf]
    %v4010 = vld [vmem:[%s1 + $0xe0] sm:$0xf]
    %v4011 = vld [vmem:[%s1 + $0xe4] sm:$0xf]
    %v4012 = vld [vmem:[%s1 + $0xe8] sm:$0xf]
    %v4013 = vld [vmem:[%s1 + $0xec] sm:$0xf]
    %v4014 = vld [vmem:[%s1 + $0xf0] sm:$0xf]
    %v4015 = vld [vmem:[%s1 + $0xf4] sm:$0xf]
    %v4016 = vld [vmem:[%s1 + $0xf8] sm:$0xf]
    %v4017 = vld [vmem:[%s1 + $0xfc] sm:$0xf]
    %v4018 = vld [vmem:[%s1 + $0x100] sm:$0xf]
    %v4019 = vld [vmem:[%s1 + $0x104] sm:$0xf]
    %v4020 = vld [vmem:[%s1 + $0x108] sm:$0xf]
    %v4021 = vld [vmem:[%s1 + $0x10c] sm:$0xf]
    %v4022 = vld [vmem:[%s1 + $0x110] sm:$0xf]
    %v4023 = vld [vmem:[%s1 + $0x114] sm:$0xf]
    %v4024 = vld [vmem:[%s1 + $0x118] sm:$0xf]
    %v4025 = vld [vmem:[%s1 + $0x11c] sm:$0xf]
    %v4026 = vld [vmem:[%s1 + $0x120] sm:$0xf]
    %v4027 = vld [vmem:[%s1 + $0x124] sm:$0xf]
    %v4028 = vld [vmem:[%s1 + $0x128] sm:$0xf]
    %v4029 = vld [vmem:[%s1 + $0x12c] sm:$0xf]
    %v4030 = vld [vmem:[%s1 + $0x130] sm:$0xf]
    %v4031 = vld [vmem:[%s1 + $0x134] sm:$0xf]
    %v4032 = vld [vmem:[%s1 + $0x138] sm:$0xf]
    %v4033 = vld [vmem:[%s1 + $0x13c] sm:$0xf]
    %v4034 = vld [vmem:[%s1 + $0x140] sm:$0xf]
    %v4035 = vld [vmem:[%s1 + $0x144] sm:$0xf]
    %v4036 = vld [vmem:[%s1 + $0x148] sm:$0xf]
    %v4037 = vld [vmem:[%s1 + $0x14c] sm:$0xf]
    %v4038 = vld [vmem:[%s1 + $0x150] sm:$0xf]
    %v4039 = vld [vmem:[%s1 + $0x154] sm:$0xf]
    %v4040 = vld [vmem:[%s1 + $0x158] sm:$0xf]
    %v4041 = vld [vmem:[%s1 + $0x15c] sm:$0xf]
    %v4042 = vld [vmem:[%s1 + $0x160] sm:$0xf]
    %v4043 = vld [vmem:[%s1 + $0x164] sm:$0xf]
    %v4044 = vld [vmem:[%s1 + $0x168] sm:$0xf]
    %v4045 = vld [vmem:[%s1 + $0x16c] sm:$0xf]
    %v4046 = vld [vmem:[%s1 + $0x170] sm:$0xf]
    %v4047 = vld [vmem:[%s1 + $0x174] sm:$0xf]
    %v4048 = vld [vmem:[%s1 + $0x178] sm:$0xf]
    %v4049 = vld [vmem:[%s1 + $0x17c] sm:$0xf]
    %v4050 = vld [vmem:[%s1 + $0x180] sm:$0xf]
    %v4051 = vld [vmem:[%s1 + $0x184] sm:$0xf]
    %v4052 = vld [vmem:[%s1 + $0x188] sm:$0xf]
    %v4053 = vld [vmem:[%s1 + $0x18c] sm:$0xf]
    %v4054 = vld [vmem:[%s1 + $0x190] sm:$0xf]
    %v4055 = vld [vmem:[%s1 + $0x194] sm:$0xf]
    %v4056 = vld [vmem:[%s1 + $0x198] sm:$0xf]
    %v4057 = vld [vmem:[%s1 + $0x19c] sm:$0xf]
    %v4058 = vld [vmem:[%s1 + $0x1a0] sm:$0xf]
    %v4059 = vld [vmem:[%s1 + $0x1a4] sm:$0xf]
    %v4060 = vld [vmem:[%s1 + $0x1a8] sm:$0xf]
    %v4061 = vld [vmem:[%s1 + $0x1ac] sm:$0xf]
    %v4062 = vld [vmem:[%s1 + $0x1b0] sm:$0xf]
    %v4063 = vld [vmem:[%s1 + $0x1b4] sm:$0xf]
    %v4064 = vld [vmem:[%s1 + $0x1b8] sm:$0xf]
    %v4065 = vld [vmem:[%s1 + $0x1bc] sm:$0xf]
    %v4066 = vld [vmem:[%s1 + $0x1c0] sm:$0xf]
    %v4067 = vld [vmem:[%s1 + $0x1c4] sm:$0xf]
    %v4068 = vld [vmem:[%s1 + $0x1c8] sm:$0xf]
    %v4069 = vld [vmem:[%s1 + $0x1cc] sm:$0xf]
    %v4070 = vld [vmem:[%s1 + $0x1d0] sm:$0xf]
    %v4071 = vld [vmem:[%s1 + $0x1d4] sm:$0xf]
    %v4072 = vld [vmem:[%s1 + $0x1d8] sm:$0xf]
    %v4073 = vld [vmem:[%s1 + $0x1dc] sm:$0xf]
    %v4074 = vld [vmem:[%s1 + $0x1e0] sm:$0xf]
    %v4075 = vld [vmem:[%s1 + $0x1e4] sm:$0xf]
    %v4076 = vld [vmem:[%s1 + $0x1e8] sm:$0xf]
    %v4077 = vld [vmem:[%s1 + $0x1ec] sm:$0xf]
    %v4078 = vld [vmem:[%s1 + $0x1f0] sm:$0xf]
    %v4079 = vld [vmem:[%s1 + $0x1f4] sm:$0xf]
    %v4080 = vld [vmem:[%s1 + $0x1f8] sm:$0xf]
    %v4081 = vld [vmem:[%s1 + $0x1fc] sm:$0xf]
    %v4082 = vpack.c.bf16 %v1349, %v1349
    %v4083 = vpack.c.bf16 %v1350, %v1350
    %v4084 = vpack.c.bf16 %v1351, %v1351
    %v4085 = vpack.c.bf16 %v1352, %v1352
    %v4086 = vpack.c.bf16 %v1353, %v1353
    %v4087 = vpack.c.bf16 %v1354, %v1354
    %v4088 = vpack.c.bf16 %v1355, %v1355
    %v4089 = vpack.c.bf16 %v1356, %v1356
    %v4090 = vld [vmem:[%s2] sm:$0xf]
    %v4091 = vld [vmem:[%s2 + $0x4] sm:$0xf]
    %v4092 = vld [vmem:[%s2 + $0x8] sm:$0xf]
    %v4093 = vld [vmem:[%s2 + $0xc] sm:$0xf]
    %v4094 = vld [vmem:[%s2 + $0x10] sm:$0xf]
    %v4095 = vld [vmem:[%s2 + $0x14] sm:$0xf]
    %v4096 = vld [vmem:[%s2 + $0x18] sm:$0xf]
    %v4097 = vld [vmem:[%s2 + $0x1c] sm:$0xf]
    %v4098 = vld [vmem:[%s2 + $0x20] sm:$0xf]
    %v4099 = vld [vmem:[%s2 + $0x24] sm:$0xf]
    %v4100 = vld [vmem:[%s2 + $0x28] sm:$0xf]
    %v4101 = vld [vmem:[%s2 + $0x2c] sm:$0xf]
    %v4102 = vld [vmem:[%s2 + $0x30] sm:$0xf]
    %v4103 = vld [vmem:[%s2 + $0x34] sm:$0xf]
    %v4104 = vld [vmem:[%s2 + $0x38] sm:$0xf]
    %v4105 = vld [vmem:[%s2 + $0x3c] sm:$0xf]
    %v4106 = vld [vmem:[%s2 + $0x40] sm:$0xf]
    %v4107 = vld [vmem:[%s2 + $0x44] sm:$0xf]
    %v4108 = vld [vmem:[%s2 + $0x48] sm:$0xf]
    %v4109 = vld [vmem:[%s2 + $0x4c] sm:$0xf]
    %v4110 = vld [vmem:[%s2 + $0x50] sm:$0xf]
    %v4111 = vld [vmem:[%s2 + $0x54] sm:$0xf]
    %v4112 = vld [vmem:[%s2 + $0x58] sm:$0xf]
    %v4113 = vld [vmem:[%s2 + $0x5c] sm:$0xf]
    %v4114 = vld [vmem:[%s2 + $0x60] sm:$0xf]
    %v4115 = vld [vmem:[%s2 + $0x64] sm:$0xf]
    %v4116 = vld [vmem:[%s2 + $0x68] sm:$0xf]
    %v4117 = vld [vmem:[%s2 + $0x6c] sm:$0xf]
    %v4118 = vld [vmem:[%s2 + $0x70] sm:$0xf]
    %v4119 = vld [vmem:[%s2 + $0x74] sm:$0xf]
    %v4120 = vld [vmem:[%s2 + $0x78] sm:$0xf]
    %v4121 = vld [vmem:[%s2 + $0x7c] sm:$0xf]
    %v4122 = vld [vmem:[%s2 + $0x80] sm:$0xf]
    %v4123 = vld [vmem:[%s2 + $0x84] sm:$0xf]
    %v4124 = vld [vmem:[%s2 + $0x88] sm:$0xf]
    %v4125 = vld [vmem:[%s2 + $0x8c] sm:$0xf]
    %v4126 = vld [vmem:[%s2 + $0x90] sm:$0xf]
    %v4127 = vld [vmem:[%s2 + $0x94] sm:$0xf]
    %v4128 = vld [vmem:[%s2 + $0x98] sm:$0xf]
    %v4129 = vld [vmem:[%s2 + $0x9c] sm:$0xf]
    %v4130 = vld [vmem:[%s2 + $0xa0] sm:$0xf]
    %v4131 = vld [vmem:[%s2 + $0xa4] sm:$0xf]
    %v4132 = vld [vmem:[%s2 + $0xa8] sm:$0xf]
    %v4133 = vld [vmem:[%s2 + $0xac] sm:$0xf]
    %v4134 = vld [vmem:[%s2 + $0xb0] sm:$0xf]
    %v4135 = vld [vmem:[%s2 + $0xb4] sm:$0xf]
    %v4136 = vld [vmem:[%s2 + $0xb8] sm:$0xf]
    %v4137 = vld [vmem:[%s2 + $0xbc] sm:$0xf]
    %v4138 = vld [vmem:[%s2 + $0xc0] sm:$0xf]
    %v4139 = vld [vmem:[%s2 + $0xc4] sm:$0xf]
    %v4140 = vld [vmem:[%s2 + $0xc8] sm:$0xf]
    %v4141 = vld [vmem:[%s2 + $0xcc] sm:$0xf]
    %v4142 = vld [vmem:[%s2 + $0xd0] sm:$0xf]
    %v4143 = vld [vmem:[%s2 + $0xd4] sm:$0xf]
    %v4144 = vld [vmem:[%s2 + $0xd8] sm:$0xf]
    %v4145 = vld [vmem:[%s2 + $0xdc] sm:$0xf]
    %v4146 = vld [vmem:[%s2 + $0xe0] sm:$0xf]
    %v4147 = vld [vmem:[%s2 + $0xe4] sm:$0xf]
    %v4148 = vld [vmem:[%s2 + $0xe8] sm:$0xf]
    %v4149 = vld [vmem:[%s2 + $0xec] sm:$0xf]
    %v4150 = vld [vmem:[%s2 + $0xf0] sm:$0xf]
    %v4151 = vld [vmem:[%s2 + $0xf4] sm:$0xf]
    %v4152 = vld [vmem:[%s2 + $0xf8] sm:$0xf]
    %v4153 = vld [vmem:[%s2 + $0xfc] sm:$0xf]
    %v4154 = vld [vmem:[%s2 + $0x100] sm:$0xf]
    %v4155 = vld [vmem:[%s2 + $0x104] sm:$0xf]
    %v4156 = vld [vmem:[%s2 + $0x108] sm:$0xf]
    %v4157 = vld [vmem:[%s2 + $0x10c] sm:$0xf]
    %v4158 = vld [vmem:[%s2 + $0x110] sm:$0xf]
    %v4159 = vld [vmem:[%s2 + $0x114] sm:$0xf]
    %v4160 = vld [vmem:[%s2 + $0x118] sm:$0xf]
    %v4161 = vld [vmem:[%s2 + $0x11c] sm:$0xf]
    %v4162 = vld [vmem:[%s2 + $0x120] sm:$0xf]
    %v4163 = vld [vmem:[%s2 + $0x124] sm:$0xf]
    %v4164 = vld [vmem:[%s2 + $0x128] sm:$0xf]
    %v4165 = vld [vmem:[%s2 + $0x12c] sm:$0xf]
    %v4166 = vld [vmem:[%s2 + $0x130] sm:$0xf]
    %v4167 = vld [vmem:[%s2 + $0x134] sm:$0xf]
    %v4168 = vld [vmem:[%s2 + $0x138] sm:$0xf]
    %v4169 = vld [vmem:[%s2 + $0x13c] sm:$0xf]
    %v4170 = vld [vmem:[%s2 + $0x140] sm:$0xf]
    %v4171 = vld [vmem:[%s2 + $0x144] sm:$0xf]
    %v4172 = vld [vmem:[%s2 + $0x148] sm:$0xf]
    %v4173 = vld [vmem:[%s2 + $0x14c] sm:$0xf]
    %v4174 = vld [vmem:[%s2 + $0x150] sm:$0xf]
    %v4175 = vld [vmem:[%s2 + $0x154] sm:$0xf]
    %v4176 = vld [vmem:[%s2 + $0x158] sm:$0xf]
    %v4177 = vld [vmem:[%s2 + $0x15c] sm:$0xf]
    %v4178 = vld [vmem:[%s2 + $0x160] sm:$0xf]
    %v4179 = vld [vmem:[%s2 + $0x164] sm:$0xf]
    %v4180 = vld [vmem:[%s2 + $0x168] sm:$0xf]
    %v4181 = vld [vmem:[%s2 + $0x16c] sm:$0xf]
    %v4182 = vld [vmem:[%s2 + $0x170] sm:$0xf]
    %v4183 = vld [vmem:[%s2 + $0x174] sm:$0xf]
    %v4184 = vld [vmem:[%s2 + $0x178] sm:$0xf]
    %v4185 = vld [vmem:[%s2 + $0x17c] sm:$0xf]
    %v4186 = vld [vmem:[%s2 + $0x180] sm:$0xf]
    %v4187 = vld [vmem:[%s2 + $0x184] sm:$0xf]
    %v4188 = vld [vmem:[%s2 + $0x188] sm:$0xf]
    %v4189 = vld [vmem:[%s2 + $0x18c] sm:$0xf]
    %v4190 = vld [vmem:[%s2 + $0x190] sm:$0xf]
    %v4191 = vld [vmem:[%s2 + $0x194] sm:$0xf]
    %v4192 = vld [vmem:[%s2 + $0x198] sm:$0xf]
    %v4193 = vld [vmem:[%s2 + $0x19c] sm:$0xf]
    %v4194 = vld [vmem:[%s2 + $0x1a0] sm:$0xf]
    %v4195 = vld [vmem:[%s2 + $0x1a4] sm:$0xf]
    %v4196 = vld [vmem:[%s2 + $0x1a8] sm:$0xf]
    %v4197 = vld [vmem:[%s2 + $0x1ac] sm:$0xf]
    %v4198 = vld [vmem:[%s2 + $0x1b0] sm:$0xf]
    %v4199 = vld [vmem:[%s2 + $0x1b4] sm:$0xf]
    %v4200 = vld [vmem:[%s2 + $0x1b8] sm:$0xf]
    %v4201 = vld [vmem:[%s2 + $0x1bc] sm:$0xf]
    %v4202 = vld [vmem:[%s2 + $0x1c0] sm:$0xf]
    %v4203 = vld [vmem:[%s2 + $0x1c4] sm:$0xf]
    %v4204 = vld [vmem:[%s2 + $0x1c8] sm:$0xf]
    %v4205 = vld [vmem:[%s2 + $0x1cc] sm:$0xf]
    %v4206 = vld [vmem:[%s2 + $0x1d0] sm:$0xf]
    %v4207 = vld [vmem:[%s2 + $0x1d4] sm:$0xf]
    %v4208 = vld [vmem:[%s2 + $0x1d8] sm:$0xf]
    %v4209 = vld [vmem:[%s2 + $0x1dc] sm:$0xf]
    %v4210 = vld [vmem:[%s2 + $0x1e0] sm:$0xf]
    %v4211 = vld [vmem:[%s2 + $0x1e4] sm:$0xf]
    %v4212 = vld [vmem:[%s2 + $0x1e8] sm:$0xf]
    %v4213 = vld [vmem:[%s2 + $0x1ec] sm:$0xf]
    %v4214 = vld [vmem:[%s2 + $0x1f0] sm:$0xf]
    %v4215 = vld [vmem:[%s2 + $0x1f4] sm:$0xf]
    %v4216 = vld [vmem:[%s2 + $0x1f8] sm:$0xf]
    %v4217 = vld [vmem:[%s2 + $0x1fc] sm:$0xf]
    %v4346 = vunpack.c.l.b16 %v4090
    %v4347 = vunpack.c.l.b16 %v4091
    %v4348 = vunpack.c.l.b16 %v4092
    %v4349 = vunpack.c.l.b16 %v4093
    %v4350 = vunpack.c.l.b16 %v4094
    %v4351 = vunpack.c.l.b16 %v4095
    %v4352 = vunpack.c.l.b16 %v4096
    %v4353 = vunpack.c.l.b16 %v4097
    %v4354 = vunpack.c.l.b16 %v4098
    %v4355 = vunpack.c.l.b16 %v4099
    %v4356 = vunpack.c.l.b16 %v4100
    %v4357 = vunpack.c.l.b16 %v4101
    %v4358 = vunpack.c.l.b16 %v4102
    %v4359 = vunpack.c.l.b16 %v4103
    %v4360 = vunpack.c.l.b16 %v4104
    %v4361 = vunpack.c.l.b16 %v4105
    %v4362 = vunpack.c.l.b16 %v4106
    %v4363 = vunpack.c.l.b16 %v4107
    %v4364 = vunpack.c.l.b16 %v4108
    %v4365 = vunpack.c.l.b16 %v4109
    %v4366 = vunpack.c.l.b16 %v4110
    %v4367 = vunpack.c.l.b16 %v4111
    %v4368 = vunpack.c.l.b16 %v4112
    %v4369 = vunpack.c.l.b16 %v4113
    %v4370 = vunpack.c.l.b16 %v4114
    %v4371 = vunpack.c.l.b16 %v4115
    %v4372 = vunpack.c.l.b16 %v4116
    %v4373 = vunpack.c.l.b16 %v4117
    %v4374 = vunpack.c.l.b16 %v4118
    %v4375 = vunpack.c.l.b16 %v4119
    %v4376 = vunpack.c.l.b16 %v4120
    %v4377 = vunpack.c.l.b16 %v4121
    %v4378 = vunpack.c.l.b16 %v4122
    %v4379 = vunpack.c.l.b16 %v4123
    %v4380 = vunpack.c.l.b16 %v4124
    %v4381 = vunpack.c.l.b16 %v4125
    %v4382 = vunpack.c.l.b16 %v4126
    %v4383 = vunpack.c.l.b16 %v4127
    %v4384 = vunpack.c.l.b16 %v4128
    %v4385 = vunpack.c.l.b16 %v4129
    %v4386 = vunpack.c.l.b16 %v4130
    %v4387 = vunpack.c.l.b16 %v4131
    %v4388 = vunpack.c.l.b16 %v4132
    %v4389 = vunpack.c.l.b16 %v4133
    %v4390 = vunpack.c.l.b16 %v4134
    %v4391 = vunpack.c.l.b16 %v4135
    %v4392 = vunpack.c.l.b16 %v4136
    %v4393 = vunpack.c.l.b16 %v4137
    %v4394 = vunpack.c.l.b16 %v4138
    %v4395 = vunpack.c.l.b16 %v4139
    %v4396 = vunpack.c.l.b16 %v4140
    %v4397 = vunpack.c.l.b16 %v4141
    %v4398 = vunpack.c.l.b16 %v4142
    %v4399 = vunpack.c.l.b16 %v4143
    %v4400 = vunpack.c.l.b16 %v4144
    %v4401 = vunpack.c.l.b16 %v4145
    %v4402 = vunpack.c.l.b16 %v4146
    %v4403 = vunpack.c.l.b16 %v4147
    %v4404 = vunpack.c.l.b16 %v4148
    %v4405 = vunpack.c.l.b16 %v4149
    %v4406 = vunpack.c.l.b16 %v4150
    %v4407 = vunpack.c.l.b16 %v4151
    %v4408 = vunpack.c.l.b16 %v4152
    %v4409 = vunpack.c.l.b16 %v4153
    %v4410 = vunpack.c.l.b16 %v4154
    %v4411 = vunpack.c.l.b16 %v4155
    %v4412 = vunpack.c.l.b16 %v4156
    %v4413 = vunpack.c.l.b16 %v4157
    %v4414 = vunpack.c.l.b16 %v4158
    %v4415 = vunpack.c.l.b16 %v4159
    %v4416 = vunpack.c.l.b16 %v4160
    %v4417 = vunpack.c.l.b16 %v4161
    %v4418 = vunpack.c.l.b16 %v4162
    %v4419 = vunpack.c.l.b16 %v4163
    %v4420 = vunpack.c.l.b16 %v4164
    %v4421 = vunpack.c.l.b16 %v4165
    %v4422 = vunpack.c.l.b16 %v4166
    %v4423 = vunpack.c.l.b16 %v4167
    %v4424 = vunpack.c.l.b16 %v4168
    %v4425 = vunpack.c.l.b16 %v4169
    %v4426 = vunpack.c.l.b16 %v4170
    %v4427 = vunpack.c.l.b16 %v4171
    %v4428 = vunpack.c.l.b16 %v4172
    %v4429 = vunpack.c.l.b16 %v4173
    %v4430 = vunpack.c.l.b16 %v4174
    %v4431 = vunpack.c.l.b16 %v4175
    %v4432 = vunpack.c.l.b16 %v4176
    %v4433 = vunpack.c.l.b16 %v4177
    %v4434 = vunpack.c.l.b16 %v4178
    %v4435 = vunpack.c.l.b16 %v4179
    %v4436 = vunpack.c.l.b16 %v4180
    %v4437 = vunpack.c.l.b16 %v4181
    %v4438 = vunpack.c.l.b16 %v4182
    %v4439 = vunpack.c.l.b16 %v4183
    %v4440 = vunpack.c.l.b16 %v4184
    %v4441 = vunpack.c.l.b16 %v4185
    %v4442 = vunpack.c.l.b16 %v4186
    %v4443 = vunpack.c.l.b16 %v4187
    %v4444 = vunpack.c.l.b16 %v4188
    %v4445 = vunpack.c.l.b16 %v4189
    %v4446 = vunpack.c.l.b16 %v4190
    %v4447 = vunpack.c.l.b16 %v4191
    %v4448 = vunpack.c.l.b16 %v4192
    %v4449 = vunpack.c.l.b16 %v4193
    %v4450 = vunpack.c.l.b16 %v4194
    %v4451 = vunpack.c.l.b16 %v4195
    %v4452 = vunpack.c.l.b16 %v4196
    %v4453 = vunpack.c.l.b16 %v4197
    %v4454 = vunpack.c.l.b16 %v4198
    %v4455 = vunpack.c.l.b16 %v4199
    %v4456 = vunpack.c.l.b16 %v4200
    %v4457 = vunpack.c.l.b16 %v4201
    %v4458 = vunpack.c.l.b16 %v4202
    %v4459 = vunpack.c.l.b16 %v4203
    %v4460 = vunpack.c.l.b16 %v4204
    %v4461 = vunpack.c.l.b16 %v4205
    %v4462 = vunpack.c.l.b16 %v4206
    %v4463 = vunpack.c.l.b16 %v4207
    %v4464 = vunpack.c.l.b16 %v4208
    %v4465 = vunpack.c.l.b16 %v4209
    %v4466 = vunpack.c.l.b16 %v4210
    %v4467 = vunpack.c.l.b16 %v4211
    %v4468 = vunpack.c.l.b16 %v4212
    %v4469 = vunpack.c.l.b16 %v4213
    %v4470 = vunpack.c.l.b16 %v4214
    %v4471 = vunpack.c.l.b16 %v4215
    %v4472 = vunpack.c.l.b16 %v4216
    %v4473 = vunpack.c.l.b16 %v4217
    %v4474 = vpack.c.b16 %v4347, %v4346
    %v4475 = vpack.c.b16 %v4349, %v4348
    %v4476 = vpack.c.b16 %v4351, %v4350
    %v4477 = vpack.c.b16 %v4353, %v4352
    %v4478 = vpack.c.b16 %v4355, %v4354
    %v4479 = vpack.c.b16 %v4357, %v4356
    %v4480 = vpack.c.b16 %v4359, %v4358
    %v4481 = vpack.c.b16 %v4361, %v4360
    %v4482 = vpack.c.b16 %v4363, %v4362
    %v4483 = vpack.c.b16 %v4365, %v4364
    %v4484 = vpack.c.b16 %v4367, %v4366
    %v4485 = vpack.c.b16 %v4369, %v4368
    %v4486 = vpack.c.b16 %v4371, %v4370
    %v4487 = vpack.c.b16 %v4373, %v4372
    %v4488 = vpack.c.b16 %v4375, %v4374
    %v4489 = vpack.c.b16 %v4377, %v4376
    %v4490 = vpack.c.b16 %v4379, %v4378
    %v4491 = vpack.c.b16 %v4381, %v4380
    %v4492 = vpack.c.b16 %v4383, %v4382
    %v4493 = vpack.c.b16 %v4385, %v4384
    %v4494 = vpack.c.b16 %v4387, %v4386
    %v4495 = vpack.c.b16 %v4389, %v4388
    %v4496 = vpack.c.b16 %v4391, %v4390
    %v4497 = vpack.c.b16 %v4393, %v4392
    %v4498 = vpack.c.b16 %v4395, %v4394
    %v4499 = vpack.c.b16 %v4397, %v4396
    %v4500 = vpack.c.b16 %v4399, %v4398
    %v4501 = vpack.c.b16 %v4401, %v4400
    %v4502 = vpack.c.b16 %v4403, %v4402
    %v4503 = vpack.c.b16 %v4405, %v4404
    %v4504 = vpack.c.b16 %v4407, %v4406
    %v4505 = vpack.c.b16 %v4409, %v4408
    %v4506 = vpack.c.b16 %v4411, %v4410
    %v4507 = vpack.c.b16 %v4413, %v4412
    %v4508 = vpack.c.b16 %v4415, %v4414
    %v4509 = vpack.c.b16 %v4417, %v4416
    %v4510 = vpack.c.b16 %v4419, %v4418
    %v4511 = vpack.c.b16 %v4421, %v4420
    %v4512 = vpack.c.b16 %v4423, %v4422
    %v4513 = vpack.c.b16 %v4425, %v4424
    %v4514 = vpack.c.b16 %v4427, %v4426
    %v4515 = vpack.c.b16 %v4429, %v4428
    %v4516 = vpack.c.b16 %v4431, %v4430
    %v4517 = vpack.c.b16 %v4433, %v4432
    %v4518 = vpack.c.b16 %v4435, %v4434
    %v4519 = vpack.c.b16 %v4437, %v4436
    %v4520 = vpack.c.b16 %v4439, %v4438
    %v4521 = vpack.c.b16 %v4441, %v4440
    %v4522 = vpack.c.b16 %v4443, %v4442
    %v4523 = vpack.c.b16 %v4445, %v4444
    %v4524 = vpack.c.b16 %v4447, %v4446
    %v4525 = vpack.c.b16 %v4449, %v4448
    %v4526 = vpack.c.b16 %v4451, %v4450
    %v4527 = vpack.c.b16 %v4453, %v4452
    %v4528 = vpack.c.b16 %v4455, %v4454
    %v4529 = vpack.c.b16 %v4457, %v4456
    %v4530 = vpack.c.b16 %v4459, %v4458
    %v4531 = vpack.c.b16 %v4461, %v4460
    %v4532 = vpack.c.b16 %v4463, %v4462
    %v4533 = vpack.c.b16 %v4465, %v4464
    %v4534 = vpack.c.b16 %v4467, %v4466
    %v4535 = vpack.c.b16 %v4469, %v4468
    %v4536 = vpack.c.b16 %v4471, %v4470
    %v4537 = vpack.c.b16 %v4473, %v4472
    %4602 = vmatprep.subr.bf16.mxu0 0
    %4603 = vmatpush1.bf16.msra.mxu0 %v4474
    %4604 = vmatprep.subr.bf16.mxu0 0
    %4605 = vmatpush1.bf16.msra.mxu0 %v4475
    %4606 = vmatprep.subr.bf16.mxu0 0
    %4607 = vmatpush1.bf16.msra.mxu0 %v4476
    %4608 = vmatprep.subr.bf16.mxu0 0
    %4609 = vmatpush1.bf16.msra.mxu0 %v4477
    %4610 = vmatprep.subr.bf16.mxu0 0
    %4611 = vmatpush1.bf16.msra.mxu0 %v4478
    %4612 = vmatprep.subr.bf16.mxu0 0
    %4613 = vmatpush1.bf16.msra.mxu0 %v4479
    %4614 = vmatprep.subr.bf16.mxu0 0
    %4615 = vmatpush1.bf16.msra.mxu0 %v4480
    %4616 = vmatprep.subr.bf16.mxu0 0
    %4617 = vmatpush1.bf16.msra.mxu0 %v4481
    %4618 = vmatprep.subr.bf16.mxu0 0
    %4619 = vmatpush1.bf16.msra.mxu0 %v4482
    %4620 = vmatprep.subr.bf16.mxu0 0
    %4621 = vmatpush1.bf16.msra.mxu0 %v4483
    %4622 = vmatprep.subr.bf16.mxu0 0
    %4623 = vmatpush1.bf16.msra.mxu0 %v4484
    %4624 = vmatprep.subr.bf16.mxu0 0
    %4625 = vmatpush1.bf16.msra.mxu0 %v4485
    %4626 = vmatprep.subr.bf16.mxu0 0
    %4627 = vmatpush1.bf16.msra.mxu0 %v4486
    %4628 = vmatprep.subr.bf16.mxu0 0
    %4629 = vmatpush1.bf16.msra.mxu0 %v4487
    %4630 = vmatprep.subr.bf16.mxu0 0
    %4631 = vmatpush1.bf16.msra.mxu0 %v4488
    %4632 = vmatprep.subr.bf16.mxu0 0
    %4633 = vmatpush1.bf16.msra.mxu0 %v4489
    %4634 = vmatprep.mubr.bf16.mxu0 %v4083
    %4635 = vmatmul.mubr.bf16.gmra.mrb[0].mxu0 %v4082
    %v4636 = vpop.f32.mrb[0].mxu0
    %v4637 = vadd.f32 0.0, %v4636
    %v4638 = vpop.f32.mrb[0].mxu0
    %v4639 = vpop.f32.mrb[0].mxu0
    %v4640 = vpop.f32.mrb[0].mxu0
    %4641 = vdwg.mxu0
    %4642 = vmatprep.subr.bf16.mxu0 0
    %4643 = vmatpush1.bf16.msra.mxu0 %v4490
    %4644 = vmatprep.subr.bf16.mxu0 0
    %4645 = vmatpush1.bf16.msra.mxu0 %v4491
    %4646 = vmatprep.subr.bf16.mxu0 0
    %4647 = vmatpush1.bf16.msra.mxu0 %v4492
    %4648 = vmatprep.subr.bf16.mxu0 0
    %4649 = vmatpush1.bf16.msra.mxu0 %v4493
    %4650 = vmatprep.subr.bf16.mxu0 0
    %4651 = vmatpush1.bf16.msra.mxu0 %v4494
    %4652 = vmatprep.subr.bf16.mxu0 0
    %4653 = vmatpush1.bf16.msra.mxu0 %v4495
    %4654 = vmatprep.subr.bf16.mxu0 0
    %4655 = vmatpush1.bf16.msra.mxu0 %v4496
    %4656 = vmatprep.subr.bf16.mxu0 0
    %4657 = vmatpush1.bf16.msra.mxu0 %v4497
    %4658 = vmatprep.subr.bf16.mxu0 0
    %4659 = vmatpush1.bf16.msra.mxu0 %v4498
    %4660 = vmatprep.subr.bf16.mxu0 0
    %4661 = vmatpush1.bf16.msra.mxu0 %v4499
    %4662 = vmatprep.subr.bf16.mxu0 0
    %4663 = vmatpush1.bf16.msra.mxu0 %v4500
    %4664 = vmatprep.subr.bf16.mxu0 0
    %4665 = vmatpush1.bf16.msra.mxu0 %v4501
    %4666 = vmatprep.subr.bf16.mxu0 0
    %4667 = vmatpush1.bf16.msra.mxu0 %v4502
    %4668 = vmatprep.subr.bf16.mxu0 0
    %4669 = vmatpush1.bf16.msra.mxu0 %v4503
    %4670 = vmatprep.subr.bf16.mxu0 0
    %4671 = vmatpush1.bf16.msra.mxu0 %v4504
    %4672 = vmatprep.subr.bf16.mxu0 0
    %4673 = vmatpush1.bf16.msra.mxu0 %v4505
    %4674 = vmatprep.mubr.bf16.mxu0 %v4085
    %4675 = vmatmul.mubr.bf16.gmra.mrb[0].mxu0 %v4084
    %v4676 = vpop.f32.mrb[0].mxu0
    %v4677 = vadd.f32 %v4637, %v4676
    %v4678 = vpop.f32.mrb[0].mxu0
    %v4679 = vpop.f32.mrb[0].mxu0
    %v4680 = vpop.f32.mrb[0].mxu0
    %4681 = vdwg.mxu0
    %4682 = vmatprep.subr.bf16.mxu0 0
    %4683 = vmatpush1.bf16.msra.mxu0 %v4506
    %4684 = vmatprep.subr.bf16.mxu0 0
    %4685 = vmatpush1.bf16.msra.mxu0 %v4507
    %4686 = vmatprep.subr.bf16.mxu0 0
    %4687 = vmatpush1.bf16.msra.mxu0 %v4508
    %4688 = vmatprep.subr.bf16.mxu0 0
    %4689 = vmatpush1.bf16.msra.mxu0 %v4509
    %4690 = vmatprep.subr.bf16.mxu0 0
    %4691 = vmatpush1.bf16.msra.mxu0 %v4510
    %4692 = vmatprep.subr.bf16.mxu0 0
    %4693 = vmatpush1.bf16.msra.mxu0 %v4511
    %4694 = vmatprep.subr.bf16.mxu0 0
    %4695 = vmatpush1.bf16.msra.mxu0 %v4512
    %4696 = vmatprep.subr.bf16.mxu0 0
    %4697 = vmatpush1.bf16.msra.mxu0 %v4513
    %4698 = vmatprep.subr.bf16.mxu0 0
    %4699 = vmatpush1.bf16.msra.mxu0 %v4514
    %4700 = vmatprep.subr.bf16.mxu0 0
    %4701 = vmatpush1.bf16.msra.mxu0 %v4515
    %4702 = vmatprep.subr.bf16.mxu0 0
    %4703 = vmatpush1.bf16.msra.mxu0 %v4516
    %4704 = vmatprep.subr.bf16.mxu0 0
    %4705 = vmatpush1.bf16.msra.mxu0 %v4517
    %4706 = vmatprep.subr.bf16.mxu0 0
    %4707 = vmatpush1.bf16.msra.mxu0 %v4518
    %4708 = vmatprep.subr.bf16.mxu0 0
    %4709 = vmatpush1.bf16.msra.mxu0 %v4519
    %4710 = vmatprep.subr.bf16.mxu0 0
    %4711 = vmatpush1.bf16.msra.mxu0 %v4520
    %4712 = vmatprep.subr.bf16.mxu0 0
    %4713 = vmatpush1.bf16.msra.mxu0 %v4521
    %4714 = vmatprep.mubr.bf16.mxu0 %v4087
    %4715 = vmatmul.mubr.bf16.gmra.mrb[0].mxu0 %v4086
    %v4716 = vpop.f32.mrb[0].mxu0
    %v4717 = vadd.f32 %v4677, %v4716
    %v4718 = vpop.f32.mrb[0].mxu0
    %v4719 = vpop.f32.mrb[0].mxu0
    %v4720 = vpop.f32.mrb[0].mxu0
    %4721 = vdwg.mxu0
    %4722 = vmatprep.subr.bf16.mxu0 0
    %4723 = vmatpush1.bf16.msra.mxu0 %v4522
    %4724 = vmatprep.subr.bf16.mxu0 0
    %4725 = vmatpush1.bf16.msra.mxu0 %v4523
    %4726 = vmatprep.subr.bf16.mxu0 0
    %4727 = vmatpush1.bf16.msra.mxu0 %v4524
    %4728 = vmatprep.subr.bf16.mxu0 0
    %4729 = vmatpush1.bf16.msra.mxu0 %v4525
    %4730 = vmatprep.subr.bf16.mxu0 0
    %4731 = vmatpush1.bf16.msra.mxu0 %v4526
    %4732 = vmatprep.subr.bf16.mxu0 0
    %4733 = vmatpush1.bf16.msra.mxu0 %v4527
    %4734 = vmatprep.subr.bf16.mxu0 0
    %4735 = vmatpush1.bf16.msra.mxu0 %v4528
    %4736 = vmatprep.subr.bf16.mxu0 0
    %4737 = vmatpush1.bf16.msra.mxu0 %v4529
    %4738 = vmatprep.subr.bf16.mxu0 0
    %4739 = vmatpush1.bf16.msra.mxu0 %v4530
    %4740 = vmatprep.subr.bf16.mxu0 0
    %4741 = vmatpush1.bf16.msra.mxu0 %v4531
    %4742 = vmatprep.subr.bf16.mxu0 0
    %4743 = vmatpush1.bf16.msra.mxu0 %v4532
    %4744 = vmatprep.subr.bf16.mxu0 0
    %4745 = vmatpush1.bf16.msra.mxu0 %v4533
    %4746 = vmatprep.subr.bf16.mxu0 0
    %4747 = vmatpush1.bf16.msra.mxu0 %v4534
    %4748 = vmatprep.subr.bf16.mxu0 0
    %4749 = vmatpush1.bf16.msra.mxu0 %v4535
    %4750 = vmatprep.subr.bf16.mxu0 0
    %4751 = vmatpush1.bf16.msra.mxu0 %v4536
    %4752 = vmatprep.subr.bf16.mxu0 0
    %4753 = vmatpush1.bf16.msra.mxu0 %v4537
    %4754 = vmatprep.mubr.bf16.mxu0 %v4089
    %4755 = vmatmul.mubr.bf16.gmra.mrb[0].mxu0 %v4088
    %v4756 = vpop.f32.mrb[0].mxu0
    %v4757 = vadd.f32 %v4717, %v4756
    %v4758 = vpop.f32.mrb[0].mxu0
    %v4759 = vpop.f32.mrb[0].mxu0
    %v4760 = vpop.f32.mrb[0].mxu0
    %4761 = vdwg.mxu0
    %v4890 = vunpack.c.l.b16 %v3954
    %v4891 = vunpack.c.l.b16 %v3955
    %v4892 = vunpack.c.l.b16 %v3956
    %v4893 = vunpack.c.l.b16 %v3957
    %v4894 = vunpack.c.l.b16 %v3958
    %v4895 = vunpack.c.l.b16 %v3959
    %v4896 = vunpack.c.l.b16 %v3960
    %v4897 = vunpack.c.l.b16 %v3961
    %v4898 = vunpack.c.l.b16 %v3962
    %v4899 = vunpack.c.l.b16 %v3963
    %v4900 = vunpack.c.l.b16 %v3964
    %v4901 = vunpack.c.l.b16 %v3965
    %v4902 = vunpack.c.l.b16 %v3966
    %v4903 = vunpack.c.l.b16 %v3967
    %v4904 = vunpack.c.l.b16 %v3968
    %v4905 = vunpack.c.l.b16 %v3969
    %v4906 = vunpack.c.l.b16 %v3970
    %v4907 = vunpack.c.l.b16 %v3971
    %v4908 = vunpack.c.l.b16 %v3972
    %v4909 = vunpack.c.l.b16 %v3973
    %v4910 = vunpack.c.l.b16 %v3974
    %v4911 = vunpack.c.l.b16 %v3975
    %v4912 = vunpack.c.l.b16 %v3976
    %v4913 = vunpack.c.l.b16 %v3977
    %v4914 = vunpack.c.l.b16 %v3978
    %v4915 = vunpack.c.l.b16 %v3979
    %v4916 = vunpack.c.l.b16 %v3980
    %v4917 = vunpack.c.l.b16 %v3981
    %v4918 = vunpack.c.l.b16 %v3982
    %v4919 = vunpack.c.l.b16 %v3983
    %v4920 = vunpack.c.l.b16 %v3984
    %v4921 = vunpack.c.l.b16 %v3985
    %v4922 = vunpack.c.l.b16 %v3986
    %v4923 = vunpack.c.l.b16 %v3987
    %v4924 = vunpack.c.l.b16 %v3988
    %v4925 = vunpack.c.l.b16 %v3989
    %v4926 = vunpack.c.l.b16 %v3990
    %v4927 = vunpack.c.l.b16 %v3991
    %v4928 = vunpack.c.l.b16 %v3992
    %v4929 = vunpack.c.l.b16 %v3993
    %v4930 = vunpack.c.l.b16 %v3994
    %v4931 = vunpack.c.l.b16 %v3995
    %v4932 = vunpack.c.l.b16 %v3996
    %v4933 = vunpack.c.l.b16 %v3997
    %v4934 = vunpack.c.l.b16 %v3998
    %v4935 = vunpack.c.l.b16 %v3999
    %v4936 = vunpack.c.l.b16 %v4000
    %v4937 = vunpack.c.l.b16 %v4001
    %v4938 = vunpack.c.l.b16 %v4002
    %v4939 = vunpack.c.l.b16 %v4003
    %v4940 = vunpack.c.l.b16 %v4004
    %v4941 = vunpack.c.l.b16 %v4005
    %v4942 = vunpack.c.l.b16 %v4006
    %v4943 = vunpack.c.l.b16 %v4007
    %v4944 = vunpack.c.l.b16 %v4008
    %v4945 = vunpack.c.l.b16 %v4009
    %v4946 = vunpack.c.l.b16 %v4010
    %v4947 = vunpack.c.l.b16 %v4011
    %v4948 = vunpack.c.l.b16 %v4012
    %v4949 = vunpack.c.l.b16 %v4013
    %v4950 = vunpack.c.l.b16 %v4014
    %v4951 = vunpack.c.l.b16 %v4015
    %v4952 = vunpack.c.l.b16 %v4016
    %v4953 = vunpack.c.l.b16 %v4017
    %v4954 = vunpack.c.l.b16 %v4018
    %v4955 = vunpack.c.l.b16 %v4019
    %v4956 = vunpack.c.l.b16 %v4020
    %v4957 = vunpack.c.l.b16 %v4021
    %v4958 = vunpack.c.l.b16 %v4022
    %v4959 = vunpack.c.l.b16 %v4023
    %v4960 = vunpack.c.l.b16 %v4024
    %v4961 = vunpack.c.l.b16 %v4025
    %v4962 = vunpack.c.l.b16 %v4026
    %v4963 = vunpack.c.l.b16 %v4027
    %v4964 = vunpack.c.l.b16 %v4028
    %v4965 = vunpack.c.l.b16 %v4029
    %v4966 = vunpack.c.l.b16 %v4030
    %v4967 = vunpack.c.l.b16 %v4031
    %v4968 = vunpack.c.l.b16 %v4032
    %v4969 = vunpack.c.l.b16 %v4033
    %v4970 = vunpack.c.l.b16 %v4034
    %v4971 = vunpack.c.l.b16 %v4035
    %v4972 = vunpack.c.l.b16 %v4036
    %v4973 = vunpack.c.l.b16 %v4037
    %v4974 = vunpack.c.l.b16 %v4038
    %v4975 = vunpack.c.l.b16 %v4039
    %v4976 = vunpack.c.l.b16 %v4040
    %v4977 = vunpack.c.l.b16 %v4041
    %v4978 = vunpack.c.l.b16 %v4042
    %v4979 = vunpack.c.l.b16 %v4043
    %v4980 = vunpack.c.l.b16 %v4044
    %v4981 = vunpack.c.l.b16 %v4045
    %v4982 = vunpack.c.l.b16 %v4046
    %v4983 = vunpack.c.l.b16 %v4047
    %v4984 = vunpack.c.l.b16 %v4048
    %v4985 = vunpack.c.l.b16 %v4049
    %v4986 = vunpack.c.l.b16 %v4050
    %v4987 = vunpack.c.l.b16 %v4051
    %v4988 = vunpack.c.l.b16 %v4052
    %v4989 = vunpack.c.l.b16 %v4053
    %v4990 = vunpack.c.l.b16 %v4054
    %v4991 = vunpack.c.l.b16 %v4055
    %v4992 = vunpack.c.l.b16 %v4056
    %v4993 = vunpack.c.l.b16 %v4057
    %v4994 = vunpack.c.l.b16 %v4058
    %v4995 = vunpack.c.l.b16 %v4059
    %v4996 = vunpack.c.l.b16 %v4060
    %v4997 = vunpack.c.l.b16 %v4061
    %v4998 = vunpack.c.l.b16 %v4062
    %v4999 = vunpack.c.l.b16 %v4063
    %v5000 = vunpack.c.l.b16 %v4064
    %v5001 = vunpack.c.l.b16 %v4065
    %v5002 = vunpack.c.l.b16 %v4066
    %v5003 = vunpack.c.l.b16 %v4067
    %v5004 = vunpack.c.l.b16 %v4068
    %v5005 = vunpack.c.l.b16 %v4069
    %v5006 = vunpack.c.l.b16 %v4070
    %v5007 = vunpack.c.l.b16 %v4071
    %v5008 = vunpack.c.l.b16 %v4072
    %v5009 = vunpack.c.l.b16 %v4073
    %v5010 = vunpack.c.l.b16 %v4074
    %v5011 = vunpack.c.l.b16 %v4075
    %v5012 = vunpack.c.l.b16 %v4076
    %v5013 = vunpack.c.l.b16 %v4077
    %v5014 = vunpack.c.l.b16 %v4078
    %v5015 = vunpack.c.l.b16 %v4079
    %v5016 = vunpack.c.l.b16 %v4080
    %v5017 = vunpack.c.l.b16 %v4081
    %v5018 = vpack.c.b16 %v4891, %v4890
    %v5019 = vpack.c.b16 %v4893, %v4892
    %v5020 = vpack.c.b16 %v4895, %v4894
    %v5021 = vpack.c.b16 %v4897, %v4896
    %v5022 = vpack.c.b16 %v4899, %v4898
    %v5023 = vpack.c.b16 %v4901, %v4900
    %v5024 = vpack.c.b16 %v4903, %v4902
    %v5025 = vpack.c.b16 %v4905, %v4904
    %v5026 = vpack.c.b16 %v4907, %v4906
    %v5027 = vpack.c.b16 %v4909, %v4908
    %v5028 = vpack.c.b16 %v4911, %v4910
    %v5029 = vpack.c.b16 %v4913, %v4912
    %v5030 = vpack.c.b16 %v4915, %v4914
    %v5031 = vpack.c.b16 %v4917, %v4916
    %v5032 = vpack.c.b16 %v4919, %v4918
    %v5033 = vpack.c.b16 %v4921, %v4920
    %v5034 = vpack.c.b16 %v4923, %v4922
    %v5035 = vpack.c.b16 %v4925, %v4924
    %v5036 = vpack.c.b16 %v4927, %v4926
    %v5037 = vpack.c.b16 %v4929, %v4928
    %v5038 = vpack.c.b16 %v4931, %v4930
    %v5039 = vpack.c.b16 %v4933, %v4932
    %v5040 = vpack.c.b16 %v4935, %v4934
    %v5041 = vpack.c.b16 %v4937, %v4936
    %v5042 = vpack.c.b16 %v4939, %v4938
    %v5043 = vpack.c.b16 %v4941, %v4940
    %v5044 = vpack.c.b16 %v4943, %v4942
    %v5045 = vpack.c.b16 %v4945, %v4944
    %v5046 = vpack.c.b16 %v4947, %v4946
    %v5047 = vpack.c.b16 %v4949, %v4948
    %v5048 = vpack.c.b16 %v4951, %v4950
    %v5049 = vpack.c.b16 %v4953, %v4952
    %v5050 = vpack.c.b16 %v4955, %v4954
    %v5051 = vpack.c.b16 %v4957, %v4956
    %v5052 = vpack.c.b16 %v4959, %v4958
    %v5053 = vpack.c.b16 %v4961, %v4960
    %v5054 = vpack.c.b16 %v4963, %v4962
    %v5055 = vpack.c.b16 %v4965, %v4964
    %v5056 = vpack.c.b16 %v4967, %v4966
    %v5057 = vpack.c.b16 %v4969, %v4968
    %v5058 = vpack.c.b16 %v4971, %v4970
    %v5059 = vpack.c.b16 %v4973, %v4972
    %v5060 = vpack.c.b16 %v4975, %v4974
    %v5061 = vpack.c.b16 %v4977, %v4976
    %v5062 = vpack.c.b16 %v4979, %v4978
    %v5063 = vpack.c.b16 %v4981, %v4980
    %v5064 = vpack.c.b16 %v4983, %v4982
    %v5065 = vpack.c.b16 %v4985, %v4984
    %v5066 = vpack.c.b16 %v4987, %v4986
    %v5067 = vpack.c.b16 %v4989, %v4988
    %v5068 = vpack.c.b16 %v4991, %v4990
    %v5069 = vpack.c.b16 %v4993, %v4992
    %v5070 = vpack.c.b16 %v4995, %v4994
    %v5071 = vpack.c.b16 %v4997, %v4996
    %v5072 = vpack.c.b16 %v4999, %v4998
    %v5073 = vpack.c.b16 %v5001, %v5000
    %v5074 = vpack.c.b16 %v5003, %v5002
    %v5075 = vpack.c.b16 %v5005, %v5004
    %v5076 = vpack.c.b16 %v5007, %v5006
    %v5077 = vpack.c.b16 %v5009, %v5008
    %v5078 = vpack.c.b16 %v5011, %v5010
    %v5079 = vpack.c.b16 %v5013, %v5012
    %v5080 = vpack.c.b16 %v5015, %v5014
    %v5081 = vpack.c.b16 %v5017, %v5016
    %5146 = vmatprep.subr.bf16.mxu0 0
    %5147 = vmatpush1.bf16.msra.mxu0 %v5018
    %5148 = vmatprep.subr.bf16.mxu0 0
    %5149 = vmatpush1.bf16.msra.mxu0 %v5019
    %5150 = vmatprep.subr.bf16.mxu0 0
    %5151 = vmatpush1.bf16.msra.mxu0 %v5020
    %5152 = vmatprep.subr.bf16.mxu0 0
    %5153 = vmatpush1.bf16.msra.mxu0 %v5021
    %5154 = vmatprep.subr.bf16.mxu0 0
    %5155 = vmatpush1.bf16.msra.mxu0 %v5022
    %5156 = vmatprep.subr.bf16.mxu0 0
    %5157 = vmatpush1.bf16.msra.mxu0 %v5023
    %5158 = vmatprep.subr.bf16.mxu0 0
    %5159 = vmatpush1.bf16.msra.mxu0 %v5024
    %5160 = vmatprep.subr.bf16.mxu0 0
    %5161 = vmatpush1.bf16.msra.mxu0 %v5025
    %5162 = vmatprep.subr.bf16.mxu0 0
    %5163 = vmatpush1.bf16.msra.mxu0 %v5026
    %5164 = vmatprep.subr.bf16.mxu0 0
    %5165 = vmatpush1.bf16.msra.mxu0 %v5027
    %5166 = vmatprep.subr.bf16.mxu0 0
    %5167 = vmatpush1.bf16.msra.mxu0 %v5028
    %5168 = vmatprep.subr.bf16.mxu0 0
    %5169 = vmatpush1.bf16.msra.mxu0 %v5029
    %5170 = vmatprep.subr.bf16.mxu0 0
    %5171 = vmatpush1.bf16.msra.mxu0 %v5030
    %5172 = vmatprep.subr.bf16.mxu0 0
    %5173 = vmatpush1.bf16.msra.mxu0 %v5031
    %5174 = vmatprep.subr.bf16.mxu0 0
    %5175 = vmatpush1.bf16.msra.mxu0 %v5032
    %5176 = vmatprep.subr.bf16.mxu0 0
    %5177 = vmatpush1.bf16.msra.mxu0 %v5033
    %5178 = vmatprep.mubr.bf16.mxu0 %v3947
    %5179 = vmatmul.mubr.bf16.gmra.mrb[0].mxu0 %v3946
    %v5180 = vpop.f32.mrb[0].mxu0
    %v5181 = vadd.f32 %v4757, %v5180
    %v5182 = vpop.f32.mrb[0].mxu0
    %v5183 = vpop.f32.mrb[0].mxu0
    %v5184 = vpop.f32.mrb[0].mxu0
    %5185 = vdwg.mxu0
    %5186 = vmatprep.subr.bf16.mxu0 0
    %5187 = vmatpush1.bf16.msra.mxu0 %v5034
    %5188 = vmatprep.subr.bf16.mxu0 0
    %5189 = vmatpush1.bf16.msra.mxu0 %v5035
    %5190 = vmatprep.subr.bf16.mxu0 0
    %5191 = vmatpush1.bf16.msra.mxu0 %v5036
    %5192 = vmatprep.subr.bf16.mxu0 0
    %5193 = vmatpush1.bf16.msra.mxu0 %v5037
    %5194 = vmatprep.subr.bf16.mxu0 0
    %5195 = vmatpush1.bf16.msra.mxu0 %v5038
    %5196 = vmatprep.subr.bf16.mxu0 0
    %5197 = vmatpush1.bf16.msra.mxu0 %v5039
    %5198 = vmatprep.subr.bf16.mxu0 0
    %5199 = vmatpush1.bf16.msra.mxu0 %v5040
    %5200 = vmatprep.subr.bf16.mxu0 0
    %5201 = vmatpush1.bf16.msra.mxu0 %v5041
    %5202 = vmatprep.subr.bf16.mxu0 0
    %5203 = vmatpush1.bf16.msra.mxu0 %v5042
    %5204 = vmatprep.subr.bf16.mxu0 0
    %5205 = vmatpush1.bf16.msra.mxu0 %v5043
    %5206 = vmatprep.subr.bf16.mxu0 0
    %5207 = vmatpush1.bf16.msra.mxu0 %v5044
    %5208 = vmatprep.subr.bf16.mxu0 0
    %5209 = vmatpush1.bf16.msra.mxu0 %v5045
    %5210 = vmatprep.subr.bf16.mxu0 0
    %5211 = vmatpush1.bf16.msra.mxu0 %v5046
    %5212 = vmatprep.subr.bf16.mxu0 0
    %5213 = vmatpush1.bf16.msra.mxu0 %v5047
    %5214 = vmatprep.subr.bf16.mxu0 0
    %5215 = vmatpush1.bf16.msra.mxu0 %v5048
    %5216 = vmatprep.subr.bf16.mxu0 0
    %5217 = vmatpush1.bf16.msra.mxu0 %v5049
    %5218 = vmatprep.mubr.bf16.mxu0 %v3949
    %5219 = vmatmul.mubr.bf16.gmra.mrb[0].mxu0 %v3948
    %v5220 = vpop.f32.mrb[0].mxu0
    %v5221 = vadd.f32 %v5181, %v5220
    %v5222 = vpop.f32.mrb[0].mxu0
    %v5223 = vpop.f32.mrb[0].mxu0
    %v5224 = vpop.f32.mrb[0].mxu0
    %5225 = vdwg.mxu0
    %5226 = vmatprep.subr.bf16.mxu0 0
    %5227 = vmatpush1.bf16.msra.mxu0 %v5050
    %5228 = vmatprep.subr.bf16.mxu0 0
    %5229 = vmatpush1.bf16.msra.mxu0 %v5051
    %5230 = vmatprep.subr.bf16.mxu0 0
    %5231 = vmatpush1.bf16.msra.mxu0 %v5052
    %5232 = vmatprep.subr.bf16.mxu0 0
    %5233 = vmatpush1.bf16.msra.mxu0 %v5053
    %5234 = vmatprep.subr.bf16.mxu0 0
    %5235 = vmatpush1.bf16.msra.mxu0 %v5054
    %5236 = vmatprep.subr.bf16.mxu0 0
    %5237 = vmatpush1.bf16.msra.mxu0 %v5055
    %5238 = vmatprep.subr.bf16.mxu0 0
    %5239 = vmatpush1.bf16.msra.mxu0 %v5056
    %5240 = vmatprep.subr.bf16.mxu0 0
    %5241 = vmatpush1.bf16.msra.mxu0 %v5057
    %5242 = vmatprep.subr.bf16.mxu0 0
    %5243 = vmatpush1.bf16.msra.mxu0 %v5058
    %5244 = vmatprep.subr.bf16.mxu0 0
    %5245 = vmatpush1.bf16.msra.mxu0 %v5059
    %5246 = vmatprep.subr.bf16.mxu0 0
    %5247 = vmatpush1.bf16.msra.mxu0 %v5060
    %5248 = vmatprep.subr.bf16.mxu0 0
    %5249 = vmatpush1.bf16.msra.mxu0 %v5061
    %5250 = vmatprep.subr.bf16.mxu0 0
    %5251 = vmatpush1.bf16.msra.mxu0 %v5062
    %5252 = vmatprep.subr.bf16.mxu0 0
    %5253 = vmatpush1.bf16.msra.mxu0 %v5063
    %5254 = vmatprep.subr.bf16.mxu0 0
    %5255 = vmatpush1.bf16.msra.mxu0 %v5064
    %5256 = vmatprep.subr.bf16.mxu0 0
    %5257 = vmatpush1.bf16.msra.mxu0 %v5065
    %5258 = vmatprep.mubr.bf16.mxu0 %v3951
    %5259 = vmatmul.mubr.bf16.gmra.mrb[0].mxu0 %v3950
    %v5260 = vpop.f32.mrb[0].mxu0
    %v5261 = vadd.f32 %v5221, %v5260
    %v5262 = vpop.f32.mrb[0].mxu0
    %v5263 = vpop.f32.mrb[0].mxu0
    %v5264 = vpop.f32.mrb[0].mxu0
    %5265 = vdwg.mxu0
    %5266 = vmatprep.subr.bf16.mxu0 0
    %5267 = vmatpush1.bf16.msra.mxu0 %v5066
    %5268 = vmatprep.subr.bf16.mxu0 0
    %5269 = vmatpush1.bf16.msra.mxu0 %v5067
    %5270 = vmatprep.subr.bf16.mxu0 0
    %5271 = vmatpush1.bf16.msra.mxu0 %v5068
    %5272 = vmatprep.subr.bf16.mxu0 0
    %5273 = vmatpush1.bf16.msra.mxu0 %v5069
    %5274 = vmatprep.subr.bf16.mxu0 0
    %5275 = vmatpush1.bf16.msra.mxu0 %v5070
    %5276 = vmatprep.subr.bf16.mxu0 0
    %5277 = vmatpush1.bf16.msra.mxu0 %v5071
    %5278 = vmatprep.subr.bf16.mxu0 0
    %5279 = vmatpush1.bf16.msra.mxu0 %v5072
    %5280 = vmatprep.subr.bf16.mxu0 0
    %5281 = vmatpush1.bf16.msra.mxu0 %v5073
    %5282 = vmatprep.subr.bf16.mxu0 0
    %5283 = vmatpush1.bf16.msra.mxu0 %v5074
    %5284 = vmatprep.subr.bf16.mxu0 0
    %5285 = vmatpush1.bf16.msra.mxu0 %v5075
    %5286 = vmatprep.subr.bf16.mxu0 0
    %5287 = vmatpush1.bf16.msra.mxu0 %v5076
    %5288 = vmatprep.subr.bf16.mxu0 0
    %5289 = vmatpush1.bf16.msra.mxu0 %v5077
    %5290 = vmatprep.subr.bf16.mxu0 0
    %5291 = vmatpush1.bf16.msra.mxu0 %v5078
    %5292 = vmatprep.subr.bf16.mxu0 0
    %5293 = vmatpush1.bf16.msra.mxu0 %v5079
    %5294 = vmatprep.subr.bf16.mxu0 0
    %5295 = vmatpush1.bf16.msra.mxu0 %v5080
    %5296 = vmatprep.subr.bf16.mxu0 0
    %5297 = vmatpush1.bf16.msra.mxu0 %v5081
    %5298 = vmatprep.mubr.bf16.mxu0 %v3953
    %5299 = vmatmul.mubr.bf16.gmra.mrb[0].mxu0 %v3952
    %v5300 = vpop.f32.mrb[0].mxu0
    %v5301 = vadd.f32 %v5261, %v5300
    %v5302 = vpop.f32.mrb[0].mxu0
    %v5303 = vpop.f32.mrb[0].mxu0
    %v5304 = vpop.f32.mrb[0].mxu0
    %5305 = vdwg.mxu0
    %v5306 = vld [vmem:[%s3] sm:$0x1]
    %v5307 = vadd.f32 %v5301, %v5306
    %v5308 = vmax.f32 %v5307, 0.0
    %v5309 = vld [vmem:[%s4] sm:$0xff]
    %v5310 = vld [vmem:[%s4 + $0x8] sm:$0xff]
    %v5311 = vld [vmem:[%s4 + $0x10] sm:$0xff]
    %v5312 = vld [vmem:[%s4 + $0x18] sm:$0xff]
    %v5313 = vld [vmem:[%s4 + $0x20] sm:$0xff]
    %v5314 = vld [vmem:[%s4 + $0x28] sm:$0xff]
    %v5315 = vld [vmem:[%s4 + $0x30] sm:$0xff]
    %v5316 = vld [vmem:[%s4 + $0x38] sm:$0xff]
    %v5317 = vld [vmem:[%s4 + $0x40] sm:$0xff]
    %v5318 = vld [vmem:[%s4 + $0x48] sm:$0xff]
    %v5319 = vld [vmem:[%s4 + $0x50] sm:$0xff]
    %v5320 = vld [vmem:[%s4 + $0x58] sm:$0xff]
    %v5321 = vld [vmem:[%s4 + $0x60] sm:$0xff]
    %v5322 = vld [vmem:[%s4 + $0x68] sm:$0xff]
    %v5323 = vld [vmem:[%s4 + $0x70] sm:$0xff]
    %v5324 = vld [vmem:[%s4 + $0x78] sm:$0xff]
    %v5325 = vld [vmem:[%s5] sm:$0x1]
    %5326 = vmatprep.subr.mxu0 0.0
    %5327 = vmatpush1.msra.mxu0 %v5309
    %5328 = vmatprep.subr.mxu0 0.0
    %5329 = vmatpush1.msra.mxu0 %v5310
    %5330 = vmatprep.subr.mxu0 0.0
    %5331 = vmatpush1.msra.mxu0 %v5311
    %5332 = vmatprep.subr.mxu0 0.0
    %5333 = vmatpush1.msra.mxu0 %v5312
    %5334 = vmatprep.subr.mxu0 0.0
    %5335 = vmatpush1.msra.mxu0 %v5313
    %5336 = vmatprep.subr.mxu0 0.0
    %5337 = vmatpush1.msra.mxu0 %v5314
    %5338 = vmatprep.subr.mxu0 0.0
    %5339 = vmatpush1.msra.mxu0 %v5315
    %5340 = vmatprep.subr.mxu0 0.0
    %5341 = vmatpush1.msra.mxu0 %v5316
    %5342 = vmatprep.subr.mxu0 0.0
    %5343 = vmatpush1.msra.mxu0 %v5317
    %5344 = vmatprep.subr.mxu0 0.0
    %5345 = vmatpush1.msra.mxu0 %v5318
    %5346 = vmatprep.subr.mxu0 0.0
    %5347 = vmatpush1.msra.mxu0 %v5319
    %5348 = vmatprep.subr.mxu0 0.0
    %5349 = vmatpush1.msra.mxu0 %v5320
    %5350 = vmatprep.subr.mxu0 0.0
    %5351 = vmatpush1.msra.mxu0 %v5321
    %5352 = vmatprep.subr.mxu0 0.0
    %5353 = vmatpush1.msra.mxu0 %v5322
    %5354 = vmatprep.subr.mxu0 0.0
    %5355 = vmatpush1.msra.mxu0 %v5323
    %5356 = vmatprep.subr.mxu0 0.0
    %5357 = vmatpush1.msra.mxu0 %v5324
    %5358 = vmatprep.subr.mxu0 0.0
    %5359 = vmatpush1.msra.mxu0 0.0
    %5360 = vmatprep.subr.mxu0 0.0
    %5361 = vmatpush1.msra.mxu0 0.0
    %5362 = vmatprep.subr.mxu0 0.0
    %5363 = vmatpush1.msra.mxu0 0.0
    %5364 = vmatprep.subr.mxu0 0.0
    %5365 = vmatpush1.msra.mxu0 0.0
    %5366 = vmatprep.subr.mxu0 0.0
    %5367 = vmatpush1.msra.mxu0 0.0
    %5368 = vmatprep.subr.mxu0 0.0
    %5369 = vmatpush1.msra.mxu0 0.0
    %5370 = vmatprep.subr.mxu0 0.0
    %5371 = vmatpush1.msra.mxu0 0.0
    %5372 = vmatprep.subr.mxu0 0.0
    %5373 = vmatpush1.msra.mxu0 0.0
    %5374 = vmatprep.subr.mxu0 0.0
    %5375 = vmatpush1.msra.mxu0 0.0
    %5376 = vmatprep.subr.mxu0 0.0
    %5377 = vmatpush1.msra.mxu0 0.0
    %5378 = vmatprep.subr.mxu0 0.0
    %5379 = vmatpush1.msra.mxu0 0.0
    %5380 = vmatprep.subr.mxu0 0.0
    %5381 = vmatpush1.msra.mxu0 0.0
    %5382 = vmatprep.subr.mxu0 0.0
    %5383 = vmatpush1.msra.mxu0 0.0
    %5384 = vmatprep.subr.mxu0 0.0
    %5385 = vmatpush1.msra.mxu0 0.0
    %5386 = vmatprep.subr.mxu0 0.0
    %5387 = vmatpush1.msra.mxu0 0.0
    %5388 = vmatprep.subr.mxu0 0.0
    %5389 = vmatpush1.msra.mxu0 0.0
    %5390 = vmatprep.mubr.f32.mxu0 0.0
    %5391 = vmatmul.mubr.f32.gmra.mrb[0].mxu0 %v5308
    %v5392 = vpop.f32.mrb[0].mxu0
    %v5393 = vadd.f32 %v5325, %v5392
    %v5394 = vpop.f32.mrb[0].mxu0
    %5395 = vdwg.mxu0
    %v5396 = vmax.f32 %v5393, 0.0
    %vm5397 = vcmask 8192
    %5398 = vst.msk [vmem:[#allocation2] sm:$0x1] %vm5397, %v5396
    // Predicated region
    $region26: #{_forward_impl.1} parent=1 // pred_check
      _
    $region27: #{_forward_impl.1} parent=1 // pred_check_branch
      %5400 = sbr.rel (0) target = $region29
    $region28: #{_forward_impl.1} parent=1 // pred_region
      %s5402 = ssub.s32 16, 16
      %5403 = vsyncadd [#allocation3], %s5402
      %s5405 = sshll.u32 [#allocation2], 4
      %s5406 = int_to_ptr.vmem [resolvable:$true] %s5405
      %5408 = dma.vmem_to_hbm [thread:$0]  %s5406, 16, %s6, [#allocation3]
    $region29: #{_forward_impl.1} parent=1 // pred_fallthru
      _
    // Predicated region
    $region30: #{_forward_impl.1} parent=1 // pred_check
      _
    $region31: #{_forward_impl.1} parent=1 // pred_check_branch
      %5410 = sbr.rel (0) target = $region33
    $region32: #{_forward_impl.1} parent=1 // pred_region
      %s5412 = ssub.s32 256, 256
      %5413 = vsyncadd [#allocation5], %s5412
      %s5415 = sshll.u32 [#allocation4], 4
      %s5416 = int_to_ptr.vmem [resolvable:$true] %s5415
      %5418 = dma.vmem_to_hbm [thread:$0]  %s5416, 256, %s7, [#allocation5]
    $region33: #{_forward_impl.1} parent=1 // pred_fallthru
      _
    // Predicated region
    $region34: #{_forward_impl.1} parent=1 // pred_check
      _
    $region35: #{_forward_impl.1} parent=1 // pred_check_branch
      %5420 = sbr.rel (0) target = $region37
    $region36: #{_forward_impl.1} parent=1 // pred_region
      %5421 = dma.done [#allocation3], 16
    $region37: #{_forward_impl.1} parent=1 // pred_fallthru
      _
    // Predicated region
    $region38: #{_forward_impl.1} parent=1 // pred_check
      _
    $region39: #{_forward_impl.1} parent=1 // pred_check_branch
      %5423 = sbr.rel (0) target = $region41
    $region40: #{_forward_impl.1} parent=1 // pred_region
      %5424 = dma.done [#allocation5], 256
    $region41: #{_forward_impl.1} parent=1 // pred_fallthru
      _
    %5425 = vsyncpa [#allocation3], 1
    %5426 = vsyncpa [#allocation5], 1

</llo_original>
